<compile_context>
chip_gen: v7x
topology: tpu7x:2x2x1
jax: 0.10.0
libtpu: 0.0.40
codegen_flags: <defaults>
</compile_context>

<pallas_src>
import jax
import jax.numpy as jnp
from jax.experimental import pallas as pl
from jax.experimental.pallas import tpu as pltpu

_LANES = 128


def _round_up(x, m):
    return ((x + m - 1) // m) * m


def _tensorcores_per_device():
    """v7x exposes 2 TensorCores per chip to a single Pallas program."""
    try:
        kind = jax.devices()[0].device_kind.lower()
    except Exception:
        return 1
    return 2 if "v7" in kind else 1


def _make_attention_kernel(bb, n, dim_p, heads, dim_head, inner,
                           compute_dtype, approx_recip):
    m_blk = bb * n

    def kernel(x_ref, wqkv_ref, wo_ref, bo_ref, o_ref):
        xm = x_ref[...]                                     # (m_blk, dim_p)

        # Single fused, lane-dense QKV projection (scale already folded into
        # the Q columns of the weight): one MXU push instead of 3*heads tiny
        # masked-output matmuls.
        qkv = jnp.dot(xm, wqkv_ref[...],
                      preferred_element_type=jnp.float32)   # (m_blk, qkv_p) f32

        # TODO(synk): for realistic ViT sizes (heads >= 12, n >= 196) switch
        # this static unroll to lax.fori_loop(..., unroll=True) over stacked
        # head slabs (bounds vreg live ranges / f32 (n,n) score VMEM on v7x).
        head_outs = []
        for h in range(heads):
            lo = h * dim_head
            q = qkv[:, lo:lo + dim_head]
            k = qkv[:, inner + lo:inner + lo + dim_head]
            v = qkv[:, 2 * inner + lo:2 * inner + lo + dim_head]

            # Split M -> (batch, n): minor (lane) dim untouched, cheap relabel.
            qb = q.reshape(bb, n, dim_head).astype(compute_dtype)
            kb = k.reshape(bb, n, dim_head).astype(compute_dtype)
            vb = v.reshape(bb, n, dim_head).astype(compute_dtype)

            # Contraction on the last dim of both operands -> dot_general's
            # transposed-RHS MXU path; bf16 inputs, f32 accumulation.
            # TODO(synk): if lowered MLIR shows a per-head vxpose on kb, feed
            # K pre-transposed as (bb, dim_head, n) instead.
            dots = jnp.einsum('bik,bjk->bij', qb, kb,
                              preferred_element_type=jnp.float32)   # (bb,n,n)
            dots = dots - jnp.max(dots, axis=-1, keepdims=True)
            p = jnp.exp(dots)                                        # f32 softmax
            denom = jnp.sum(p, axis=-1, keepdims=True)
            if approx_recip:
                attn = p * pl.reciprocal(denom, approx=True)
            else:
                attn = p / denom

            ob = jnp.einsum('bij,bjk->bik', attn.astype(compute_dtype), vb,
                            preferred_element_type=jnp.float32)      # (bb,n,d)
            head_outs.append(ob.reshape(m_blk, dim_head).astype(compute_dtype))

        # 'b h n d -> b n (h d)' is just a lane concat here; one fused output
        # projection instead of `heads` K=16 matmuls + f32 VPU accumulations.
        om = jnp.concatenate(head_outs, axis=-1)             # (m_blk, inner)
        y = jnp.dot(om, wo_ref[...], preferred_element_type=jnp.float32)
        o_ref[...] = (y + bo_ref[...]).astype(o_ref.dtype)

    return kernel


def attention_forward(x, w_qkv, w_out, b_out, heads, dim_head,
                      *, batch_block=None, compute_dtype=jnp.bfloat16):
    """Forward pass of the PyTorch `Attention` module.

    x:     (b, n, dim)  float32
    w_qkv: (dim, 3*heads*dim_head)   == torch to_qkv.weight.T
    w_out: (heads*dim_head, dim)     == torch to_out[0].weight.T
    b_out: (1, dim)                  == torch to_out[0].bias
    """
    b, n, dim = x.shape
    inner = heads * dim_head
    scale = dim_head ** (-0.5)
    M = b * n

    if batch_block is None:
        batch_block = b                 # single fat grid step (best on 1-TC chips)
        n_tc = _tensorcores_per_device()
        if n_tc > 1 and b % n_tc == 0 and ((b // n_tc) * n) % 8 == 0:
            batch_block = b // n_tc     # one grid step per TensorCore (v7x)
    assert b % batch_block == 0
    m_blk = batch_block * n
    assert m_blk == M or m_blk % 8 == 0, "batch_block * n must be sublane aligned"

    dim_p = _round_up(dim, _LANES)          # lane-dense padded model dim
    qkv_p = _round_up(3 * inner, _LANES)    # lane-dense fused qkv output dim
    itemsize = jnp.dtype(compute_dtype).itemsize

    # ---- wrapper-side layout work (pure XLA, outside the kernel) -----------
    wq, wk, wv = jnp.split(w_qkv, 3, axis=1)        # (dim, inner); head h lives
                                                    # at cols [h*dh:(h+1)*dh]
    w_fused = jnp.concatenate([wq * scale, wk, wv], axis=1)    # (dim, 3*inner)
    w_fused = jnp.pad(w_fused, ((0, dim_p - dim), (0, qkv_p - 3 * inner)))
    w_fused = w_fused.astype(compute_dtype)

    wo_p = jnp.pad(w_out, ((0, 0), (0, dim_p - dim))).astype(compute_dtype)
    bo_p = jnp.pad(b_out.reshape(1, dim),
                   ((0, 0), (0, dim_p - dim))).astype(jnp.float32)

    x_p = jnp.pad(x, ((0, 0), (0, 0), (0, dim_p - dim)))
    x_p = x_p.reshape(M, dim_p).astype(compute_dtype)

    kernel = _make_attention_kernel(
        batch_block, n, dim_p, heads, dim_head, inner, compute_dtype,
        approx_recip=(compute_dtype != jnp.float32))

    cost = pl.CostEstimate(
        flops=(2 * M * dim_p * qkv_p                 # fused qkv projection
               + 4 * b * heads * n * n * dim_head    # q k^T and attn @ v
               + 2 * M * inner * dim_p),             # fused output projection
        transcendentals=b * heads * n * n,
        bytes_accessed=((x_p.size + w_fused.size + wo_p.size) * itemsize
                        + bo_p.size * 4 + M * dim_p * 4),
    )

    # Explicit VMEM budget (safe on v7x: <= 32 MiB scoped of 64 MiB physical).
    vmem_est = (2 * m_blk * dim_p * (itemsize + 4)        # double-buffered x/out blocks
                + (w_fused.size + wo_p.size) * itemsize + bo_p.size * 4
                + m_blk * qkv_p * 4                       # fused qkv activations (f32)
                + 3 * batch_block * n * n * 4             # live score/prob tensors
                + m_blk * (inner + heads * dim_head) * 4)  # head outputs + slices
    vmem_limit = int(min(max(4 * vmem_est, 4 << 20), 32 << 20))

    def _weight_spec(shape, single_buffer):
        index_map = lambda i: (0,) * len(shape)
        if single_buffer:
            # Constant-index weights: single-buffer so revisited blocks are
            # not double-buffered (halves their VMEM footprint for free).
            return pl.BlockSpec(shape, index_map, pipeline_mode=pl.Buffered(1))
        return pl.BlockSpec(shape, index_map)

    def _run(single_buffer_weights):
        in_specs = [
            pl.BlockSpec((m_blk, dim_p), lambda i: (i, 0)),
            _weight_spec((dim_p, qkv_p), single_buffer_weights),
            _weight_spec((inner, dim_p), single_buffer_weights),
            _weight_spec((1, dim_p), single_buffer_weights),
        ]
        return pl.pallas_call(
            kernel,
            out_shape=jax.ShapeDtypeStruct((M, dim_p), jnp.float32),
            grid_spec=pltpu.PrefetchScalarGridSpec(
                num_scalar_prefetch=0,
                grid=(b // batch_block,),
                in_specs=in_specs,
                out_specs=pl.BlockSpec((m_blk, dim_p), lambda i: (i, 0)),
            ),
            compiler_params=pltpu.CompilerParams(
                dimension_semantics=("parallel",),
                vmem_limit_bytes=vmem_limit),
            cost_estimate=cost,
        )(x_p, w_fused, wo_p, bo_p)

    try:
        y_p = _run(True)
    except Exception:
        # pipeline_mode=pl.Buffered(1) not supported by this jax/backend combo:
        # fall back to default (double-buffered) weight specs.
        y_p = _run(False)

    # Slice the lane padding back off and restore (b, n, dim).
    return y_p[:, :dim].reshape(b, n, dim).astype(x.dtype)


def attention_reference(x, w_qkv, w_out, b_out, heads, dim_head):
    b, n, dim = x.shape
    inner = heads * dim_head
    scale = dim_head ** (-0.5)
    qkv = jnp.einsum('bnc,ck->bnk', x, w_qkv)
    q, k, v = jnp.split(qkv, 3, axis=-1)

    def to_heads(t):
        return t.reshape(b, n, heads, dim_head).transpose(0, 2, 1, 3)

    q, k, v = map(to_heads, (q, k, v))
    dots = jnp.einsum('bhid,bhjd->bhij', q, k) * scale
    attn = jax.nn.softmax(dots, axis=-1)
    out = jnp.einsum('bhij,bhjd->bhid', attn, v)
    out = out.transpose(0, 2, 1, 3).reshape(b, n, inner)
    return jnp.einsum('bnk,kc->bnc', out, w_out) + b_out[0]


if __name__ == "__main__":
    # Small shapes consistent with the module's forward: x is (b, n, dim).
    batch, seq, dim = 2, 8, 32
    heads, dim_head = 4, 16
    inner = heads * dim_head

    key = jax.random.PRNGKey(0)
    kx, kq, ko, kb = jax.random.split(key, 4)

    x = jax.random.normal(kx, (batch, seq, dim), dtype=jnp.float32)
    w_qkv = jax.random.normal(kq, (dim, 3 * inner), dtype=jnp.float32) * (dim ** -0.5)
    w_out = jax.random.normal(ko, (inner, dim), dtype=jnp.float32) * (inner ** -0.5)
    b_out = jax.random.normal(kb, (1, dim), dtype=jnp.float32) * 0.01

    y_ref = attention_reference(x, w_qkv, w_out, b_out, heads, dim_head)

    # f32 path: structural-correctness check (exact softmax denominator here).
    y32 = attention_forward(x, w_qkv, w_out, b_out, heads, dim_head,
                            compute_dtype=jnp.float32)
    y32 = jax.block_until_ready(y32)
    assert y32.shape == (batch, seq, dim)
    assert jnp.allclose(y32, y_ref, atol=5e-3, rtol=5e-3), "f32 kernel mismatch"

    # bf16 path (default; perf path for v5e/v6e/v7x): compare against the
    # reference fed the same bf16-rounded inputs; tolerance covers the bf16
    # q/k/attn/v casts and the approx reciprocal.
    y16 = attention_forward(x, w_qkv, w_out, b_out, heads, dim_head)
    y16 = jax.block_until_ready(y16)
    r16 = lambda a: a.astype(jnp.bfloat16).astype(jnp.float32)
    y_ref16 = attention_reference(r16(x), r16(w_qkv), r16(w_out), b_out,
                                  heads, dim_head)
    assert jnp.allclose(y16, y_ref16, atol=2.5e-2, rtol=2.5e-2), "bf16 kernel mismatch"

    print("KERNEL_OK")
</pallas_src>

<mosaic_0001>
module attributes {stable_mosaic.version = 11 : i64} {
  func.func @kernel(%arg0: i32, %arg1: memref<16x128xf32, #tpu.memory_space<vmem>>, %arg2: memref<128x256xf32, #tpu.memory_space<vmem>>, %arg3: memref<64x128xf32, #tpu.memory_space<vmem>>, %arg4: memref<1x128xf32, #tpu.memory_space<vmem>>, %arg5: memref<16x128xf32, #tpu.memory_space<vmem>>) attributes {dimension_semantics = [#tpu.dimension_semantics<parallel>], iteration_bounds = array<i64: 1>, scalar_prefetch = 0 : i64, scratch_operands = 0 : i64, tpu.core_type = #tpu.core_type<tc>, window_params = [{transform_indices = @transform_0, window_bounds = array<i64: 16, 128>}, {pipeline_mode = #tpu.pipeline_mode<synchronous>, transform_indices = @transform_1, window_bounds = array<i64: 128, 256>}, {pipeline_mode = #tpu.pipeline_mode<synchronous>, transform_indices = @transform_2, window_bounds = array<i64: 64, 128>}, {pipeline_mode = #tpu.pipeline_mode<synchronous>, transform_indices = @transform_3, window_bounds = array<i64: 1, 128>}, {transform_indices = @transform_4, window_bounds = array<i64: 16, 128>}]} {
    %c0 = arith.constant 0 : index
    %c0_0 = arith.constant 0 : index
    %0 = vector.load %arg1[%c0, %c0_0] : memref<16x128xf32, #tpu.memory_space<vmem>>, vector<16x128xf32>
    %c0_1 = arith.constant 0 : index
    %c0_2 = arith.constant 0 : index
    %1 = vector.load %arg2[%c0_1, %c0_2] : memref<128x256xf32, #tpu.memory_space<vmem>>, vector<128x256xf32>
    %cst = arith.constant dense<0.000000e+00> : vector<16x256xf32>
    %2 = tpu.matmul %0, %1, %cst {dimension_numbers = #tpu.dot_dimension_numbers<[1], [0], [0], [1], [0, 0, 1, 1], [], []>} : vector<16x128xf32>, vector<128x256xf32>, vector<16x256xf32> -> vector<16x256xf32>
    %3 = vector.extract_strided_slice %2 {offsets = [0, 0], sizes = [16, 16], strides = [1, 1]} : vector<16x256xf32> to vector<16x16xf32>
    %4 = vector.extract_strided_slice %2 {offsets = [0, 64], sizes = [16, 16], strides = [1, 1]} : vector<16x256xf32> to vector<16x16xf32>
    %5 = vector.extract_strided_slice %2 {offsets = [0, 128], sizes = [16, 16], strides = [1, 1]} : vector<16x256xf32> to vector<16x16xf32>
    %6 = vector.shape_cast %3 : vector<16x16xf32> to vector<2x8x16xf32>
    %7 = vector.shape_cast %4 : vector<16x16xf32> to vector<2x8x16xf32>
    %8 = vector.shape_cast %5 : vector<16x16xf32> to vector<2x8x16xf32>
    "tpu.trace_start"() <{level = 10 : i32, message = "bik,bjk->bij"}> : () -> ()
    %cst_3 = arith.constant dense<0.000000e+00> : vector<2x8x8xf32>
    %9 = tpu.matmul %6, %7, %cst_3 {dimension_numbers = #tpu.dot_dimension_numbers<[2], [2], [1], [1], [0, 0, 0, 1, 1, 1], [0], [0]>} : vector<2x8x16xf32>, vector<2x8x16xf32>, vector<2x8x8xf32> -> vector<2x8x8xf32>
    "tpu.trace_stop"() : () -> ()
    %cst_4 = arith.constant dense<0xFF800000> : vector<2x8xf32>
    %10 = vector.multi_reduction <maximumf>, %9, %cst_4 [2] : vector<2x8x8xf32> to vector<2x8xf32>
    %11 = vector.shape_cast %10 : vector<2x8xf32> to vector<2x8x1xf32>
    %12 = vector.broadcast %11 : vector<2x8x1xf32> to vector<2x8x8xf32>
    %13 = arith.subf %9, %12 : vector<2x8x8xf32>
    %14 = math.exp %13 : vector<2x8x8xf32>
    %cst_5 = arith.constant dense<0.000000e+00> : vector<2x8xf32>
    %15 = vector.multi_reduction <add>, %14, %cst_5 [2] : vector<2x8x8xf32> to vector<2x8xf32>
    %16 = vector.shape_cast %15 : vector<2x8xf32> to vector<2x8x1xf32>
    %17 = vector.broadcast %16 : vector<2x8x1xf32> to vector<2x8x8xf32>
    %18 = arith.divf %14, %17 : vector<2x8x8xf32>
    "tpu.trace_start"() <{level = 10 : i32, message = "bij,bjk->bik"}> : () -> ()
    %cst_6 = arith.constant dense<0.000000e+00> : vector<2x8x16xf32>
    %19 = tpu.matmul %18, %8, %cst_6 {dimension_numbers = #tpu.dot_dimension_numbers<[2], [1], [1], [2], [0, 0, 0, 1, 1, 2], [0], [0]>} : vector<2x8x8xf32>, vector<2x8x16xf32>, vector<2x8x16xf32> -> vector<2x8x16xf32>
    "tpu.trace_stop"() : () -> ()
    %20 = vector.shape_cast %19 : vector<2x8x16xf32> to vector<16x16xf32>
    %21 = vector.extract_strided_slice %2 {offsets = [0, 16], sizes = [16, 16], strides = [1, 1]} : vector<16x256xf32> to vector<16x16xf32>
    %22 = vector.extract_strided_slice %2 {offsets = [0, 80], sizes = [16, 16], strides = [1, 1]} : vector<16x256xf32> to vector<16x16xf32>
    %23 = vector.extract_strided_slice %2 {offsets = [0, 144], sizes = [16, 16], strides = [1, 1]} : vector<16x256xf32> to vector<16x16xf32>
    %24 = vector.shape_cast %21 : vector<16x16xf32> to vector<2x8x16xf32>
    %25 = vector.shape_cast %22 : vector<16x16xf32> to vector<2x8x16xf32>
    %26 = vector.shape_cast %23 : vector<16x16xf32> to vector<2x8x16xf32>
    "tpu.trace_start"() <{level = 10 : i32, message = "bik,bjk->bij"}> : () -> ()
    %cst_7 = arith.constant dense<0.000000e+00> : vector<2x8x8xf32>
    %27 = tpu.matmul %24, %25, %cst_7 {dimension_numbers = #tpu.dot_dimension_numbers<[2], [2], [1], [1], [0, 0, 0, 1, 1, 1], [0], [0]>} : vector<2x8x16xf32>, vector<2x8x16xf32>, vector<2x8x8xf32> -> vector<2x8x8xf32>
    "tpu.trace_stop"() : () -> ()
    %cst_8 = arith.constant dense<0xFF800000> : vector<2x8xf32>
    %28 = vector.multi_reduction <maximumf>, %27, %cst_8 [2] : vector<2x8x8xf32> to vector<2x8xf32>
    %29 = vector.shape_cast %28 : vector<2x8xf32> to vector<2x8x1xf32>
    %30 = vector.broadcast %29 : vector<2x8x1xf32> to vector<2x8x8xf32>
    %31 = arith.subf %27, %30 : vector<2x8x8xf32>
    %32 = math.exp %31 : vector<2x8x8xf32>
    %cst_9 = arith.constant dense<0.000000e+00> : vector<2x8xf32>
    %33 = vector.multi_reduction <add>, %32, %cst_9 [2] : vector<2x8x8xf32> to vector<2x8xf32>
    %34 = vector.shape_cast %33 : vector<2x8xf32> to vector<2x8x1xf32>
    %35 = vector.broadcast %34 : vector<2x8x1xf32> to vector<2x8x8xf32>
    %36 = arith.divf %32, %35 : vector<2x8x8xf32>
    "tpu.trace_start"() <{level = 10 : i32, message = "bij,bjk->bik"}> : () -> ()
    %cst_10 = arith.constant dense<0.000000e+00> : vector<2x8x16xf32>
    %37 = tpu.matmul %36, %26, %cst_10 {dimension_numbers = #tpu.dot_dimension_numbers<[2], [1], [1], [2], [0, 0, 0, 1, 1, 2], [0], [0]>} : vector<2x8x8xf32>, vector<2x8x16xf32>, vector<2x8x16xf32> -> vector<2x8x16xf32>
    "tpu.trace_stop"() : () -> ()
    %38 = vector.shape_cast %37 : vector<2x8x16xf32> to vector<16x16xf32>
    %39 = vector.extract_strided_slice %2 {offsets = [0, 32], sizes = [16, 16], strides = [1, 1]} : vector<16x256xf32> to vector<16x16xf32>
    %40 = vector.extract_strided_slice %2 {offsets = [0, 96], sizes = [16, 16], strides = [1, 1]} : vector<16x256xf32> to vector<16x16xf32>
    %41 = vector.extract_strided_slice %2 {offsets = [0, 160], sizes = [16, 16], strides = [1, 1]} : vector<16x256xf32> to vector<16x16xf32>
    %42 = vector.shape_cast %39 : vector<16x16xf32> to vector<2x8x16xf32>
    %43 = vector.shape_cast %40 : vector<16x16xf32> to vector<2x8x16xf32>
    %44 = vector.shape_cast %41 : vector<16x16xf32> to vector<2x8x16xf32>
    "tpu.trace_start"() <{level = 10 : i32, message = "bik,bjk->bij"}> : () -> ()
    %cst_11 = arith.constant dense<0.000000e+00> : vector<2x8x8xf32>
    %45 = tpu.matmul %42, %43, %cst_11 {dimension_numbers = #tpu.dot_dimension_numbers<[2], [2], [1], [1], [0, 0, 0, 1, 1, 1], [0], [0]>} : vector<2x8x16xf32>, vector<2x8x16xf32>, vector<2x8x8xf32> -> vector<2x8x8xf32>
    "tpu.trace_stop"() : () -> ()
    %cst_12 = arith.constant dense<0xFF800000> : vector<2x8xf32>
    %46 = vector.multi_reduction <maximumf>, %45, %cst_12 [2] : vector<2x8x8xf32> to vector<2x8xf32>
    %47 = vector.shape_cast %46 : vector<2x8xf32> to vector<2x8x1xf32>
    %48 = vector.broadcast %47 : vector<2x8x1xf32> to vector<2x8x8xf32>
    %49 = arith.subf %45, %48 : vector<2x8x8xf32>
    %50 = math.exp %49 : vector<2x8x8xf32>
    %cst_13 = arith.constant dense<0.000000e+00> : vector<2x8xf32>
    %51 = vector.multi_reduction <add>, %50, %cst_13 [2] : vector<2x8x8xf32> to vector<2x8xf32>
    %52 = vector.shape_cast %51 : vector<2x8xf32> to vector<2x8x1xf32>
    %53 = vector.broadcast %52 : vector<2x8x1xf32> to vector<2x8x8xf32>
    %54 = arith.divf %50, %53 : vector<2x8x8xf32>
    "tpu.trace_start"() <{level = 10 : i32, message = "bij,bjk->bik"}> : () -> ()
    %cst_14 = arith.constant dense<0.000000e+00> : vector<2x8x16xf32>
    %55 = tpu.matmul %54, %44, %cst_14 {dimension_numbers = #tpu.dot_dimension_numbers<[2], [1], [1], [2], [0, 0, 0, 1, 1, 2], [0], [0]>} : vector<2x8x8xf32>, vector<2x8x16xf32>, vector<2x8x16xf32> -> vector<2x8x16xf32>
    "tpu.trace_stop"() : () -> ()
    %56 = vector.shape_cast %55 : vector<2x8x16xf32> to vector<16x16xf32>
    %57 = vector.extract_strided_slice %2 {offsets = [0, 48], sizes = [16, 16], strides = [1, 1]} : vector<16x256xf32> to vector<16x16xf32>
    %58 = vector.extract_strided_slice %2 {offsets = [0, 112], sizes = [16, 16], strides = [1, 1]} : vector<16x256xf32> to vector<16x16xf32>
    %59 = vector.extract_strided_slice %2 {offsets = [0, 176], sizes = [16, 16], strides = [1, 1]} : vector<16x256xf32> to vector<16x16xf32>
    %60 = vector.shape_cast %57 : vector<16x16xf32> to vector<2x8x16xf32>
    %61 = vector.shape_cast %58 : vector<16x16xf32> to vector<2x8x16xf32>
    %62 = vector.shape_cast %59 : vector<16x16xf32> to vector<2x8x16xf32>
    "tpu.trace_start"() <{level = 10 : i32, message = "bik,bjk->bij"}> : () -> ()
    %cst_15 = arith.constant dense<0.000000e+00> : vector<2x8x8xf32>
    %63 = tpu.matmul %60, %61, %cst_15 {dimension_numbers = #tpu.dot_dimension_numbers<[2], [2], [1], [1], [0, 0, 0, 1, 1, 1], [0], [0]>} : vector<2x8x16xf32>, vector<2x8x16xf32>, vector<2x8x8xf32> -> vector<2x8x8xf32>
    "tpu.trace_stop"() : () -> ()
    %cst_16 = arith.constant dense<0xFF800000> : vector<2x8xf32>
    %64 = vector.multi_reduction <maximumf>, %63, %cst_16 [2] : vector<2x8x8xf32> to vector<2x8xf32>
    %65 = vector.shape_cast %64 : vector<2x8xf32> to vector<2x8x1xf32>
    %66 = vector.broadcast %65 : vector<2x8x1xf32> to vector<2x8x8xf32>
    %67 = arith.subf %63, %66 : vector<2x8x8xf32>
    %68 = math.exp %67 : vector<2x8x8xf32>
    %cst_17 = arith.constant dense<0.000000e+00> : vector<2x8xf32>
    %69 = vector.multi_reduction <add>, %68, %cst_17 [2] : vector<2x8x8xf32> to vector<2x8xf32>
    %70 = vector.shape_cast %69 : vector<2x8xf32> to vector<2x8x1xf32>
    %71 = vector.broadcast %70 : vector<2x8x1xf32> to vector<2x8x8xf32>
    %72 = arith.divf %68, %71 : vector<2x8x8xf32>
    "tpu.trace_start"() <{level = 10 : i32, message = "bij,bjk->bik"}> : () -> ()
    %cst_18 = arith.constant dense<0.000000e+00> : vector<2x8x16xf32>
    %73 = tpu.matmul %72, %62, %cst_18 {dimension_numbers = #tpu.dot_dimension_numbers<[2], [1], [1], [2], [0, 0, 0, 1, 1, 2], [0], [0]>} : vector<2x8x8xf32>, vector<2x8x16xf32>, vector<2x8x16xf32> -> vector<2x8x16xf32>
    "tpu.trace_stop"() : () -> ()
    %74 = vector.shape_cast %73 : vector<2x8x16xf32> to vector<16x16xf32>
    %75 = tpu.concatenate %20, %38, %56, %74 in 1 : vector<16x16xf32>, vector<16x16xf32>, vector<16x16xf32>, vector<16x16xf32> -> vector<16x64xf32>
    %c0_19 = arith.constant 0 : index
    %c0_20 = arith.constant 0 : index
    %76 = vector.load %arg3[%c0_19, %c0_20] : memref<64x128xf32, #tpu.memory_space<vmem>>, vector<64x128xf32>
    %cst_21 = arith.constant dense<0.000000e+00> : vector<16x128xf32>
    %77 = tpu.matmul %75, %76, %cst_21 {dimension_numbers = #tpu.dot_dimension_numbers<[1], [0], [0], [1], [0, 0, 1, 1], [], []>} : vector<16x64xf32>, vector<64x128xf32>, vector<16x128xf32> -> vector<16x128xf32>
    %c0_22 = arith.constant 0 : index
    %c0_23 = arith.constant 0 : index
    %78 = vector.load %arg4[%c0_22, %c0_23] : memref<1x128xf32, #tpu.memory_space<vmem>>, vector<1x128xf32>
    %79 = vector.broadcast %78 : vector<1x128xf32> to vector<16x128xf32>
    %80 = arith.addf %77, %79 : vector<16x128xf32>
    %c0_24 = arith.constant 0 : index
    %c0_25 = arith.constant 0 : index
    %81 = vector.load %arg5[%c0_24, %c0_25] : memref<16x128xf32, #tpu.memory_space<vmem>>, vector<16x128xf32>
    tpu.vector_store %arg5[%c0_24, %c0_25], %80 {strides = array<i32>} : memref<16x128xf32, #tpu.memory_space<vmem>>, vector<16x128xf32>,
    return
  }
  func.func @transform_0(%arg0: i32) -> (i32, i32) {
    %c0_i32 = arith.constant 0 : i32
    %c0_i32_0 = arith.constant 0 : i32
    return %arg0, %c0_i32 : i32, i32
  }
  func.func @transform_1(%arg0: i32) -> (i32, i32) {
    %c0_i32 = arith.constant 0 : i32
    %c0_i32_0 = arith.constant 0 : i32
    %c0_i32_1 = arith.constant 0 : i32
    return %c0_i32, %c0_i32_0 : i32, i32
  }
  func.func @transform_2(%arg0: i32) -> (i32, i32) {
    %c0_i32 = arith.constant 0 : i32
    %c0_i32_0 = arith.constant 0 : i32
    %c0_i32_1 = arith.constant 0 : i32
    return %c0_i32, %c0_i32_0 : i32, i32
  }
  func.func @transform_3(%arg0: i32) -> (i32, i32) {
    %c0_i32 = arith.constant 0 : i32
    %c0_i32_0 = arith.constant 0 : i32
    %c0_i32_1 = arith.constant 0 : i32
    return %c0_i32, %c0_i32_0 : i32, i32
  }
  func.func @transform_4(%arg0: i32) -> (i32, i32) {
    %c0_i32 = arith.constant 0 : i32
    %c0_i32_0 = arith.constant 0 : i32
    return %arg0, %c0_i32 : i32, i32
  }
}

module attributes {stable_mosaic.version = 11 : i64} {
  func.func @kernel(%arg0: i32, %arg1: memref<16x128xf32, #tpu.memory_space<vmem>>, %arg2: memref<128x256xf32, #tpu.memory_space<vmem>>, %arg3: memref<64x128xf32, #tpu.memory_space<vmem>>, %arg4: memref<1x128xf32, #tpu.memory_space<vmem>>, %arg5: memref<16x128xf32, #tpu.memory_space<vmem>>) attributes {dimension_semantics = [#tpu.dimension_semantics<parallel>], iteration_bounds = array<i64: 1>, scalar_prefetch = 0 : i64, scratch_operands = 0 : i64, tpu.core_type = #tpu.core_type<tc>, window_params = [{transform_indices = @transform_0, window_bounds = array<i64: 16, 128>}, {pipeline_mode = #tpu.pipeline_mode<synchronous>, transform_indices = @transform_1, window_bounds = array<i64: 128, 256>}, {pipeline_mode = #tpu.pipeline_mode<synchronous>, transform_indices = @transform_2, window_bounds = array<i64: 64, 128>}, {pipeline_mode = #tpu.pipeline_mode<synchronous>, transform_indices = @transform_3, window_bounds = array<i64: 1, 128>}, {transform_indices = @transform_4, window_bounds = array<i64: 16, 128>}]} {
    %c0 = arith.constant 0 : index
    %c0_0 = arith.constant 0 : index
    %0 = vector.load %arg1[%c0, %c0_0] : memref<16x128xf32, #tpu.memory_space<vmem>>, vector<16x128xf32>
    %c0_1 = arith.constant 0 : index
    %c0_2 = arith.constant 0 : index
    %1 = vector.load %arg2[%c0_1, %c0_2] : memref<128x256xf32, #tpu.memory_space<vmem>>, vector<128x256xf32>
    %cst = arith.constant dense<0.000000e+00> : vector<16x256xf32>
    %2 = tpu.matmul %0, %1, %cst {dimension_numbers = #tpu.dot_dimension_numbers<[1], [0], [0], [1], [0, 0, 1, 1], [], []>} : vector<16x128xf32>, vector<128x256xf32>, vector<16x256xf32> -> vector<16x256xf32>
    %3 = vector.extract_strided_slice %2 {offsets = [0, 0], sizes = [16, 16], strides = [1, 1]} : vector<16x256xf32> to vector<16x16xf32>
    %4 = vector.extract_strided_slice %2 {offsets = [0, 64], sizes = [16, 16], strides = [1, 1]} : vector<16x256xf32> to vector<16x16xf32>
    %5 = vector.extract_strided_slice %2 {offsets = [0, 128], sizes = [16, 16], strides = [1, 1]} : vector<16x256xf32> to vector<16x16xf32>
    %6 = vector.shape_cast %3 : vector<16x16xf32> to vector<2x8x16xf32>
    %7 = vector.shape_cast %4 : vector<16x16xf32> to vector<2x8x16xf32>
    %8 = vector.shape_cast %5 : vector<16x16xf32> to vector<2x8x16xf32>
    "tpu.trace_start"() <{level = 10 : i32, message = "bik,bjk->bij"}> : () -> ()
    %cst_3 = arith.constant dense<0.000000e+00> : vector<2x8x8xf32>
    %9 = tpu.matmul %6, %7, %cst_3 {dimension_numbers = #tpu.dot_dimension_numbers<[2], [2], [1], [1], [0, 0, 0, 1, 1, 1], [0], [0]>} : vector<2x8x16xf32>, vector<2x8x16xf32>, vector<2x8x8xf32> -> vector<2x8x8xf32>
    "tpu.trace_stop"() : () -> ()
    %cst_4 = arith.constant dense<0xFF800000> : vector<2x8xf32>
    %10 = vector.multi_reduction <maximumf>, %9, %cst_4 [2] : vector<2x8x8xf32> to vector<2x8xf32>
    %11 = vector.shape_cast %10 : vector<2x8xf32> to vector<2x8x1xf32>
    %12 = vector.broadcast %11 : vector<2x8x1xf32> to vector<2x8x8xf32>
    %13 = arith.subf %9, %12 : vector<2x8x8xf32>
    %14 = math.exp %13 : vector<2x8x8xf32>
    %cst_5 = arith.constant dense<0.000000e+00> : vector<2x8xf32>
    %15 = vector.multi_reduction <add>, %14, %cst_5 [2] : vector<2x8x8xf32> to vector<2x8xf32>
    %16 = vector.shape_cast %15 : vector<2x8xf32> to vector<2x8x1xf32>
    %17 = vector.broadcast %16 : vector<2x8x1xf32> to vector<2x8x8xf32>
    %18 = arith.divf %14, %17 : vector<2x8x8xf32>
    "tpu.trace_start"() <{level = 10 : i32, message = "bij,bjk->bik"}> : () -> ()
    %cst_6 = arith.constant dense<0.000000e+00> : vector<2x8x16xf32>
    %19 = tpu.matmul %18, %8, %cst_6 {dimension_numbers = #tpu.dot_dimension_numbers<[2], [1], [1], [2], [0, 0, 0, 1, 1, 2], [0], [0]>} : vector<2x8x8xf32>, vector<2x8x16xf32>, vector<2x8x16xf32> -> vector<2x8x16xf32>
    "tpu.trace_stop"() : () -> ()
    %20 = vector.shape_cast %19 : vector<2x8x16xf32> to vector<16x16xf32>
    %21 = vector.extract_strided_slice %2 {offsets = [0, 16], sizes = [16, 16], strides = [1, 1]} : vector<16x256xf32> to vector<16x16xf32>
    %22 = vector.extract_strided_slice %2 {offsets = [0, 80], sizes = [16, 16], strides = [1, 1]} : vector<16x256xf32> to vector<16x16xf32>
    %23 = vector.extract_strided_slice %2 {offsets = [0, 144], sizes = [16, 16], strides = [1, 1]} : vector<16x256xf32> to vector<16x16xf32>
    %24 = vector.shape_cast %21 : vector<16x16xf32> to vector<2x8x16xf32>
    %25 = vector.shape_cast %22 : vector<16x16xf32> to vector<2x8x16xf32>
    %26 = vector.shape_cast %23 : vector<16x16xf32> to vector<2x8x16xf32>
    "tpu.trace_start"() <{level = 10 : i32, message = "bik,bjk->bij"}> : () -> ()
    %cst_7 = arith.constant dense<0.000000e+00> : vector<2x8x8xf32>
    %27 = tpu.matmul %24, %25, %cst_7 {dimension_numbers = #tpu.dot_dimension_numbers<[2], [2], [1], [1], [0, 0, 0, 1, 1, 1], [0], [0]>} : vector<2x8x16xf32>, vector<2x8x16xf32>, vector<2x8x8xf32> -> vector<2x8x8xf32>
    "tpu.trace_stop"() : () -> ()
    %cst_8 = arith.constant dense<0xFF800000> : vector<2x8xf32>
    %28 = vector.multi_reduction <maximumf>, %27, %cst_8 [2] : vector<2x8x8xf32> to vector<2x8xf32>
    %29 = vector.shape_cast %28 : vector<2x8xf32> to vector<2x8x1xf32>
    %30 = vector.broadcast %29 : vector<2x8x1xf32> to vector<2x8x8xf32>
    %31 = arith.subf %27, %30 : vector<2x8x8xf32>
    %32 = math.exp %31 : vector<2x8x8xf32>
    %cst_9 = arith.constant dense<0.000000e+00> : vector<2x8xf32>
    %33 = vector.multi_reduction <add>, %32, %cst_9 [2] : vector<2x8x8xf32> to vector<2x8xf32>
    %34 = vector.shape_cast %33 : vector<2x8xf32> to vector<2x8x1xf32>
    %35 = vector.broadcast %34 : vector<2x8x1xf32> to vector<2x8x8xf32>
    %36 = arith.divf %32, %35 : vector<2x8x8xf32>
    "tpu.trace_start"() <{level = 10 : i32, message = "bij,bjk->bik"}> : () -> ()
    %cst_10 = arith.constant dense<0.000000e+00> : vector<2x8x16xf32>
    %37 = tpu.matmul %36, %26, %cst_10 {dimension_numbers = #tpu.dot_dimension_numbers<[2], [1], [1], [2], [0, 0, 0, 1, 1, 2], [0], [0]>} : vector<2x8x8xf32>, vector<2x8x16xf32>, vector<2x8x16xf32> -> vector<2x8x16xf32>
    "tpu.trace_stop"() : () -> ()
    %38 = vector.shape_cast %37 : vector<2x8x16xf32> to vector<16x16xf32>
    %39 = vector.extract_strided_slice %2 {offsets = [0, 32], sizes = [16, 16], strides = [1, 1]} : vector<16x256xf32> to vector<16x16xf32>
    %40 = vector.extract_strided_slice %2 {offsets = [0, 96], sizes = [16, 16], strides = [1, 1]} : vector<16x256xf32> to vector<16x16xf32>
    %41 = vector.extract_strided_slice %2 {offsets = [0, 160], sizes = [16, 16], strides = [1, 1]} : vector<16x256xf32> to vector<16x16xf32>
    %42 = vector.shape_cast %39 : vector<16x16xf32> to vector<2x8x16xf32>
    %43 = vector.shape_cast %40 : vector<16x16xf32> to vector<2x8x16xf32>
    %44 = vector.shape_cast %41 : vector<16x16xf32> to vector<2x8x16xf32>
    "tpu.trace_start"() <{level = 10 : i32, message = "bik,bjk->bij"}> : () -> ()
    %cst_11 = arith.constant dense<0.000000e+00> : vector<2x8x8xf32>
    %45 = tpu.matmul %42, %43, %cst_11 {dimension_numbers = #tpu.dot_dimension_numbers<[2], [2], [1], [1], [0, 0, 0, 1, 1, 1], [0], [0]>} : vector<2x8x16xf32>, vector<2x8x16xf32>, vector<2x8x8xf32> -> vector<2x8x8xf32>
    "tpu.trace_stop"() : () -> ()
    %cst_12 = arith.constant dense<0xFF800000> : vector<2x8xf32>
    %46 = vector.multi_reduction <maximumf>, %45, %cst_12 [2] : vector<2x8x8xf32> to vector<2x8xf32>
    %47 = vector.shape_cast %46 : vector<2x8xf32> to vector<2x8x1xf32>
    %48 = vector.broadcast %47 : vector<2x8x1xf32> to vector<2x8x8xf32>
    %49 = arith.subf %45, %48 : vector<2x8x8xf32>
    %50 = math.exp %49 : vector<2x8x8xf32>
    %cst_13 = arith.constant dense<0.000000e+00> : vector<2x8xf32>
    %51 = vector.multi_reduction <add>, %50, %cst_13 [2] : vector<2x8x8xf32> to vector<2x8xf32>
    %52 = vector.shape_cast %51 : vector<2x8xf32> to vector<2x8x1xf32>
    %53 = vector.broadcast %52 : vector<2x8x1xf32> to vector<2x8x8xf32>
    %54 = arith.divf %50, %53 : vector<2x8x8xf32>
    "tpu.trace_start"() <{level = 10 : i32, message = "bij,bjk->bik"}> : () -> ()
    %cst_14 = arith.constant dense<0.000000e+00> : vector<2x8x16xf32>
    %55 = tpu.matmul %54, %44, %cst_14 {dimension_numbers = #tpu.dot_dimension_numbers<[2], [1], [1], [2], [0, 0, 0, 1, 1, 2], [0], [0]>} : vector<2x8x8xf32>, vector<2x8x16xf32>, vector<2x8x16xf32> -> vector<2x8x16xf32>
    "tpu.trace_stop"() : () -> ()
    %56 = vector.shape_cast %55 : vector<2x8x16xf32> to vector<16x16xf32>
    %57 = vector.extract_strided_slice %2 {offsets = [0, 48], sizes = [16, 16], strides = [1, 1]} : vector<16x256xf32> to vector<16x16xf32>
    %58 = vector.extract_strided_slice %2 {offsets = [0, 112], sizes = [16, 16], strides = [1, 1]} : vector<16x256xf32> to vector<16x16xf32>
    %59 = vector.extract_strided_slice %2 {offsets = [0, 176], sizes = [16, 16], strides = [1, 1]} : vector<16x256xf32> to vector<16x16xf32>
    %60 = vector.shape_cast %57 : vector<16x16xf32> to vector<2x8x16xf32>
    %61 = vector.shape_cast %58 : vector<16x16xf32> to vector<2x8x16xf32>
    %62 = vector.shape_cast %59 : vector<16x16xf32> to vector<2x8x16xf32>
    "tpu.trace_start"() <{level = 10 : i32, message = "bik,bjk->bij"}> : () -> ()
    %cst_15 = arith.constant dense<0.000000e+00> : vector<2x8x8xf32>
    %63 = tpu.matmul %60, %61, %cst_15 {dimension_numbers = #tpu.dot_dimension_numbers<[2], [2], [1], [1], [0, 0, 0, 1, 1, 1], [0], [0]>} : vector<2x8x16xf32>, vector<2x8x16xf32>, vector<2x8x8xf32> -> vector<2x8x8xf32>
    "tpu.trace_stop"() : () -> ()
    %cst_16 = arith.constant dense<0xFF800000> : vector<2x8xf32>
    %64 = vector.multi_reduction <maximumf>, %63, %cst_16 [2] : vector<2x8x8xf32> to vector<2x8xf32>
    %65 = vector.shape_cast %64 : vector<2x8xf32> to vector<2x8x1xf32>
    %66 = vector.broadcast %65 : vector<2x8x1xf32> to vector<2x8x8xf32>
    %67 = arith.subf %63, %66 : vector<2x8x8xf32>
    %68 = math.exp %67 : vector<2x8x8xf32>
    %cst_17 = arith.constant dense<0.000000e+00> : vector<2x8xf32>
    %69 = vector.multi_reduction <add>, %68, %cst_17 [2] : vector<2x8x8xf32> to vector<2x8xf32>
    %70 = vector.shape_cast %69 : vector<2x8xf32> to vector<2x8x1xf32>
    %71 = vector.broadcast %70 : vector<2x8x1xf32> to vector<2x8x8xf32>
    %72 = arith.divf %68, %71 : vector<2x8x8xf32>
    "tpu.trace_start"() <{level = 10 : i32, message = "bij,bjk->bik"}> : () -> ()
    %cst_18 = arith.constant dense<0.000000e+00> : vector<2x8x16xf32>
    %73 = tpu.matmul %72, %62, %cst_18 {dimension_numbers = #tpu.dot_dimension_numbers<[2], [1], [1], [2], [0, 0, 0, 1, 1, 2], [0], [0]>} : vector<2x8x8xf32>, vector<2x8x16xf32>, vector<2x8x16xf32> -> vector<2x8x16xf32>
    "tpu.trace_stop"() : () -> ()
    %74 = vector.shape_cast %73 : vector<2x8x16xf32> to vector<16x16xf32>
    %75 = tpu.concatenate %20, %38, %56, %74 in 1 : vector<16x16xf32>, vector<16x16xf32>, vector<16x16xf32>, vector<16x16xf32> -> vector<16x64xf32>
    %c0_19 = arith.constant 0 : index
    %c0_20 = arith.constant 0 : index
    %76 = vector.load %arg3[%c0_19, %c0_20] : memref<64x128xf32, #tpu.memory_space<vmem>>, vector<64x128xf32>
    %cst_21 = arith.constant dense<0.000000e+00> : vector<16x128xf32>
    %77 = tpu.matmul %75, %76, %cst_21 {dimension_numbers = #tpu.dot_dimension_numbers<[1], [0], [0], [1], [0, 0, 1, 1], [], []>} : vector<16x64xf32>, vector<64x128xf32>, vector<16x128xf32> -> vector<16x128xf32>
    %c0_22 = arith.constant 0 : index
    %c0_23 = arith.constant 0 : index
    %78 = vector.load %arg4[%c0_22, %c0_23] : memref<1x128xf32, #tpu.memory_space<vmem>>, vector<1x128xf32>
    %79 = vector.broadcast %78 : vector<1x128xf32> to vector<16x128xf32>
    %80 = arith.addf %77, %79 : vector<16x128xf32>
    %c0_24 = arith.constant 0 : index
    %c0_25 = arith.constant 0 : index
    %81 = vector.load %arg5[%c0_24, %c0_25] : memref<16x128xf32, #tpu.memory_space<vmem>>, vector<16x128xf32>
    tpu.vector_store %arg5[%c0_24, %c0_25], %80 {strides = array<i32>} : memref<16x128xf32, #tpu.memory_space<vmem>>, vector<16x128xf32>,
    return
  }
  func.func @transform_0(%arg0: i32) -> (i32, i32) {
    %c0_i32 = arith.constant 0 : i32
    %c0_i32_0 = arith.constant 0 : i32
    return %arg0, %c0_i32 : i32, i32
  }
  func.func @transform_1(%arg0: i32) -> (i32, i32) {
    %c0_i32 = arith.constant 0 : i32
    %c0_i32_0 = arith.constant 0 : i32
    %c0_i32_1 = arith.constant 0 : i32
    return %c0_i32, %c0_i32_0 : i32, i32
  }
  func.func @transform_2(%arg0: i32) -> (i32, i32) {
    %c0_i32 = arith.constant 0 : i32
    %c0_i32_0 = arith.constant 0 : i32
    %c0_i32_1 = arith.constant 0 : i32
    return %c0_i32, %c0_i32_0 : i32, i32
  }
  func.func @transform_3(%arg0: i32) -> (i32, i32) {
    %c0_i32 = arith.constant 0 : i32
    %c0_i32_0 = arith.constant 0 : i32
    %c0_i32_1 = arith.constant 0 : i32
    return %c0_i32, %c0_i32_0 : i32, i32
  }
  func.func @transform_4(%arg0: i32) -> (i32, i32) {
    %c0_i32 = arith.constant 0 : i32
    %c0_i32_0 = arith.constant 0 : i32
    return %arg0, %c0_i32 : i32, i32
  }
}

</mosaic_0001>

<llo_original>
// kernel: tpu_custom_call.1
$region0: #{tpu_custom_call.1}
  #allocation0 [shape = 'u32[]', space=smem, size = 0x4, offset = 0x4, fixed_abs, tag = 'smem constant byte address 0x4 - core index']
  #allocation1 [shape = 'u32[144,128]{1,0:T(1,128)}', space=vmem, size = 0x12000, scoped, tag = 'internal scratch']
  %s0 = inlined_call_operand.hbm [shape: f32[16,128], index: 0, kind: input, shape index: {}]
  %s1 = inlined_call_operand.hbm [shape: f32[128,256], index: 1, kind: input, shape index: {}]
  %s2 = inlined_call_operand.hbm [shape: f32[64,128], index: 2, kind: input, shape index: {}]
  %s3 = inlined_call_operand.vmem [shape: f32[1,128], index: 3, kind: input, shape index: {}]
  %s4 = inlined_call_operand.hbm [shape: f32[16,128], index: 4, kind: output, shape index: {}]
  %s5 = sld [smem:[#allocation0]]
  $region38: #{tpu_custom_call.1} parent=0
    _
  %s7 = ssub.s32 1, %s5
  %s8 = scalar_select 0, %s7, %s5
  $region1: #{tpu_custom_call.1} parent=0
    #allocation2 [shape = 'u8[8192]{0}', space=vmem, size = 0x2000, scoped, tag = 'input window, operand 0, single buffered']
    #allocation3 [shape = 's32[1]{0}', space=sflag, size = 0x4, scoped, tag = 'scoped memory for tpu_custom_call.1']
    #allocation4 [shape = 's32[1]{0}', space=sflag, size = 0x4, scoped, tag = 'scoped memory for tpu_custom_call.1']
    #allocation5 [shape = 'u8[131072]{0}', space=vmem, size = 0x20000, scoped, tag = 'input window, operand 1, single buffered']
    #allocation6 [shape = 's32[1]{0}', space=sflag, size = 0x4, scoped, tag = 'scoped memory for tpu_custom_call.1']
    #allocation7 [shape = 'u8[32768]{0}', space=vmem, size = 0x8000, scoped, tag = 'input window, operand 2, single buffered']
    #allocation8 [shape = 'u8[8192]{0}', space=vmem, size = 0x2000, scoped, tag = 'output window, operand 0, single buffered']
    %9 = vsyncpa [#allocation3], 0
    %10 = vsyncpa [#allocation6], 0
    %11 = vsyncpa [#allocation4], 0
    // Predicated region
    $region2: #{tpu_custom_call.1} parent=1 // pred_check
      _
    $region3: #{tpu_custom_call.1} parent=1 // pred_check_branch
      %13 = sbr.rel (0) target = $region5
    $region4: #{tpu_custom_call.1} parent=1 // pred_region
      %s15 = ssub.s32 256, 256
      %16 = vsyncadd [#allocation3], %s15
      %s17 = sshll.u32 [#allocation2], 4
      %s18 = int_to_ptr.vmem [resolvable:$true] %s17
      %23 = dma.hbm_to_vmem [thread:$0]  %s0, 256, %s18, [#allocation3], 128, 128, 8
    $region5: #{tpu_custom_call.1} parent=1 // pred_fallthru
      _
    // Predicated region
    $region6: #{tpu_custom_call.1} parent=1 // pred_check
      _
    $region7: #{tpu_custom_call.1} parent=1 // pred_check_branch
      %25 = sbr.rel (0) target = $region9
    $region8: #{tpu_custom_call.1} parent=1 // pred_region
      %s27 = ssub.s32 4096, 4096
      %28 = vsyncadd [#allocation6], %s27
      %s29 = sshll.u32 [#allocation5], 4
      %s30 = int_to_ptr.vmem [resolvable:$true] %s29
      %35 = dma.hbm_to_vmem [thread:$0]  %s1, 4096, %s30, [#allocation6], 256, 256, 16
    $region9: #{tpu_custom_call.1} parent=1 // pred_fallthru
      _
    // Predicated region
    $region10: #{tpu_custom_call.1} parent=1 // pred_check
      _
    $region11: #{tpu_custom_call.1} parent=1 // pred_check_branch
      %37 = sbr.rel (0) target = $region13
    $region12: #{tpu_custom_call.1} parent=1 // pred_region
      %s39 = ssub.s32 1024, 1024
      %40 = vsyncadd [#allocation6], %s39
      %s41 = sshll.u32 [#allocation7], 4
      %s42 = int_to_ptr.vmem [resolvable:$true] %s41
      %47 = dma.hbm_to_vmem [thread:$0]  %s2, 1024, %s42, [#allocation6], 128, 128, 8
    $region13: #{tpu_custom_call.1} parent=1 // pred_fallthru
      _
    // Predicated region
    $region14: #{tpu_custom_call.1} parent=1 // pred_check
      _
    $region15: #{tpu_custom_call.1} parent=1 // pred_check_branch
      %49 = sbr.rel (0) target = $region17
    $region16: #{tpu_custom_call.1} parent=1 // pred_region
      _
    $region17: #{tpu_custom_call.1} parent=1 // pred_fallthru
      _
    // Predicated region
    $region18: #{tpu_custom_call.1} parent=1 // pred_check
      _
    $region19: #{tpu_custom_call.1} parent=1 // pred_check_branch
      %51 = sbr.rel (0) target = $region21
    $region20: #{tpu_custom_call.1} parent=1 // pred_region
      %52 = dma.done [#allocation3], 256
    $region21: #{tpu_custom_call.1} parent=1 // pred_fallthru
      _
    // Predicated region
    $region22: #{tpu_custom_call.1} parent=1 // pred_check
      _
    $region23: #{tpu_custom_call.1} parent=1 // pred_check_branch
      %54 = sbr.rel (0) target = $region25
    $region24: #{tpu_custom_call.1} parent=1 // pred_region
      %55 = dma.done [#allocation6], 4096
    $region25: #{tpu_custom_call.1} parent=1 // pred_fallthru
      _
    // Predicated region
    $region26: #{tpu_custom_call.1} parent=1 // pred_check
      _
    $region27: #{tpu_custom_call.1} parent=1 // pred_check_branch
      %57 = sbr.rel (0) target = $region29
    $region28: #{tpu_custom_call.1} parent=1 // pred_region
      %58 = dma.done [#allocation6], 1024
    $region29: #{tpu_custom_call.1} parent=1 // pred_fallthru
      _
    %v59 = vld [vmem:[#allocation2] sm:$0xff]
    %v60 = vld [vmem:[#allocation2 + $0x8] sm:$0xff]
    %v61 = vld [vmem:[#allocation5] sm:$0xff]
    %v62 = vld [vmem:[#allocation5 + $0x8] sm:$0xff]
    %v63 = vld [vmem:[#allocation5 + $0x10] sm:$0xff]
    %v64 = vld [vmem:[#allocation5 + $0x18] sm:$0xff]
    %v65 = vld [vmem:[#allocation5 + $0x20] sm:$0xff]
    %v66 = vld [vmem:[#allocation5 + $0x28] sm:$0xff]
    %v67 = vld [vmem:[#allocation5 + $0x30] sm:$0xff]
    %v68 = vld [vmem:[#allocation5 + $0x38] sm:$0xff]
    %v69 = vld [vmem:[#allocation5 + $0x40] sm:$0xff]
    %v70 = vld [vmem:[#allocation5 + $0x48] sm:$0xff]
    %v71 = vld [vmem:[#allocation5 + $0x50] sm:$0xff]
    %v72 = vld [vmem:[#allocation5 + $0x58] sm:$0xff]
    %v73 = vld [vmem:[#allocation5 + $0x60] sm:$0xff]
    %v74 = vld [vmem:[#allocation5 + $0x68] sm:$0xff]
    %v75 = vld [vmem:[#allocation5 + $0x70] sm:$0xff]
    %v76 = vld [vmem:[#allocation5 + $0x78] sm:$0xff]
    %v77 = vld [vmem:[#allocation5 + $0x80] sm:$0xff]
    %v78 = vld [vmem:[#allocation5 + $0x88] sm:$0xff]
    %v79 = vld [vmem:[#allocation5 + $0x90] sm:$0xff]
    %v80 = vld [vmem:[#allocation5 + $0x98] sm:$0xff]
    %v81 = vld [vmem:[#allocation5 + $0xa0] sm:$0xff]
    %v82 = vld [vmem:[#allocation5 + $0xa8] sm:$0xff]
    %v83 = vld [vmem:[#allocation5 + $0xb0] sm:$0xff]
    %v84 = vld [vmem:[#allocation5 + $0xb8] sm:$0xff]
    %v85 = vld [vmem:[#allocation5 + $0xc0] sm:$0xff]
    %v86 = vld [vmem:[#allocation5 + $0xc8] sm:$0xff]
    %v87 = vld [vmem:[#allocation5 + $0xd0] sm:$0xff]
    %v88 = vld [vmem:[#allocation5 + $0xd8] sm:$0xff]
    %v89 = vld [vmem:[#allocation5 + $0xe0] sm:$0xff]
    %v90 = vld [vmem:[#allocation5 + $0xe8] sm:$0xff]
    %v91 = vld [vmem:[#allocation5 + $0xf0] sm:$0xff]
    %v92 = vld [vmem:[#allocation5 + $0xf8] sm:$0xff]
    %93 = vmatprep.subr.mxu0 %v62
    %94 = vmatpush1.msra.mxu0 %v61
    %95 = vmatprep.subr.mxu0 %v64
    %96 = vmatpush1.msra.mxu0 %v63
    %97 = vmatprep.subr.mxu0 %v66
    %98 = vmatpush1.msra.mxu0 %v65
    %99 = vmatprep.subr.mxu0 %v68
    %100 = vmatpush1.msra.mxu0 %v67
    %101 = vmatprep.subr.mxu0 %v70
    %102 = vmatpush1.msra.mxu0 %v69
    %103 = vmatprep.subr.mxu0 %v72
    %104 = vmatpush1.msra.mxu0 %v71
    %105 = vmatprep.subr.mxu0 %v74
    %106 = vmatpush1.msra.mxu0 %v73
    %107 = vmatprep.subr.mxu0 %v76
    %108 = vmatpush1.msra.mxu0 %v75
    %109 = vmatprep.subr.mxu0 %v78
    %110 = vmatpush1.msra.mxu0 %v77
    %111 = vmatprep.subr.mxu0 %v80
    %112 = vmatpush1.msra.mxu0 %v79
    %113 = vmatprep.subr.mxu0 %v82
    %114 = vmatpush1.msra.mxu0 %v81
    %115 = vmatprep.subr.mxu0 %v84
    %116 = vmatpush1.msra.mxu0 %v83
    %117 = vmatprep.subr.mxu0 %v86
    %118 = vmatpush1.msra.mxu0 %v85
    %119 = vmatprep.subr.mxu0 %v88
    %120 = vmatpush1.msra.mxu0 %v87
    %121 = vmatprep.subr.mxu0 %v90
    %122 = vmatpush1.msra.mxu0 %v89
    %123 = vmatprep.subr.mxu0 %v92
    %124 = vmatpush1.msra.mxu0 %v91
    %125 = vmatprep.subr.mxu0 0.0
    %126 = vmatpush1.msra.mxu0 0.0
    %127 = vmatprep.subr.mxu0 0.0
    %128 = vmatpush1.msra.mxu0 0.0
    %129 = vmatprep.subr.mxu0 0.0
    %130 = vmatpush1.msra.mxu0 0.0
    %131 = vmatprep.subr.mxu0 0.0
    %132 = vmatpush1.msra.mxu0 0.0
    %133 = vmatprep.subr.mxu0 0.0
    %134 = vmatpush1.msra.mxu0 0.0
    %135 = vmatprep.subr.mxu0 0.0
    %136 = vmatpush1.msra.mxu0 0.0
    %137 = vmatprep.subr.mxu0 0.0
    %138 = vmatpush1.msra.mxu0 0.0
    %139 = vmatprep.subr.mxu0 0.0
    %140 = vmatpush1.msra.mxu0 0.0
    %141 = vmatprep.subr.mxu0 0.0
    %142 = vmatpush1.msra.mxu0 0.0
    %143 = vmatprep.subr.mxu0 0.0
    %144 = vmatpush1.msra.mxu0 0.0
    %145 = vmatprep.subr.mxu0 0.0
    %146 = vmatpush1.msra.mxu0 0.0
    %147 = vmatprep.subr.mxu0 0.0
    %148 = vmatpush1.msra.mxu0 0.0
    %149 = vmatprep.subr.mxu0 0.0
    %150 = vmatpush1.msra.mxu0 0.0
    %151 = vmatprep.subr.mxu0 0.0
    %152 = vmatpush1.msra.mxu0 0.0
    %153 = vmatprep.subr.mxu0 0.0
    %154 = vmatpush1.msra.mxu0 0.0
    %155 = vmatprep.subr.mxu0 0.0
    %156 = vmatpush1.msra.mxu0 0.0
    %157 = vmatprep.mubr.f32.mxu0 0.0
    %158 = vmatmul.mubr.f32.gmra.mrb[0].mxu0 %v59
    %v159 = vpop.f32.mrb[0].mxu0
    %v160 = vadd.f32 0.0, %v159
    %v161 = vpop.f32.mrb[0].mxu0
    %v162 = vadd.f32 0.0, %v161
    %163 = vmatprep.mubr.f32.mxu0 0.0
    %164 = vmatmul.mubr.f32.gmra.mrb[0].mxu0 %v60
    %v165 = vpop.f32.mrb[0].mxu0
    %v166 = vadd.f32 0.0, %v165
    %v167 = vpop.f32.mrb[0].mxu0
    %v168 = vadd.f32 0.0, %v167
    %169 = vdwg.mxu0
    %171 = vrot.lane.b32.xlu0 %v160, 64
    %v172 = vpop.permute.xlu0 %171
    %vm173 = vcmask 130048
    %v174 = vsel %vm173, %v160, 0
    %v176 = vsel %vm173, %v172, 0
    %178 = vmatprep.subr.mxu0 0.0
    %179 = vmatpush1.xpose.msra.mxu0 %v176
    %180 = vmatprep.subr.mxu0 0.0
    %181 = vmatpush1.xpose.msra.mxu0 0.0
    %182 = vmatprep.subr.mxu0 0.0
    %183 = vmatpush1.xpose.msra.mxu0 0.0
    %184 = vmatprep.subr.mxu0 0.0
    %185 = vmatpush1.xpose.msra.mxu0 0.0
    %186 = vmatprep.subr.mxu0 0.0
    %187 = vmatpush1.xpose.msra.mxu0 0.0
    %188 = vmatprep.subr.mxu0 0.0
    %189 = vmatpush1.xpose.msra.mxu0 0.0
    %190 = vmatprep.subr.mxu0 0.0
    %191 = vmatpush1.xpose.msra.mxu0 0.0
    %192 = vmatprep.subr.mxu0 0.0
    %193 = vmatpush1.xpose.msra.mxu0 0.0
    %194 = vmatprep.subr.mxu0 0.0
    %195 = vmatpush1.xpose.msra.mxu0 0.0
    %196 = vmatprep.subr.mxu0 0.0
    %197 = vmatpush1.xpose.msra.mxu0 0.0
    %198 = vmatprep.subr.mxu0 0.0
    %199 = vmatpush1.xpose.msra.mxu0 0.0
    %200 = vmatprep.subr.mxu0 0.0
    %201 = vmatpush1.xpose.msra.mxu0 0.0
    %202 = vmatprep.subr.mxu0 0.0
    %203 = vmatpush1.xpose.msra.mxu0 0.0
    %204 = vmatprep.subr.mxu0 0.0
    %205 = vmatpush1.xpose.msra.mxu0 0.0
    %206 = vmatprep.subr.mxu0 0.0
    %207 = vmatpush1.xpose.msra.mxu0 0.0
    %208 = vmatprep.subr.mxu0 0.0
    %209 = vmatpush1.xpose.msra.mxu0 0.0
    %210 = vmatprep.subr.mxu0 0.0
    %211 = vmatpush1.xpose.msra.mxu0 0.0
    %212 = vmatprep.subr.mxu0 0.0
    %213 = vmatpush1.xpose.msra.mxu0 0.0
    %214 = vmatprep.subr.mxu0 0.0
    %215 = vmatpush1.xpose.msra.mxu0 0.0
    %216 = vmatprep.subr.mxu0 0.0
    %217 = vmatpush1.xpose.msra.mxu0 0.0
    %218 = vmatprep.subr.mxu0 0.0
    %219 = vmatpush1.xpose.msra.mxu0 0.0
    %220 = vmatprep.subr.mxu0 0.0
    %221 = vmatpush1.xpose.msra.mxu0 0.0
    %222 = vmatprep.subr.mxu0 0.0
    %223 = vmatpush1.xpose.msra.mxu0 0.0
    %224 = vmatprep.subr.mxu0 0.0
    %225 = vmatpush1.xpose.msra.mxu0 0.0
    %226 = vmatprep.subr.mxu0 0.0
    %227 = vmatpush1.xpose.msra.mxu0 0.0
    %228 = vmatprep.subr.mxu0 0.0
    %229 = vmatpush1.xpose.msra.mxu0 0.0
    %230 = vmatprep.subr.mxu0 0.0
    %231 = vmatpush1.xpose.msra.mxu0 0.0
    %232 = vmatprep.subr.mxu0 0.0
    %233 = vmatpush1.xpose.msra.mxu0 0.0
    %234 = vmatprep.subr.mxu0 0.0
    %235 = vmatpush1.xpose.msra.mxu0 0.0
    %236 = vmatprep.subr.mxu0 0.0
    %237 = vmatpush1.xpose.msra.mxu0 0.0
    %238 = vmatprep.subr.mxu0 0.0
    %239 = vmatpush1.xpose.msra.mxu0 0.0
    %240 = vmatprep.subr.mxu0 0.0
    %241 = vmatpush1.xpose.msra.mxu0 0.0
    %242 = vmatprep.mubr.f32.mxu0 0.0
    %243 = vmatmul.mubr.f32.gmra.mrb[0].mxu0 %v174
    %v244 = vpop.f32.mrb[0].mxu0
    %v245 = vadd.f32 0.0, %v244
    %v246 = vpop.f32.mrb[0].mxu0
    %247 = vdwg.mxu0
    %249 = vrot.lane.b32.xlu0 %v166, 64
    %v250 = vpop.permute.xlu0 %249
    %v251 = vsel %vm173, %v166, 0
    %v253 = vsel %vm173, %v250, 0
    %255 = vmatprep.subr.mxu0 0.0
    %256 = vmatpush1.xpose.msra.mxu0 %v253
    %257 = vmatprep.subr.mxu0 0.0
    %258 = vmatpush1.xpose.msra.mxu0 0.0
    %259 = vmatprep.subr.mxu0 0.0
    %260 = vmatpush1.xpose.msra.mxu0 0.0
    %261 = vmatprep.subr.mxu0 0.0
    %262 = vmatpush1.xpose.msra.mxu0 0.0
    %263 = vmatprep.subr.mxu0 0.0
    %264 = vmatpush1.xpose.msra.mxu0 0.0
    %265 = vmatprep.subr.mxu0 0.0
    %266 = vmatpush1.xpose.msra.mxu0 0.0
    %267 = vmatprep.subr.mxu0 0.0
    %268 = vmatpush1.xpose.msra.mxu0 0.0
    %269 = vmatprep.subr.mxu0 0.0
    %270 = vmatpush1.xpose.msra.mxu0 0.0
    %271 = vmatprep.subr.mxu0 0.0
    %272 = vmatpush1.xpose.msra.mxu0 0.0
    %273 = vmatprep.subr.mxu0 0.0
    %274 = vmatpush1.xpose.msra.mxu0 0.0
    %275 = vmatprep.subr.mxu0 0.0
    %276 = vmatpush1.xpose.msra.mxu0 0.0
    %277 = vmatprep.subr.mxu0 0.0
    %278 = vmatpush1.xpose.msra.mxu0 0.0
    %279 = vmatprep.subr.mxu0 0.0
    %280 = vmatpush1.xpose.msra.mxu0 0.0
    %281 = vmatprep.subr.mxu0 0.0
    %282 = vmatpush1.xpose.msra.mxu0 0.0
    %283 = vmatprep.subr.mxu0 0.0
    %284 = vmatpush1.xpose.msra.mxu0 0.0
    %285 = vmatprep.subr.mxu0 0.0
    %286 = vmatpush1.xpose.msra.mxu0 0.0
    %287 = vmatprep.subr.mxu0 0.0
    %288 = vmatpush1.xpose.msra.mxu0 0.0
    %289 = vmatprep.subr.mxu0 0.0
    %290 = vmatpush1.xpose.msra.mxu0 0.0
    %291 = vmatprep.subr.mxu0 0.0
    %292 = vmatpush1.xpose.msra.mxu0 0.0
    %293 = vmatprep.subr.mxu0 0.0
    %294 = vmatpush1.xpose.msra.mxu0 0.0
    %295 = vmatprep.subr.mxu0 0.0
    %296 = vmatpush1.xpose.msra.mxu0 0.0
    %297 = vmatprep.subr.mxu0 0.0
    %298 = vmatpush1.xpose.msra.mxu0 0.0
    %299 = vmatprep.subr.mxu0 0.0
    %300 = vmatpush1.xpose.msra.mxu0 0.0
    %301 = vmatprep.subr.mxu0 0.0
    %302 = vmatpush1.xpose.msra.mxu0 0.0
    %303 = vmatprep.subr.mxu0 0.0
    %304 = vmatpush1.xpose.msra.mxu0 0.0
    %305 = vmatprep.subr.mxu0 0.0
    %306 = vmatpush1.xpose.msra.mxu0 0.0
    %307 = vmatprep.subr.mxu0 0.0
    %308 = vmatpush1.xpose.msra.mxu0 0.0
    %309 = vmatprep.subr.mxu0 0.0
    %310 = vmatpush1.xpose.msra.mxu0 0.0
    %311 = vmatprep.subr.mxu0 0.0
    %312 = vmatpush1.xpose.msra.mxu0 0.0
    %313 = vmatprep.subr.mxu0 0.0
    %314 = vmatpush1.xpose.msra.mxu0 0.0
    %315 = vmatprep.subr.mxu0 0.0
    %316 = vmatpush1.xpose.msra.mxu0 0.0
    %317 = vmatprep.subr.mxu0 0.0
    %318 = vmatpush1.xpose.msra.mxu0 0.0
    %319 = vmatprep.mubr.f32.mxu0 0.0
    %320 = vmatmul.mubr.f32.gmra.mrb[0].mxu0 %v251
    %v321 = vpop.f32.mrb[0].mxu0
    %v322 = vadd.f32 0.0, %v321
    %v323 = vpop.f32.mrb[0].mxu0
    %324 = vdwg.mxu0
    %vm325 = vcmask 64512
    %v326 = vsel %vm325, %v245, -inf
    %327 = vmax.xlane.f32.xlu0 %v326
    %v328 = vpop.xlane.xlu0 %327
    %v329 = vsel %vm325, %v322, -inf
    %330 = vmax.xlane.f32.xlu0 %v329
    %v331 = vpop.xlane.xlu0 %330
    %v332 = vsub.f32 %v245, %v328
    %v333 = vsub.f32 %v322, %v331
    %v334 = vmul.f32 %v332, 1.442695
    %v335 = vpow.pop %v334
    %v336 = vmul.f32 %v333, 1.442695
    %v337 = vpow.pop %v336
    %v338 = vsel %vm325, %v335, 0.0
    %339 = vadd.xlane.f32.xlu0 %v338
    %v340 = vpop.xlane.xlu0 %339
    %v341 = vsel %vm325, %v337, 0.0
    %342 = vadd.xlane.f32.xlu0 %v341
    %v343 = vpop.xlane.xlu0 %342
    %v344 = vrcp.pop %v340
    %v345 = vmul.f32 %v335, %v344
    %v346 = vrcp.pop %v343
    %v347 = vmul.f32 %v337, %v346
    %v349 = vsel %vm325, %v345, 0
    %351 = vmatprep.subr.mxu0 0.0
    %352 = vmatpush1.msra.mxu0 %v162
    %353 = vmatprep.subr.mxu0 0.0
    %354 = vmatpush1.msra.mxu0 0.0
    %355 = vmatprep.subr.mxu0 0.0
    %356 = vmatpush1.msra.mxu0 0.0
    %357 = vmatprep.subr.mxu0 0.0
    %358 = vmatpush1.msra.mxu0 0.0
    %359 = vmatprep.subr.mxu0 0.0
    %360 = vmatpush1.msra.mxu0 0.0
    %361 = vmatprep.subr.mxu0 0.0
    %362 = vmatpush1.msra.mxu0 0.0
    %363 = vmatprep.subr.mxu0 0.0
    %364 = vmatpush1.msra.mxu0 0.0
    %365 = vmatprep.subr.mxu0 0.0
    %366 = vmatpush1.msra.mxu0 0.0
    %367 = vmatprep.subr.mxu0 0.0
    %368 = vmatpush1.msra.mxu0 0.0
    %369 = vmatprep.subr.mxu0 0.0
    %370 = vmatpush1.msra.mxu0 0.0
    %371 = vmatprep.subr.mxu0 0.0
    %372 = vmatpush1.msra.mxu0 0.0
    %373 = vmatprep.subr.mxu0 0.0
    %374 = vmatpush1.msra.mxu0 0.0
    %375 = vmatprep.subr.mxu0 0.0
    %376 = vmatpush1.msra.mxu0 0.0
    %377 = vmatprep.subr.mxu0 0.0
    %378 = vmatpush1.msra.mxu0 0.0
    %379 = vmatprep.subr.mxu0 0.0
    %380 = vmatpush1.msra.mxu0 0.0
    %381 = vmatprep.subr.mxu0 0.0
    %382 = vmatpush1.msra.mxu0 0.0
    %383 = vmatprep.subr.mxu0 0.0
    %384 = vmatpush1.msra.mxu0 0.0
    %385 = vmatprep.subr.mxu0 0.0
    %386 = vmatpush1.msra.mxu0 0.0
    %387 = vmatprep.subr.mxu0 0.0
    %388 = vmatpush1.msra.mxu0 0.0
    %389 = vmatprep.subr.mxu0 0.0
    %390 = vmatpush1.msra.mxu0 0.0
    %391 = vmatprep.subr.mxu0 0.0
    %392 = vmatpush1.msra.mxu0 0.0
    %393 = vmatprep.subr.mxu0 0.0
    %394 = vmatpush1.msra.mxu0 0.0
    %395 = vmatprep.subr.mxu0 0.0
    %396 = vmatpush1.msra.mxu0 0.0
    %397 = vmatprep.subr.mxu0 0.0
    %398 = vmatpush1.msra.mxu0 0.0
    %399 = vmatprep.subr.mxu0 0.0
    %400 = vmatpush1.msra.mxu0 0.0
    %401 = vmatprep.subr.mxu0 0.0
    %402 = vmatpush1.msra.mxu0 0.0
    %403 = vmatprep.subr.mxu0 0.0
    %404 = vmatpush1.msra.mxu0 0.0
    %405 = vmatprep.subr.mxu0 0.0
    %406 = vmatpush1.msra.mxu0 0.0
    %407 = vmatprep.subr.mxu0 0.0
    %408 = vmatpush1.msra.mxu0 0.0
    %409 = vmatprep.subr.mxu0 0.0
    %410 = vmatpush1.msra.mxu0 0.0
    %411 = vmatprep.subr.mxu0 0.0
    %412 = vmatpush1.msra.mxu0 0.0
    %413 = vmatprep.subr.mxu0 0.0
    %414 = vmatpush1.msra.mxu0 0.0
    %415 = vmatprep.mubr.f32.mxu0 0.0
    %416 = vmatmul.mubr.f32.gmra.mrb[0].mxu0 %v349
    %v417 = vpop.f32.mrb[0].mxu0
    %v418 = vadd.f32 0.0, %v417
    %v419 = vpop.f32.mrb[0].mxu0
    %420 = vdwg.mxu0
    %v422 = vsel %vm325, %v347, 0
    %424 = vmatprep.subr.mxu0 0.0
    %425 = vmatpush1.msra.mxu0 %v168
    %426 = vmatprep.subr.mxu0 0.0
    %427 = vmatpush1.msra.mxu0 0.0
    %428 = vmatprep.subr.mxu0 0.0
    %429 = vmatpush1.msra.mxu0 0.0
    %430 = vmatprep.subr.mxu0 0.0
    %431 = vmatpush1.msra.mxu0 0.0
    %432 = vmatprep.subr.mxu0 0.0
    %433 = vmatpush1.msra.mxu0 0.0
    %434 = vmatprep.subr.mxu0 0.0
    %435 = vmatpush1.msra.mxu0 0.0
    %436 = vmatprep.subr.mxu0 0.0
    %437 = vmatpush1.msra.mxu0 0.0
    %438 = vmatprep.subr.mxu0 0.0
    %439 = vmatpush1.msra.mxu0 0.0
    %440 = vmatprep.subr.mxu0 0.0
    %441 = vmatpush1.msra.mxu0 0.0
    %442 = vmatprep.subr.mxu0 0.0
    %443 = vmatpush1.msra.mxu0 0.0
    %444 = vmatprep.subr.mxu0 0.0
    %445 = vmatpush1.msra.mxu0 0.0
    %446 = vmatprep.subr.mxu0 0.0
    %447 = vmatpush1.msra.mxu0 0.0
    %448 = vmatprep.subr.mxu0 0.0
    %449 = vmatpush1.msra.mxu0 0.0
    %450 = vmatprep.subr.mxu0 0.0
    %451 = vmatpush1.msra.mxu0 0.0
    %452 = vmatprep.subr.mxu0 0.0
    %453 = vmatpush1.msra.mxu0 0.0
    %454 = vmatprep.subr.mxu0 0.0
    %455 = vmatpush1.msra.mxu0 0.0
    %456 = vmatprep.subr.mxu0 0.0
    %457 = vmatpush1.msra.mxu0 0.0
    %458 = vmatprep.subr.mxu0 0.0
    %459 = vmatpush1.msra.mxu0 0.0
    %460 = vmatprep.subr.mxu0 0.0
    %461 = vmatpush1.msra.mxu0 0.0
    %462 = vmatprep.subr.mxu0 0.0
    %463 = vmatpush1.msra.mxu0 0.0
    %464 = vmatprep.subr.mxu0 0.0
    %465 = vmatpush1.msra.mxu0 0.0
    %466 = vmatprep.subr.mxu0 0.0
    %467 = vmatpush1.msra.mxu0 0.0
    %468 = vmatprep.subr.mxu0 0.0
    %469 = vmatpush1.msra.mxu0 0.0
    %470 = vmatprep.subr.mxu0 0.0
    %471 = vmatpush1.msra.mxu0 0.0
    %472 = vmatprep.subr.mxu0 0.0
    %473 = vmatpush1.msra.mxu0 0.0
    %474 = vmatprep.subr.mxu0 0.0
    %475 = vmatpush1.msra.mxu0 0.0
    %476 = vmatprep.subr.mxu0 0.0
    %477 = vmatpush1.msra.mxu0 0.0
    %478 = vmatprep.subr.mxu0 0.0
    %479 = vmatpush1.msra.mxu0 0.0
    %480 = vmatprep.subr.mxu0 0.0
    %481 = vmatpush1.msra.mxu0 0.0
    %482 = vmatprep.subr.mxu0 0.0
    %483 = vmatpush1.msra.mxu0 0.0
    %484 = vmatprep.subr.mxu0 0.0
    %485 = vmatpush1.msra.mxu0 0.0
    %486 = vmatprep.subr.mxu0 0.0
    %487 = vmatpush1.msra.mxu0 0.0
    %488 = vmatprep.mubr.f32.mxu0 0.0
    %489 = vmatmul.mubr.f32.gmra.mrb[0].mxu0 %v422
    %v490 = vpop.f32.mrb[0].mxu0
    %v491 = vadd.f32 0.0, %v490
    %v492 = vpop.f32.mrb[0].mxu0
    %493 = vdwg.mxu0
    %494 = vrot.lane.b32.xlu0 %v160, 112
    %v495 = vpop.permute.xlu0 %494
    %496 = vrot.lane.b32.xlu0 %v160, 48
    %v497 = vpop.permute.xlu0 %496
    %v498 = vsel %vm173, %v495, 0
    %v500 = vsel %vm173, %v497, 0
    %502 = vmatprep.subr.mxu0 0.0
    %503 = vmatpush1.xpose.msra.mxu0 %v500
    %504 = vmatprep.subr.mxu0 0.0
    %505 = vmatpush1.xpose.msra.mxu0 0.0
    %506 = vmatprep.subr.mxu0 0.0
    %507 = vmatpush1.xpose.msra.mxu0 0.0
    %508 = vmatprep.subr.mxu0 0.0
    %509 = vmatpush1.xpose.msra.mxu0 0.0
    %510 = vmatprep.subr.mxu0 0.0
    %511 = vmatpush1.xpose.msra.mxu0 0.0
    %512 = vmatprep.subr.mxu0 0.0
    %513 = vmatpush1.xpose.msra.mxu0 0.0
    %514 = vmatprep.subr.mxu0 0.0
    %515 = vmatpush1.xpose.msra.mxu0 0.0
    %516 = vmatprep.subr.mxu0 0.0
    %517 = vmatpush1.xpose.msra.mxu0 0.0
    %518 = vmatprep.subr.mxu0 0.0
    %519 = vmatpush1.xpose.msra.mxu0 0.0
    %520 = vmatprep.subr.mxu0 0.0
    %521 = vmatpush1.xpose.msra.mxu0 0.0
    %522 = vmatprep.subr.mxu0 0.0
    %523 = vmatpush1.xpose.msra.mxu0 0.0
    %524 = vmatprep.subr.mxu0 0.0
    %525 = vmatpush1.xpose.msra.mxu0 0.0
    %526 = vmatprep.subr.mxu0 0.0
    %527 = vmatpush1.xpose.msra.mxu0 0.0
    %528 = vmatprep.subr.mxu0 0.0
    %529 = vmatpush1.xpose.msra.mxu0 0.0
    %530 = vmatprep.subr.mxu0 0.0
    %531 = vmatpush1.xpose.msra.mxu0 0.0
    %532 = vmatprep.subr.mxu0 0.0
    %533 = vmatpush1.xpose.msra.mxu0 0.0
    %534 = vmatprep.subr.mxu0 0.0
    %535 = vmatpush1.xpose.msra.mxu0 0.0
    %536 = vmatprep.subr.mxu0 0.0
    %537 = vmatpush1.xpose.msra.mxu0 0.0
    %538 = vmatprep.subr.mxu0 0.0
    %539 = vmatpush1.xpose.msra.mxu0 0.0
    %540 = vmatprep.subr.mxu0 0.0
    %541 = vmatpush1.xpose.msra.mxu0 0.0
    %542 = vmatprep.subr.mxu0 0.0
    %543 = vmatpush1.xpose.msra.mxu0 0.0
    %544 = vmatprep.subr.mxu0 0.0
    %545 = vmatpush1.xpose.msra.mxu0 0.0
    %546 = vmatprep.subr.mxu0 0.0
    %547 = vmatpush1.xpose.msra.mxu0 0.0
    %548 = vmatprep.subr.mxu0 0.0
    %549 = vmatpush1.xpose.msra.mxu0 0.0
    %550 = vmatprep.subr.mxu0 0.0
    %551 = vmatpush1.xpose.msra.mxu0 0.0
    %552 = vmatprep.subr.mxu0 0.0
    %553 = vmatpush1.xpose.msra.mxu0 0.0
    %554 = vmatprep.subr.mxu0 0.0
    %555 = vmatpush1.xpose.msra.mxu0 0.0
    %556 = vmatprep.subr.mxu0 0.0
    %557 = vmatpush1.xpose.msra.mxu0 0.0
    %558 = vmatprep.subr.mxu0 0.0
    %559 = vmatpush1.xpose.msra.mxu0 0.0
    %560 = vmatprep.subr.mxu0 0.0
    %561 = vmatpush1.xpose.msra.mxu0 0.0
    %562 = vmatprep.subr.mxu0 0.0
    %563 = vmatpush1.xpose.msra.mxu0 0.0
    %564 = vmatprep.subr.mxu0 0.0
    %565 = vmatpush1.xpose.msra.mxu0 0.0
    %566 = vmatprep.mubr.f32.mxu0 0.0
    %567 = vmatmul.mubr.f32.gmra.mrb[0].mxu0 %v498
    %v568 = vpop.f32.mrb[0].mxu0
    %v569 = vadd.f32 0.0, %v568
    %v570 = vpop.f32.mrb[0].mxu0
    %571 = vdwg.mxu0
    %572 = vrot.lane.b32.xlu0 %v166, 112
    %v573 = vpop.permute.xlu0 %572
    %574 = vrot.lane.b32.xlu0 %v166, 48
    %v575 = vpop.permute.xlu0 %574
    %v576 = vsel %vm173, %v573, 0
    %v578 = vsel %vm173, %v575, 0
    %580 = vmatprep.subr.mxu0 0.0
    %581 = vmatpush1.xpose.msra.mxu0 %v578
    %582 = vmatprep.subr.mxu0 0.0
    %583 = vmatpush1.xpose.msra.mxu0 0.0
    %584 = vmatprep.subr.mxu0 0.0
    %585 = vmatpush1.xpose.msra.mxu0 0.0
    %586 = vmatprep.subr.mxu0 0.0
    %587 = vmatpush1.xpose.msra.mxu0 0.0
    %588 = vmatprep.subr.mxu0 0.0
    %589 = vmatpush1.xpose.msra.mxu0 0.0
    %590 = vmatprep.subr.mxu0 0.0
    %591 = vmatpush1.xpose.msra.mxu0 0.0
    %592 = vmatprep.subr.mxu0 0.0
    %593 = vmatpush1.xpose.msra.mxu0 0.0
    %594 = vmatprep.subr.mxu0 0.0
    %595 = vmatpush1.xpose.msra.mxu0 0.0
    %596 = vmatprep.subr.mxu0 0.0
    %597 = vmatpush1.xpose.msra.mxu0 0.0
    %598 = vmatprep.subr.mxu0 0.0
    %599 = vmatpush1.xpose.msra.mxu0 0.0
    %600 = vmatprep.subr.mxu0 0.0
    %601 = vmatpush1.xpose.msra.mxu0 0.0
    %602 = vmatprep.subr.mxu0 0.0
    %603 = vmatpush1.xpose.msra.mxu0 0.0
    %604 = vmatprep.subr.mxu0 0.0
    %605 = vmatpush1.xpose.msra.mxu0 0.0
    %606 = vmatprep.subr.mxu0 0.0
    %607 = vmatpush1.xpose.msra.mxu0 0.0
    %608 = vmatprep.subr.mxu0 0.0
    %609 = vmatpush1.xpose.msra.mxu0 0.0
    %610 = vmatprep.subr.mxu0 0.0
    %611 = vmatpush1.xpose.msra.mxu0 0.0
    %612 = vmatprep.subr.mxu0 0.0
    %613 = vmatpush1.xpose.msra.mxu0 0.0
    %614 = vmatprep.subr.mxu0 0.0
    %615 = vmatpush1.xpose.msra.mxu0 0.0
    %616 = vmatprep.subr.mxu0 0.0
    %617 = vmatpush1.xpose.msra.mxu0 0.0
    %618 = vmatprep.subr.mxu0 0.0
    %619 = vmatpush1.xpose.msra.mxu0 0.0
    %620 = vmatprep.subr.mxu0 0.0
    %621 = vmatpush1.xpose.msra.mxu0 0.0
    %622 = vmatprep.subr.mxu0 0.0
    %623 = vmatpush1.xpose.msra.mxu0 0.0
    %624 = vmatprep.subr.mxu0 0.0
    %625 = vmatpush1.xpose.msra.mxu0 0.0
    %626 = vmatprep.subr.mxu0 0.0
    %627 = vmatpush1.xpose.msra.mxu0 0.0
    %628 = vmatprep.subr.mxu0 0.0
    %629 = vmatpush1.xpose.msra.mxu0 0.0
    %630 = vmatprep.subr.mxu0 0.0
    %631 = vmatpush1.xpose.msra.mxu0 0.0
    %632 = vmatprep.subr.mxu0 0.0
    %633 = vmatpush1.xpose.msra.mxu0 0.0
    %634 = vmatprep.subr.mxu0 0.0
    %635 = vmatpush1.xpose.msra.mxu0 0.0
    %636 = vmatprep.subr.mxu0 0.0
    %637 = vmatpush1.xpose.msra.mxu0 0.0
    %638 = vmatprep.subr.mxu0 0.0
    %639 = vmatpush1.xpose.msra.mxu0 0.0
    %640 = vmatprep.subr.mxu0 0.0
    %641 = vmatpush1.xpose.msra.mxu0 0.0
    %642 = vmatprep.subr.mxu0 0.0
    %643 = vmatpush1.xpose.msra.mxu0 0.0
    %644 = vmatprep.mubr.f32.mxu0 0.0
    %645 = vmatmul.mubr.f32.gmra.mrb[0].mxu0 %v576
    %v646 = vpop.f32.mrb[0].mxu0
    %v647 = vadd.f32 0.0, %v646
    %v648 = vpop.f32.mrb[0].mxu0
    %649 = vdwg.mxu0
    %v650 = vsel %vm325, %v569, -inf
    %651 = vmax.xlane.f32.xlu0 %v650
    %v652 = vpop.xlane.xlu0 %651
    %v653 = vsel %vm325, %v647, -inf
    %654 = vmax.xlane.f32.xlu0 %v653
    %v655 = vpop.xlane.xlu0 %654
    %v656 = vsub.f32 %v569, %v652
    %v657 = vsub.f32 %v647, %v655
    %v658 = vmul.f32 %v656, 1.442695
    %v659 = vpow.pop %v658
    %v660 = vmul.f32 %v657, 1.442695
    %v661 = vpow.pop %v660
    %v662 = vsel %vm325, %v659, 0.0
    %663 = vadd.xlane.f32.xlu0 %v662
    %v664 = vpop.xlane.xlu0 %663
    %v665 = vsel %vm325, %v661, 0.0
    %666 = vadd.xlane.f32.xlu0 %v665
    %v667 = vpop.xlane.xlu0 %666
    %v668 = vrcp.pop %v664
    %v669 = vmul.f32 %v659, %v668
    %v670 = vrcp.pop %v667
    %v671 = vmul.f32 %v661, %v670
    %673 = vrot.lane.b32.xlu0 %v162, 112
    %v674 = vpop.permute.xlu0 %673
    %v677 = vsel %vm325, %v669, 0
    %679 = vmatprep.subr.mxu0 0.0
    %680 = vmatpush1.msra.mxu0 %v674
    %681 = vmatprep.subr.mxu0 0.0
    %682 = vmatpush1.msra.mxu0 0.0
    %683 = vmatprep.subr.mxu0 0.0
    %684 = vmatpush1.msra.mxu0 0.0
    %685 = vmatprep.subr.mxu0 0.0
    %686 = vmatpush1.msra.mxu0 0.0
    %687 = vmatprep.subr.mxu0 0.0
    %688 = vmatpush1.msra.mxu0 0.0
    %689 = vmatprep.subr.mxu0 0.0
    %690 = vmatpush1.msra.mxu0 0.0
    %691 = vmatprep.subr.mxu0 0.0
    %692 = vmatpush1.msra.mxu0 0.0
    %693 = vmatprep.subr.mxu0 0.0
    %694 = vmatpush1.msra.mxu0 0.0
    %695 = vmatprep.subr.mxu0 0.0
    %696 = vmatpush1.msra.mxu0 0.0
    %697 = vmatprep.subr.mxu0 0.0
    %698 = vmatpush1.msra.mxu0 0.0
    %699 = vmatprep.subr.mxu0 0.0
    %700 = vmatpush1.msra.mxu0 0.0
    %701 = vmatprep.subr.mxu0 0.0
    %702 = vmatpush1.msra.mxu0 0.0
    %703 = vmatprep.subr.mxu0 0.0
    %704 = vmatpush1.msra.mxu0 0.0
    %705 = vmatprep.subr.mxu0 0.0
    %706 = vmatpush1.msra.mxu0 0.0
    %707 = vmatprep.subr.mxu0 0.0
    %708 = vmatpush1.msra.mxu0 0.0
    %709 = vmatprep.subr.mxu0 0.0
    %710 = vmatpush1.msra.mxu0 0.0
    %711 = vmatprep.subr.mxu0 0.0
    %712 = vmatpush1.msra.mxu0 0.0
    %713 = vmatprep.subr.mxu0 0.0
    %714 = vmatpush1.msra.mxu0 0.0
    %715 = vmatprep.subr.mxu0 0.0
    %716 = vmatpush1.msra.mxu0 0.0
    %717 = vmatprep.subr.mxu0 0.0
    %718 = vmatpush1.msra.mxu0 0.0
    %719 = vmatprep.subr.mxu0 0.0
    %720 = vmatpush1.msra.mxu0 0.0
    %721 = vmatprep.subr.mxu0 0.0
    %722 = vmatpush1.msra.mxu0 0.0
    %723 = vmatprep.subr.mxu0 0.0
    %724 = vmatpush1.msra.mxu0 0.0
    %725 = vmatprep.subr.mxu0 0.0
    %726 = vmatpush1.msra.mxu0 0.0
    %727 = vmatprep.subr.mxu0 0.0
    %728 = vmatpush1.msra.mxu0 0.0
    %729 = vmatprep.subr.mxu0 0.0
    %730 = vmatpush1.msra.mxu0 0.0
    %731 = vmatprep.subr.mxu0 0.0
    %732 = vmatpush1.msra.mxu0 0.0
    %733 = vmatprep.subr.mxu0 0.0
    %734 = vmatpush1.msra.mxu0 0.0
    %735 = vmatprep.subr.mxu0 0.0
    %736 = vmatpush1.msra.mxu0 0.0
    %737 = vmatprep.subr.mxu0 0.0
    %738 = vmatpush1.msra.mxu0 0.0
    %739 = vmatprep.subr.mxu0 0.0
    %740 = vmatpush1.msra.mxu0 0.0
    %741 = vmatprep.subr.mxu0 0.0
    %742 = vmatpush1.msra.mxu0 0.0
    %743 = vmatprep.mubr.f32.mxu0 0.0
    %744 = vmatmul.mubr.f32.gmra.mrb[0].mxu0 %v677
    %v745 = vpop.f32.mrb[0].mxu0
    %v746 = vadd.f32 0.0, %v745
    %v747 = vpop.f32.mrb[0].mxu0
    %748 = vdwg.mxu0
    %750 = vrot.lane.b32.xlu0 %v168, 112
    %v751 = vpop.permute.xlu0 %750
    %v754 = vsel %vm325, %v671, 0
    %756 = vmatprep.subr.mxu0 0.0
    %757 = vmatpush1.msra.mxu0 %v751
    %758 = vmatprep.subr.mxu0 0.0
    %759 = vmatpush1.msra.mxu0 0.0
    %760 = vmatprep.subr.mxu0 0.0
    %761 = vmatpush1.msra.mxu0 0.0
    %762 = vmatprep.subr.mxu0 0.0
    %763 = vmatpush1.msra.mxu0 0.0
    %764 = vmatprep.subr.mxu0 0.0
    %765 = vmatpush1.msra.mxu0 0.0
    %766 = vmatprep.subr.mxu0 0.0
    %767 = vmatpush1.msra.mxu0 0.0
    %768 = vmatprep.subr.mxu0 0.0
    %769 = vmatpush1.msra.mxu0 0.0
    %770 = vmatprep.subr.mxu0 0.0
    %771 = vmatpush1.msra.mxu0 0.0
    %772 = vmatprep.subr.mxu0 0.0
    %773 = vmatpush1.msra.mxu0 0.0
    %774 = vmatprep.subr.mxu0 0.0
    %775 = vmatpush1.msra.mxu0 0.0
    %776 = vmatprep.subr.mxu0 0.0
    %777 = vmatpush1.msra.mxu0 0.0
    %778 = vmatprep.subr.mxu0 0.0
    %779 = vmatpush1.msra.mxu0 0.0
    %780 = vmatprep.subr.mxu0 0.0
    %781 = vmatpush1.msra.mxu0 0.0
    %782 = vmatprep.subr.mxu0 0.0
    %783 = vmatpush1.msra.mxu0 0.0
    %784 = vmatprep.subr.mxu0 0.0
    %785 = vmatpush1.msra.mxu0 0.0
    %786 = vmatprep.subr.mxu0 0.0
    %787 = vmatpush1.msra.mxu0 0.0
    %788 = vmatprep.subr.mxu0 0.0
    %789 = vmatpush1.msra.mxu0 0.0
    %790 = vmatprep.subr.mxu0 0.0
    %791 = vmatpush1.msra.mxu0 0.0
    %792 = vmatprep.subr.mxu0 0.0
    %793 = vmatpush1.msra.mxu0 0.0
    %794 = vmatprep.subr.mxu0 0.0
    %795 = vmatpush1.msra.mxu0 0.0
    %796 = vmatprep.subr.mxu0 0.0
    %797 = vmatpush1.msra.mxu0 0.0
    %798 = vmatprep.subr.mxu0 0.0
    %799 = vmatpush1.msra.mxu0 0.0
    %800 = vmatprep.subr.mxu0 0.0
    %801 = vmatpush1.msra.mxu0 0.0
    %802 = vmatprep.subr.mxu0 0.0
    %803 = vmatpush1.msra.mxu0 0.0
    %804 = vmatprep.subr.mxu0 0.0
    %805 = vmatpush1.msra.mxu0 0.0
    %806 = vmatprep.subr.mxu0 0.0
    %807 = vmatpush1.msra.mxu0 0.0
    %808 = vmatprep.subr.mxu0 0.0
    %809 = vmatpush1.msra.mxu0 0.0
    %810 = vmatprep.subr.mxu0 0.0
    %811 = vmatpush1.msra.mxu0 0.0
    %812 = vmatprep.subr.mxu0 0.0
    %813 = vmatpush1.msra.mxu0 0.0
    %814 = vmatprep.subr.mxu0 0.0
    %815 = vmatpush1.msra.mxu0 0.0
    %816 = vmatprep.subr.mxu0 0.0
    %817 = vmatpush1.msra.mxu0 0.0
    %818 = vmatprep.subr.mxu0 0.0
    %819 = vmatpush1.msra.mxu0 0.0
    %820 = vmatprep.mubr.f32.mxu0 0.0
    %821 = vmatmul.mubr.f32.gmra.mrb[0].mxu0 %v754
    %v822 = vpop.f32.mrb[0].mxu0
    %v823 = vadd.f32 0.0, %v822
    %v824 = vpop.f32.mrb[0].mxu0
    %825 = vdwg.mxu0
    %826 = vrot.lane.b32.xlu0 %v160, 96
    %v827 = vpop.permute.xlu0 %826
    %828 = vrot.lane.b32.xlu0 %v160, 32
    %v829 = vpop.permute.xlu0 %828
    %v830 = vsel %vm173, %v827, 0
    %v832 = vsel %vm173, %v829, 0
    %834 = vmatprep.subr.mxu0 0.0
    %835 = vmatpush1.xpose.msra.mxu0 %v832
    %836 = vmatprep.subr.mxu0 0.0
    %837 = vmatpush1.xpose.msra.mxu0 0.0
    %838 = vmatprep.subr.mxu0 0.0
    %839 = vmatpush1.xpose.msra.mxu0 0.0
    %840 = vmatprep.subr.mxu0 0.0
    %841 = vmatpush1.xpose.msra.mxu0 0.0
    %842 = vmatprep.subr.mxu0 0.0
    %843 = vmatpush1.xpose.msra.mxu0 0.0
    %844 = vmatprep.subr.mxu0 0.0
    %845 = vmatpush1.xpose.msra.mxu0 0.0
    %846 = vmatprep.subr.mxu0 0.0
    %847 = vmatpush1.xpose.msra.mxu0 0.0
    %848 = vmatprep.subr.mxu0 0.0
    %849 = vmatpush1.xpose.msra.mxu0 0.0
    %850 = vmatprep.subr.mxu0 0.0
    %851 = vmatpush1.xpose.msra.mxu0 0.0
    %852 = vmatprep.subr.mxu0 0.0
    %853 = vmatpush1.xpose.msra.mxu0 0.0
    %854 = vmatprep.subr.mxu0 0.0
    %855 = vmatpush1.xpose.msra.mxu0 0.0
    %856 = vmatprep.subr.mxu0 0.0
    %857 = vmatpush1.xpose.msra.mxu0 0.0
    %858 = vmatprep.subr.mxu0 0.0
    %859 = vmatpush1.xpose.msra.mxu0 0.0
    %860 = vmatprep.subr.mxu0 0.0
    %861 = vmatpush1.xpose.msra.mxu0 0.0
    %862 = vmatprep.subr.mxu0 0.0
    %863 = vmatpush1.xpose.msra.mxu0 0.0
    %864 = vmatprep.subr.mxu0 0.0
    %865 = vmatpush1.xpose.msra.mxu0 0.0
    %866 = vmatprep.subr.mxu0 0.0
    %867 = vmatpush1.xpose.msra.mxu0 0.0
    %868 = vmatprep.subr.mxu0 0.0
    %869 = vmatpush1.xpose.msra.mxu0 0.0
    %870 = vmatprep.subr.mxu0 0.0
    %871 = vmatpush1.xpose.msra.mxu0 0.0
    %872 = vmatprep.subr.mxu0 0.0
    %873 = vmatpush1.xpose.msra.mxu0 0.0
    %874 = vmatprep.subr.mxu0 0.0
    %875 = vmatpush1.xpose.msra.mxu0 0.0
    %876 = vmatprep.subr.mxu0 0.0
    %877 = vmatpush1.xpose.msra.mxu0 0.0
    %878 = vmatprep.subr.mxu0 0.0
    %879 = vmatpush1.xpose.msra.mxu0 0.0
    %880 = vmatprep.subr.mxu0 0.0
    %881 = vmatpush1.xpose.msra.mxu0 0.0
    %882 = vmatprep.subr.mxu0 0.0
    %883 = vmatpush1.xpose.msra.mxu0 0.0
    %884 = vmatprep.subr.mxu0 0.0
    %885 = vmatpush1.xpose.msra.mxu0 0.0
    %886 = vmatprep.subr.mxu0 0.0
    %887 = vmatpush1.xpose.msra.mxu0 0.0
    %888 = vmatprep.subr.mxu0 0.0
    %889 = vmatpush1.xpose.msra.mxu0 0.0
    %890 = vmatprep.subr.mxu0 0.0
    %891 = vmatpush1.xpose.msra.mxu0 0.0
    %892 = vmatprep.subr.mxu0 0.0
    %893 = vmatpush1.xpose.msra.mxu0 0.0
    %894 = vmatprep.subr.mxu0 0.0
    %895 = vmatpush1.xpose.msra.mxu0 0.0
    %896 = vmatprep.subr.mxu0 0.0
    %897 = vmatpush1.xpose.msra.mxu0 0.0
    %898 = vmatprep.mubr.f32.mxu0 0.0
    %899 = vmatmul.mubr.f32.gmra.mrb[0].mxu0 %v830
    %v900 = vpop.f32.mrb[0].mxu0
    %v901 = vadd.f32 0.0, %v900
    %v902 = vpop.f32.mrb[0].mxu0
    %903 = vdwg.mxu0
    %904 = vrot.lane.b32.xlu0 %v166, 96
    %v905 = vpop.permute.xlu0 %904
    %906 = vrot.lane.b32.xlu0 %v166, 32
    %v907 = vpop.permute.xlu0 %906
    %v908 = vsel %vm173, %v905, 0
    %v910 = vsel %vm173, %v907, 0
    %912 = vmatprep.subr.mxu0 0.0
    %913 = vmatpush1.xpose.msra.mxu0 %v910
    %914 = vmatprep.subr.mxu0 0.0
    %915 = vmatpush1.xpose.msra.mxu0 0.0
    %916 = vmatprep.subr.mxu0 0.0
    %917 = vmatpush1.xpose.msra.mxu0 0.0
    %918 = vmatprep.subr.mxu0 0.0
    %919 = vmatpush1.xpose.msra.mxu0 0.0
    %920 = vmatprep.subr.mxu0 0.0
    %921 = vmatpush1.xpose.msra.mxu0 0.0
    %922 = vmatprep.subr.mxu0 0.0
    %923 = vmatpush1.xpose.msra.mxu0 0.0
    %924 = vmatprep.subr.mxu0 0.0
    %925 = vmatpush1.xpose.msra.mxu0 0.0
    %926 = vmatprep.subr.mxu0 0.0
    %927 = vmatpush1.xpose.msra.mxu0 0.0
    %928 = vmatprep.subr.mxu0 0.0
    %929 = vmatpush1.xpose.msra.mxu0 0.0
    %930 = vmatprep.subr.mxu0 0.0
    %931 = vmatpush1.xpose.msra.mxu0 0.0
    %932 = vmatprep.subr.mxu0 0.0
    %933 = vmatpush1.xpose.msra.mxu0 0.0
    %934 = vmatprep.subr.mxu0 0.0
    %935 = vmatpush1.xpose.msra.mxu0 0.0
    %936 = vmatprep.subr.mxu0 0.0
    %937 = vmatpush1.xpose.msra.mxu0 0.0
    %938 = vmatprep.subr.mxu0 0.0
    %939 = vmatpush1.xpose.msra.mxu0 0.0
    %940 = vmatprep.subr.mxu0 0.0
    %941 = vmatpush1.xpose.msra.mxu0 0.0
    %942 = vmatprep.subr.mxu0 0.0
    %943 = vmatpush1.xpose.msra.mxu0 0.0
    %944 = vmatprep.subr.mxu0 0.0
    %945 = vmatpush1.xpose.msra.mxu0 0.0
    %946 = vmatprep.subr.mxu0 0.0
    %947 = vmatpush1.xpose.msra.mxu0 0.0
    %948 = vmatprep.subr.mxu0 0.0
    %949 = vmatpush1.xpose.msra.mxu0 0.0
    %950 = vmatprep.subr.mxu0 0.0
    %951 = vmatpush1.xpose.msra.mxu0 0.0
    %952 = vmatprep.subr.mxu0 0.0
    %953 = vmatpush1.xpose.msra.mxu0 0.0
    %954 = vmatprep.subr.mxu0 0.0
    %955 = vmatpush1.xpose.msra.mxu0 0.0
    %956 = vmatprep.subr.mxu0 0.0
    %957 = vmatpush1.xpose.msra.mxu0 0.0
    %958 = vmatprep.subr.mxu0 0.0
    %959 = vmatpush1.xpose.msra.mxu0 0.0
    %960 = vmatprep.subr.mxu0 0.0
    %961 = vmatpush1.xpose.msra.mxu0 0.0
    %962 = vmatprep.subr.mxu0 0.0
    %963 = vmatpush1.xpose.msra.mxu0 0.0
    %964 = vmatprep.subr.mxu0 0.0
    %965 = vmatpush1.xpose.msra.mxu0 0.0
    %966 = vmatprep.subr.mxu0 0.0
    %967 = vmatpush1.xpose.msra.mxu0 0.0
    %968 = vmatprep.subr.mxu0 0.0
    %969 = vmatpush1.xpose.msra.mxu0 0.0
    %970 = vmatprep.subr.mxu0 0.0
    %971 = vmatpush1.xpose.msra.mxu0 0.0
    %972 = vmatprep.subr.mxu0 0.0
    %973 = vmatpush1.xpose.msra.mxu0 0.0
    %974 = vmatprep.subr.mxu0 0.0
    %975 = vmatpush1.xpose.msra.mxu0 0.0
    %976 = vmatprep.mubr.f32.mxu0 0.0
    %977 = vmatmul.mubr.f32.gmra.mrb[0].mxu0 %v908
    %v978 = vpop.f32.mrb[0].mxu0
    %v979 = vadd.f32 0.0, %v978
    %v980 = vpop.f32.mrb[0].mxu0
    %981 = vdwg.mxu0
    %v982 = vsel %vm325, %v901, -inf
    %983 = vmax.xlane.f32.xlu0 %v982
    %v984 = vpop.xlane.xlu0 %983
    %v985 = vsel %vm325, %v979, -inf
    %986 = vmax.xlane.f32.xlu0 %v985
    %v987 = vpop.xlane.xlu0 %986
    %v988 = vsub.f32 %v901, %v984
    %v989 = vsub.f32 %v979, %v987
    %v990 = vmul.f32 %v988, 1.442695
    %v991 = vpow.pop %v990
    %v992 = vmul.f32 %v989, 1.442695
    %v993 = vpow.pop %v992
    %v994 = vsel %vm325, %v991, 0.0
    %995 = vadd.xlane.f32.xlu0 %v994
    %v996 = vpop.xlane.xlu0 %995
    %v997 = vsel %vm325, %v993, 0.0
    %998 = vadd.xlane.f32.xlu0 %v997
    %v999 = vpop.xlane.xlu0 %998
    %v1000 = vrcp.pop %v996
    %v1001 = vmul.f32 %v991, %v1000
    %v1002 = vrcp.pop %v999
    %v1003 = vmul.f32 %v993, %v1002
    %1004 = vrot.lane.b32.xlu0 %v162, 96
    %v1005 = vpop.permute.xlu0 %1004
    %v1008 = vsel %vm325, %v1001, 0
    %1010 = vmatprep.subr.mxu0 0.0
    %1011 = vmatpush1.msra.mxu0 %v1005
    %1012 = vmatprep.subr.mxu0 0.0
    %1013 = vmatpush1.msra.mxu0 0.0
    %1014 = vmatprep.subr.mxu0 0.0
    %1015 = vmatpush1.msra.mxu0 0.0
    %1016 = vmatprep.subr.mxu0 0.0
    %1017 = vmatpush1.msra.mxu0 0.0
    %1018 = vmatprep.subr.mxu0 0.0
    %1019 = vmatpush1.msra.mxu0 0.0
    %1020 = vmatprep.subr.mxu0 0.0
    %1021 = vmatpush1.msra.mxu0 0.0
    %1022 = vmatprep.subr.mxu0 0.0
    %1023 = vmatpush1.msra.mxu0 0.0
    %1024 = vmatprep.subr.mxu0 0.0
    %1025 = vmatpush1.msra.mxu0 0.0
    %1026 = vmatprep.subr.mxu0 0.0
    %1027 = vmatpush1.msra.mxu0 0.0
    %1028 = vmatprep.subr.mxu0 0.0
    %1029 = vmatpush1.msra.mxu0 0.0
    %1030 = vmatprep.subr.mxu0 0.0
    %1031 = vmatpush1.msra.mxu0 0.0
    %1032 = vmatprep.subr.mxu0 0.0
    %1033 = vmatpush1.msra.mxu0 0.0
    %1034 = vmatprep.subr.mxu0 0.0
    %1035 = vmatpush1.msra.mxu0 0.0
    %1036 = vmatprep.subr.mxu0 0.0
    %1037 = vmatpush1.msra.mxu0 0.0
    %1038 = vmatprep.subr.mxu0 0.0
    %1039 = vmatpush1.msra.mxu0 0.0
    %1040 = vmatprep.subr.mxu0 0.0
    %1041 = vmatpush1.msra.mxu0 0.0
    %1042 = vmatprep.subr.mxu0 0.0
    %1043 = vmatpush1.msra.mxu0 0.0
    %1044 = vmatprep.subr.mxu0 0.0
    %1045 = vmatpush1.msra.mxu0 0.0
    %1046 = vmatprep.subr.mxu0 0.0
    %1047 = vmatpush1.msra.mxu0 0.0
    %1048 = vmatprep.subr.mxu0 0.0
    %1049 = vmatpush1.msra.mxu0 0.0
    %1050 = vmatprep.subr.mxu0 0.0
    %1051 = vmatpush1.msra.mxu0 0.0
    %1052 = vmatprep.subr.mxu0 0.0
    %1053 = vmatpush1.msra.mxu0 0.0
    %1054 = vmatprep.subr.mxu0 0.0
    %1055 = vmatpush1.msra.mxu0 0.0
    %1056 = vmatprep.subr.mxu0 0.0
    %1057 = vmatpush1.msra.mxu0 0.0
    %1058 = vmatprep.subr.mxu0 0.0
    %1059 = vmatpush1.msra.mxu0 0.0
    %1060 = vmatprep.subr.mxu0 0.0
    %1061 = vmatpush1.msra.mxu0 0.0
    %1062 = vmatprep.subr.mxu0 0.0
    %1063 = vmatpush1.msra.mxu0 0.0
    %1064 = vmatprep.subr.mxu0 0.0
    %1065 = vmatpush1.msra.mxu0 0.0
    %1066 = vmatprep.subr.mxu0 0.0
    %1067 = vmatpush1.msra.mxu0 0.0
    %1068 = vmatprep.subr.mxu0 0.0
    %1069 = vmatpush1.msra.mxu0 0.0
    %1070 = vmatprep.subr.mxu0 0.0
    %1071 = vmatpush1.msra.mxu0 0.0
    %1072 = vmatprep.subr.mxu0 0.0
    %1073 = vmatpush1.msra.mxu0 0.0
    %1074 = vmatprep.mubr.f32.mxu0 0.0
    %1075 = vmatmul.mubr.f32.gmra.mrb[0].mxu0 %v1008
    %v1076 = vpop.f32.mrb[0].mxu0
    %v1077 = vadd.f32 0.0, %v1076
    %v1078 = vpop.f32.mrb[0].mxu0
    %1079 = vdwg.mxu0
    %1080 = vrot.lane.b32.xlu0 %v168, 96
    %v1081 = vpop.permute.xlu0 %1080
    %v1084 = vsel %vm325, %v1003, 0
    %1086 = vmatprep.subr.mxu0 0.0
    %1087 = vmatpush1.msra.mxu0 %v1081
    %1088 = vmatprep.subr.mxu0 0.0
    %1089 = vmatpush1.msra.mxu0 0.0
    %1090 = vmatprep.subr.mxu0 0.0
    %1091 = vmatpush1.msra.mxu0 0.0
    %1092 = vmatprep.subr.mxu0 0.0
    %1093 = vmatpush1.msra.mxu0 0.0
    %1094 = vmatprep.subr.mxu0 0.0
    %1095 = vmatpush1.msra.mxu0 0.0
    %1096 = vmatprep.subr.mxu0 0.0
    %1097 = vmatpush1.msra.mxu0 0.0
    %1098 = vmatprep.subr.mxu0 0.0
    %1099 = vmatpush1.msra.mxu0 0.0
    %1100 = vmatprep.subr.mxu0 0.0
    %1101 = vmatpush1.msra.mxu0 0.0
    %1102 = vmatprep.subr.mxu0 0.0
    %1103 = vmatpush1.msra.mxu0 0.0
    %1104 = vmatprep.subr.mxu0 0.0
    %1105 = vmatpush1.msra.mxu0 0.0
    %1106 = vmatprep.subr.mxu0 0.0
    %1107 = vmatpush1.msra.mxu0 0.0
    %1108 = vmatprep.subr.mxu0 0.0
    %1109 = vmatpush1.msra.mxu0 0.0
    %1110 = vmatprep.subr.mxu0 0.0
    %1111 = vmatpush1.msra.mxu0 0.0
    %1112 = vmatprep.subr.mxu0 0.0
    %1113 = vmatpush1.msra.mxu0 0.0
    %1114 = vmatprep.subr.mxu0 0.0
    %1115 = vmatpush1.msra.mxu0 0.0
    %1116 = vmatprep.subr.mxu0 0.0
    %1117 = vmatpush1.msra.mxu0 0.0
    %1118 = vmatprep.subr.mxu0 0.0
    %1119 = vmatpush1.msra.mxu0 0.0
    %1120 = vmatprep.subr.mxu0 0.0
    %1121 = vmatpush1.msra.mxu0 0.0
    %1122 = vmatprep.subr.mxu0 0.0
    %1123 = vmatpush1.msra.mxu0 0.0
    %1124 = vmatprep.subr.mxu0 0.0
    %1125 = vmatpush1.msra.mxu0 0.0
    %1126 = vmatprep.subr.mxu0 0.0
    %1127 = vmatpush1.msra.mxu0 0.0
    %1128 = vmatprep.subr.mxu0 0.0
    %1129 = vmatpush1.msra.mxu0 0.0
    %1130 = vmatprep.subr.mxu0 0.0
    %1131 = vmatpush1.msra.mxu0 0.0
    %1132 = vmatprep.subr.mxu0 0.0
    %1133 = vmatpush1.msra.mxu0 0.0
    %1134 = vmatprep.subr.mxu0 0.0
    %1135 = vmatpush1.msra.mxu0 0.0
    %1136 = vmatprep.subr.mxu0 0.0
    %1137 = vmatpush1.msra.mxu0 0.0
    %1138 = vmatprep.subr.mxu0 0.0
    %1139 = vmatpush1.msra.mxu0 0.0
    %1140 = vmatprep.subr.mxu0 0.0
    %1141 = vmatpush1.msra.mxu0 0.0
    %1142 = vmatprep.subr.mxu0 0.0
    %1143 = vmatpush1.msra.mxu0 0.0
    %1144 = vmatprep.subr.mxu0 0.0
    %1145 = vmatpush1.msra.mxu0 0.0
    %1146 = vmatprep.subr.mxu0 0.0
    %1147 = vmatpush1.msra.mxu0 0.0
    %1148 = vmatprep.subr.mxu0 0.0
    %1149 = vmatpush1.msra.mxu0 0.0
    %1150 = vmatprep.mubr.f32.mxu0 0.0
    %1151 = vmatmul.mubr.f32.gmra.mrb[0].mxu0 %v1084
    %v1152 = vpop.f32.mrb[0].mxu0
    %v1153 = vadd.f32 0.0, %v1152
    %v1154 = vpop.f32.mrb[0].mxu0
    %1155 = vdwg.mxu0
    %1156 = vrot.lane.b32.xlu0 %v160, 80
    %v1157 = vpop.permute.xlu0 %1156
    %1158 = vrot.lane.b32.xlu0 %v160, 16
    %v1159 = vpop.permute.xlu0 %1158
    %v1160 = vsel %vm173, %v1157, 0
    %v1162 = vsel %vm173, %v1159, 0
    %1164 = vmatprep.subr.mxu0 0.0
    %1165 = vmatpush1.xpose.msra.mxu0 %v1162
    %1166 = vmatprep.subr.mxu0 0.0
    %1167 = vmatpush1.xpose.msra.mxu0 0.0
    %1168 = vmatprep.subr.mxu0 0.0
    %1169 = vmatpush1.xpose.msra.mxu0 0.0
    %1170 = vmatprep.subr.mxu0 0.0
    %1171 = vmatpush1.xpose.msra.mxu0 0.0
    %1172 = vmatprep.subr.mxu0 0.0
    %1173 = vmatpush1.xpose.msra.mxu0 0.0
    %1174 = vmatprep.subr.mxu0 0.0
    %1175 = vmatpush1.xpose.msra.mxu0 0.0
    %1176 = vmatprep.subr.mxu0 0.0
    %1177 = vmatpush1.xpose.msra.mxu0 0.0
    %1178 = vmatprep.subr.mxu0 0.0
    %1179 = vmatpush1.xpose.msra.mxu0 0.0
    %1180 = vmatprep.subr.mxu0 0.0
    %1181 = vmatpush1.xpose.msra.mxu0 0.0
    %1182 = vmatprep.subr.mxu0 0.0
    %1183 = vmatpush1.xpose.msra.mxu0 0.0
    %1184 = vmatprep.subr.mxu0 0.0
    %1185 = vmatpush1.xpose.msra.mxu0 0.0
    %1186 = vmatprep.subr.mxu0 0.0
    %1187 = vmatpush1.xpose.msra.mxu0 0.0
    %1188 = vmatprep.subr.mxu0 0.0
    %1189 = vmatpush1.xpose.msra.mxu0 0.0
    %1190 = vmatprep.subr.mxu0 0.0
    %1191 = vmatpush1.xpose.msra.mxu0 0.0
    %1192 = vmatprep.subr.mxu0 0.0
    %1193 = vmatpush1.xpose.msra.mxu0 0.0
    %1194 = vmatprep.subr.mxu0 0.0
    %1195 = vmatpush1.xpose.msra.mxu0 0.0
    %1196 = vmatprep.subr.mxu0 0.0
    %1197 = vmatpush1.xpose.msra.mxu0 0.0
    %1198 = vmatprep.subr.mxu0 0.0
    %1199 = vmatpush1.xpose.msra.mxu0 0.0
    %1200 = vmatprep.subr.mxu0 0.0
    %1201 = vmatpush1.xpose.msra.mxu0 0.0
    %1202 = vmatprep.subr.mxu0 0.0
    %1203 = vmatpush1.xpose.msra.mxu0 0.0
    %1204 = vmatprep.subr.mxu0 0.0
    %1205 = vmatpush1.xpose.msra.mxu0 0.0
    %1206 = vmatprep.subr.mxu0 0.0
    %1207 = vmatpush1.xpose.msra.mxu0 0.0
    %1208 = vmatprep.subr.mxu0 0.0
    %1209 = vmatpush1.xpose.msra.mxu0 0.0
    %1210 = vmatprep.subr.mxu0 0.0
    %1211 = vmatpush1.xpose.msra.mxu0 0.0
    %1212 = vmatprep.subr.mxu0 0.0
    %1213 = vmatpush1.xpose.msra.mxu0 0.0
    %1214 = vmatprep.subr.mxu0 0.0
    %1215 = vmatpush1.xpose.msra.mxu0 0.0
    %1216 = vmatprep.subr.mxu0 0.0
    %1217 = vmatpush1.xpose.msra.mxu0 0.0
    %1218 = vmatprep.subr.mxu0 0.0
    %1219 = vmatpush1.xpose.msra.mxu0 0.0
    %1220 = vmatprep.subr.mxu0 0.0
    %1221 = vmatpush1.xpose.msra.mxu0 0.0
    %1222 = vmatprep.subr.mxu0 0.0
    %1223 = vmatpush1.xpose.msra.mxu0 0.0
    %1224 = vmatprep.subr.mxu0 0.0
    %1225 = vmatpush1.xpose.msra.mxu0 0.0
    %1226 = vmatprep.subr.mxu0 0.0
    %1227 = vmatpush1.xpose.msra.mxu0 0.0
    %1228 = vmatprep.mubr.f32.mxu0 0.0
    %1229 = vmatmul.mubr.f32.gmra.mrb[0].mxu0 %v1160
    %v1230 = vpop.f32.mrb[0].mxu0
    %v1231 = vadd.f32 0.0, %v1230
    %v1232 = vpop.f32.mrb[0].mxu0
    %1233 = vdwg.mxu0
    %1234 = vrot.lane.b32.xlu0 %v166, 80
    %v1235 = vpop.permute.xlu0 %1234
    %1236 = vrot.lane.b32.xlu0 %v166, 16
    %v1237 = vpop.permute.xlu0 %1236
    %v1238 = vsel %vm173, %v1235, 0
    %v1240 = vsel %vm173, %v1237, 0
    %1242 = vmatprep.subr.mxu0 0.0
    %1243 = vmatpush1.xpose.msra.mxu0 %v1240
    %1244 = vmatprep.subr.mxu0 0.0
    %1245 = vmatpush1.xpose.msra.mxu0 0.0
    %1246 = vmatprep.subr.mxu0 0.0
    %1247 = vmatpush1.xpose.msra.mxu0 0.0
    %1248 = vmatprep.subr.mxu0 0.0
    %1249 = vmatpush1.xpose.msra.mxu0 0.0
    %1250 = vmatprep.subr.mxu0 0.0
    %1251 = vmatpush1.xpose.msra.mxu0 0.0
    %1252 = vmatprep.subr.mxu0 0.0
    %1253 = vmatpush1.xpose.msra.mxu0 0.0
    %1254 = vmatprep.subr.mxu0 0.0
    %1255 = vmatpush1.xpose.msra.mxu0 0.0
    %1256 = vmatprep.subr.mxu0 0.0
    %1257 = vmatpush1.xpose.msra.mxu0 0.0
    %1258 = vmatprep.subr.mxu0 0.0
    %1259 = vmatpush1.xpose.msra.mxu0 0.0
    %1260 = vmatprep.subr.mxu0 0.0
    %1261 = vmatpush1.xpose.msra.mxu0 0.0
    %1262 = vmatprep.subr.mxu0 0.0
    %1263 = vmatpush1.xpose.msra.mxu0 0.0
    %1264 = vmatprep.subr.mxu0 0.0
    %1265 = vmatpush1.xpose.msra.mxu0 0.0
    %1266 = vmatprep.subr.mxu0 0.0
    %1267 = vmatpush1.xpose.msra.mxu0 0.0
    %1268 = vmatprep.subr.mxu0 0.0
    %1269 = vmatpush1.xpose.msra.mxu0 0.0
    %1270 = vmatprep.subr.mxu0 0.0
    %1271 = vmatpush1.xpose.msra.mxu0 0.0
    %1272 = vmatprep.subr.mxu0 0.0
    %1273 = vmatpush1.xpose.msra.mxu0 0.0
    %1274 = vmatprep.subr.mxu0 0.0
    %1275 = vmatpush1.xpose.msra.mxu0 0.0
    %1276 = vmatprep.subr.mxu0 0.0
    %1277 = vmatpush1.xpose.msra.mxu0 0.0
    %1278 = vmatprep.subr.mxu0 0.0
    %1279 = vmatpush1.xpose.msra.mxu0 0.0
    %1280 = vmatprep.subr.mxu0 0.0
    %1281 = vmatpush1.xpose.msra.mxu0 0.0
    %1282 = vmatprep.subr.mxu0 0.0
    %1283 = vmatpush1.xpose.msra.mxu0 0.0
    %1284 = vmatprep.subr.mxu0 0.0
    %1285 = vmatpush1.xpose.msra.mxu0 0.0
    %1286 = vmatprep.subr.mxu0 0.0
    %1287 = vmatpush1.xpose.msra.mxu0 0.0
    %1288 = vmatprep.subr.mxu0 0.0
    %1289 = vmatpush1.xpose.msra.mxu0 0.0
    %1290 = vmatprep.subr.mxu0 0.0
    %1291 = vmatpush1.xpose.msra.mxu0 0.0
    %1292 = vmatprep.subr.mxu0 0.0
    %1293 = vmatpush1.xpose.msra.mxu0 0.0
    %1294 = vmatprep.subr.mxu0 0.0
    %1295 = vmatpush1.xpose.msra.mxu0 0.0
    %1296 = vmatprep.subr.mxu0 0.0
    %1297 = vmatpush1.xpose.msra.mxu0 0.0
    %1298 = vmatprep.subr.mxu0 0.0
    %1299 = vmatpush1.xpose.msra.mxu0 0.0
    %1300 = vmatprep.subr.mxu0 0.0
    %1301 = vmatpush1.xpose.msra.mxu0 0.0
    %1302 = vmatprep.subr.mxu0 0.0
    %1303 = vmatpush1.xpose.msra.mxu0 0.0
    %1304 = vmatprep.subr.mxu0 0.0
    %1305 = vmatpush1.xpose.msra.mxu0 0.0
    %1306 = vmatprep.mubr.f32.mxu0 0.0
    %1307 = vmatmul.mubr.f32.gmra.mrb[0].mxu0 %v1238
    %v1308 = vpop.f32.mrb[0].mxu0
    %v1309 = vadd.f32 0.0, %v1308
    %v1310 = vpop.f32.mrb[0].mxu0
    %1311 = vdwg.mxu0
    %v1312 = vsel %vm325, %v1231, -inf
    %1313 = vmax.xlane.f32.xlu0 %v1312
    %v1314 = vpop.xlane.xlu0 %1313
    %v1315 = vsel %vm325, %v1309, -inf
    %1316 = vmax.xlane.f32.xlu0 %v1315
    %v1317 = vpop.xlane.xlu0 %1316
    %v1318 = vsub.f32 %v1231, %v1314
    %v1319 = vsub.f32 %v1309, %v1317
    %v1320 = vmul.f32 %v1318, 1.442695
    %v1321 = vpow.pop %v1320
    %v1322 = vmul.f32 %v1319, 1.442695
    %v1323 = vpow.pop %v1322
    %v1324 = vsel %vm325, %v1321, 0.0
    %1325 = vadd.xlane.f32.xlu0 %v1324
    %v1326 = vpop.xlane.xlu0 %1325
    %v1327 = vsel %vm325, %v1323, 0.0
    %1328 = vadd.xlane.f32.xlu0 %v1327
    %v1329 = vpop.xlane.xlu0 %1328
    %v1330 = vrcp.pop %v1326
    %v1331 = vmul.f32 %v1321, %v1330
    %v1332 = vrcp.pop %v1329
    %v1333 = vmul.f32 %v1323, %v1332
    %1334 = vrot.lane.b32.xlu0 %v162, 80
    %v1335 = vpop.permute.xlu0 %1334
    %v1338 = vsel %vm325, %v1331, 0
    %1340 = vmatprep.subr.mxu0 0.0
    %1341 = vmatpush1.msra.mxu0 %v1335
    %1342 = vmatprep.subr.mxu0 0.0
    %1343 = vmatpush1.msra.mxu0 0.0
    %1344 = vmatprep.subr.mxu0 0.0
    %1345 = vmatpush1.msra.mxu0 0.0
    %1346 = vmatprep.subr.mxu0 0.0
    %1347 = vmatpush1.msra.mxu0 0.0
    %1348 = vmatprep.subr.mxu0 0.0
    %1349 = vmatpush1.msra.mxu0 0.0
    %1350 = vmatprep.subr.mxu0 0.0
    %1351 = vmatpush1.msra.mxu0 0.0
    %1352 = vmatprep.subr.mxu0 0.0
    %1353 = vmatpush1.msra.mxu0 0.0
    %1354 = vmatprep.subr.mxu0 0.0
    %1355 = vmatpush1.msra.mxu0 0.0
    %1356 = vmatprep.subr.mxu0 0.0
    %1357 = vmatpush1.msra.mxu0 0.0
    %1358 = vmatprep.subr.mxu0 0.0
    %1359 = vmatpush1.msra.mxu0 0.0
    %1360 = vmatprep.subr.mxu0 0.0
    %1361 = vmatpush1.msra.mxu0 0.0
    %1362 = vmatprep.subr.mxu0 0.0
    %1363 = vmatpush1.msra.mxu0 0.0
    %1364 = vmatprep.subr.mxu0 0.0
    %1365 = vmatpush1.msra.mxu0 0.0
    %1366 = vmatprep.subr.mxu0 0.0
    %1367 = vmatpush1.msra.mxu0 0.0
    %1368 = vmatprep.subr.mxu0 0.0
    %1369 = vmatpush1.msra.mxu0 0.0
    %1370 = vmatprep.subr.mxu0 0.0
    %1371 = vmatpush1.msra.mxu0 0.0
    %1372 = vmatprep.subr.mxu0 0.0
    %1373 = vmatpush1.msra.mxu0 0.0
    %1374 = vmatprep.subr.mxu0 0.0
    %1375 = vmatpush1.msra.mxu0 0.0
    %1376 = vmatprep.subr.mxu0 0.0
    %1377 = vmatpush1.msra.mxu0 0.0
    %1378 = vmatprep.subr.mxu0 0.0
    %1379 = vmatpush1.msra.mxu0 0.0
    %1380 = vmatprep.subr.mxu0 0.0
    %1381 = vmatpush1.msra.mxu0 0.0
    %1382 = vmatprep.subr.mxu0 0.0
    %1383 = vmatpush1.msra.mxu0 0.0
    %1384 = vmatprep.subr.mxu0 0.0
    %1385 = vmatpush1.msra.mxu0 0.0
    %1386 = vmatprep.subr.mxu0 0.0
    %1387 = vmatpush1.msra.mxu0 0.0
    %1388 = vmatprep.subr.mxu0 0.0
    %1389 = vmatpush1.msra.mxu0 0.0
    %1390 = vmatprep.subr.mxu0 0.0
    %1391 = vmatpush1.msra.mxu0 0.0
    %1392 = vmatprep.subr.mxu0 0.0
    %1393 = vmatpush1.msra.mxu0 0.0
    %1394 = vmatprep.subr.mxu0 0.0
    %1395 = vmatpush1.msra.mxu0 0.0
    %1396 = vmatprep.subr.mxu0 0.0
    %1397 = vmatpush1.msra.mxu0 0.0
    %1398 = vmatprep.subr.mxu0 0.0
    %1399 = vmatpush1.msra.mxu0 0.0
    %1400 = vmatprep.subr.mxu0 0.0
    %1401 = vmatpush1.msra.mxu0 0.0
    %1402 = vmatprep.subr.mxu0 0.0
    %1403 = vmatpush1.msra.mxu0 0.0
    %1404 = vmatprep.mubr.f32.mxu0 0.0
    %1405 = vmatmul.mubr.f32.gmra.mrb[0].mxu0 %v1338
    %v1406 = vpop.f32.mrb[0].mxu0
    %v1407 = vadd.f32 0.0, %v1406
    %v1408 = vpop.f32.mrb[0].mxu0
    %1409 = vdwg.mxu0
    %1410 = vrot.lane.b32.xlu0 %v168, 80
    %v1411 = vpop.permute.xlu0 %1410
    %v1414 = vsel %vm325, %v1333, 0
    %1416 = vmatprep.subr.mxu0 0.0
    %1417 = vmatpush1.msra.mxu0 %v1411
    %1418 = vmatprep.subr.mxu0 0.0
    %1419 = vmatpush1.msra.mxu0 0.0
    %1420 = vmatprep.subr.mxu0 0.0
    %1421 = vmatpush1.msra.mxu0 0.0
    %1422 = vmatprep.subr.mxu0 0.0
    %1423 = vmatpush1.msra.mxu0 0.0
    %1424 = vmatprep.subr.mxu0 0.0
    %1425 = vmatpush1.msra.mxu0 0.0
    %1426 = vmatprep.subr.mxu0 0.0
    %1427 = vmatpush1.msra.mxu0 0.0
    %1428 = vmatprep.subr.mxu0 0.0
    %1429 = vmatpush1.msra.mxu0 0.0
    %1430 = vmatprep.subr.mxu0 0.0
    %1431 = vmatpush1.msra.mxu0 0.0
    %1432 = vmatprep.subr.mxu0 0.0
    %1433 = vmatpush1.msra.mxu0 0.0
    %1434 = vmatprep.subr.mxu0 0.0
    %1435 = vmatpush1.msra.mxu0 0.0
    %1436 = vmatprep.subr.mxu0 0.0
    %1437 = vmatpush1.msra.mxu0 0.0
    %1438 = vmatprep.subr.mxu0 0.0
    %1439 = vmatpush1.msra.mxu0 0.0
    %1440 = vmatprep.subr.mxu0 0.0
    %1441 = vmatpush1.msra.mxu0 0.0
    %1442 = vmatprep.subr.mxu0 0.0
    %1443 = vmatpush1.msra.mxu0 0.0
    %1444 = vmatprep.subr.mxu0 0.0
    %1445 = vmatpush1.msra.mxu0 0.0
    %1446 = vmatprep.subr.mxu0 0.0
    %1447 = vmatpush1.msra.mxu0 0.0
    %1448 = vmatprep.subr.mxu0 0.0
    %1449 = vmatpush1.msra.mxu0 0.0
    %1450 = vmatprep.subr.mxu0 0.0
    %1451 = vmatpush1.msra.mxu0 0.0
    %1452 = vmatprep.subr.mxu0 0.0
    %1453 = vmatpush1.msra.mxu0 0.0
    %1454 = vmatprep.subr.mxu0 0.0
    %1455 = vmatpush1.msra.mxu0 0.0
    %1456 = vmatprep.subr.mxu0 0.0
    %1457 = vmatpush1.msra.mxu0 0.0
    %1458 = vmatprep.subr.mxu0 0.0
    %1459 = vmatpush1.msra.mxu0 0.0
    %1460 = vmatprep.subr.mxu0 0.0
    %1461 = vmatpush1.msra.mxu0 0.0
    %1462 = vmatprep.subr.mxu0 0.0
    %1463 = vmatpush1.msra.mxu0 0.0
    %1464 = vmatprep.subr.mxu0 0.0
    %1465 = vmatpush1.msra.mxu0 0.0
    %1466 = vmatprep.subr.mxu0 0.0
    %1467 = vmatpush1.msra.mxu0 0.0
    %1468 = vmatprep.subr.mxu0 0.0
    %1469 = vmatpush1.msra.mxu0 0.0
    %1470 = vmatprep.subr.mxu0 0.0
    %1471 = vmatpush1.msra.mxu0 0.0
    %1472 = vmatprep.subr.mxu0 0.0
    %1473 = vmatpush1.msra.mxu0 0.0
    %1474 = vmatprep.subr.mxu0 0.0
    %1475 = vmatpush1.msra.mxu0 0.0
    %1476 = vmatprep.subr.mxu0 0.0
    %1477 = vmatpush1.msra.mxu0 0.0
    %1478 = vmatprep.subr.mxu0 0.0
    %1479 = vmatpush1.msra.mxu0 0.0
    %1480 = vmatprep.mubr.f32.mxu0 0.0
    %1481 = vmatmul.mubr.f32.gmra.mrb[0].mxu0 %v1414
    %v1482 = vpop.f32.mrb[0].mxu0
    %v1483 = vadd.f32 0.0, %v1482
    %v1484 = vpop.f32.mrb[0].mxu0
    %1485 = vdwg.mxu0
    %1488 = vrot.lane.b32.xlu0 %v746, 16
    %v1489 = vpop.permute.xlu0 %1488
    %1490 = vrot.lane.b32.xlu0 %v823, 16
    %v1491 = vpop.permute.xlu0 %1490
    %1496 = vrot.lane.b32.xlu0 %v1077, 32
    %v1497 = vpop.permute.xlu0 %1496
    %1498 = vrot.lane.b32.xlu0 %v1153, 32
    %v1499 = vpop.permute.xlu0 %1498
    %1504 = vrot.lane.b32.xlu0 %v1407, 48
    %v1505 = vpop.permute.xlu0 %1504
    %1506 = vrot.lane.b32.xlu0 %v1483, 48
    %v1507 = vpop.permute.xlu0 %1506
    %v1510 = vsel %vm173, %v418, %v1489
    %v1511 = vsel %vm173, %v491, %v1491
    %vm1512 = vcmask 261120
    %v1513 = vsel %vm1512, %v1510, %v1497
    %v1514 = vsel %vm1512, %v1511, %v1499
    %vm1515 = vcmask 392192
    %v1516 = vsel %vm1515, %v1513, %v1505
    %v1517 = vsel %vm1515, %v1514, %v1507
    %v1518 = vld [vmem:[#allocation7] sm:$0xff]
    %v1519 = vld [vmem:[#allocation7 + $0x8] sm:$0xff]
    %v1520 = vld [vmem:[#allocation7 + $0x10] sm:$0xff]
    %v1521 = vld [vmem:[#allocation7 + $0x18] sm:$0xff]
    %v1522 = vld [vmem:[#allocation7 + $0x20] sm:$0xff]
    %v1523 = vld [vmem:[#allocation7 + $0x28] sm:$0xff]
    %v1524 = vld [vmem:[#allocation7 + $0x30] sm:$0xff]
    %v1525 = vld [vmem:[#allocation7 + $0x38] sm:$0xff]
    %v1526 = vld [vmem:[%s3] sm:$0x1]
    %v1528 = vlaneseq
    %v1529 = vshrl.u32 %v1528, 7
    %v1530 = vsub.s32 0, %v1529
    %v1531 = vrot.slane %v1526, %v1530
    %vm1533 = vcmask 523264
    %v1535 = vsel %vm1533, %v1516, 0
    %v1538 = vsel %vm1533, %v1517, 0
    %1540 = vmatprep.subr.mxu0 0.0
    %1541 = vmatpush1.msra.mxu0 %v1518
    %1542 = vmatprep.subr.mxu0 0.0
    %1543 = vmatpush1.msra.mxu0 %v1519
    %1544 = vmatprep.subr.mxu0 0.0
    %1545 = vmatpush1.msra.mxu0 %v1520
    %1546 = vmatprep.subr.mxu0 0.0
    %1547 = vmatpush1.msra.mxu0 %v1521
    %1548 = vmatprep.subr.mxu0 0.0
    %1549 = vmatpush1.msra.mxu0 %v1522
    %1550 = vmatprep.subr.mxu0 0.0
    %1551 = vmatpush1.msra.mxu0 %v1523
    %1552 = vmatprep.subr.mxu0 0.0
    %1553 = vmatpush1.msra.mxu0 %v1524
    %1554 = vmatprep.subr.mxu0 0.0
    %1555 = vmatpush1.msra.mxu0 %v1525
    %1556 = vmatprep.subr.mxu0 0.0
    %1557 = vmatpush1.msra.mxu0 0.0
    %1558 = vmatprep.subr.mxu0 0.0
    %1559 = vmatpush1.msra.mxu0 0.0
    %1560 = vmatprep.subr.mxu0 0.0
    %1561 = vmatpush1.msra.mxu0 0.0
    %1562 = vmatprep.subr.mxu0 0.0
    %1563 = vmatpush1.msra.mxu0 0.0
    %1564 = vmatprep.subr.mxu0 0.0
    %1565 = vmatpush1.msra.mxu0 0.0
    %1566 = vmatprep.subr.mxu0 0.0
    %1567 = vmatpush1.msra.mxu0 0.0
    %1568 = vmatprep.subr.mxu0 0.0
    %1569 = vmatpush1.msra.mxu0 0.0
    %1570 = vmatprep.subr.mxu0 0.0
    %1571 = vmatpush1.msra.mxu0 0.0
    %1572 = vmatprep.subr.mxu0 0.0
    %1573 = vmatpush1.msra.mxu0 0.0
    %1574 = vmatprep.subr.mxu0 0.0
    %1575 = vmatpush1.msra.mxu0 0.0
    %1576 = vmatprep.subr.mxu0 0.0
    %1577 = vmatpush1.msra.mxu0 0.0
    %1578 = vmatprep.subr.mxu0 0.0
    %1579 = vmatpush1.msra.mxu0 0.0
    %1580 = vmatprep.subr.mxu0 0.0
    %1581 = vmatpush1.msra.mxu0 0.0
    %1582 = vmatprep.subr.mxu0 0.0
    %1583 = vmatpush1.msra.mxu0 0.0
    %1584 = vmatprep.subr.mxu0 0.0
    %1585 = vmatpush1.msra.mxu0 0.0
    %1586 = vmatprep.subr.mxu0 0.0
    %1587 = vmatpush1.msra.mxu0 0.0
    %1588 = vmatprep.subr.mxu0 0.0
    %1589 = vmatpush1.msra.mxu0 0.0
    %1590 = vmatprep.subr.mxu0 0.0
    %1591 = vmatpush1.msra.mxu0 0.0
    %1592 = vmatprep.subr.mxu0 0.0
    %1593 = vmatpush1.msra.mxu0 0.0
    %1594 = vmatprep.subr.mxu0 0.0
    %1595 = vmatpush1.msra.mxu0 0.0
    %1596 = vmatprep.subr.mxu0 0.0
    %1597 = vmatpush1.msra.mxu0 0.0
    %1598 = vmatprep.subr.mxu0 0.0
    %1599 = vmatpush1.msra.mxu0 0.0
    %1600 = vmatprep.subr.mxu0 0.0
    %1601 = vmatpush1.msra.mxu0 0.0
    %1602 = vmatprep.subr.mxu0 0.0
    %1603 = vmatpush1.msra.mxu0 0.0
    %1604 = vmatprep.mubr.f32.mxu0 0.0
    %1605 = vmatmul.mubr.f32.gmra.mrb[0].mxu0 %v1535
    %v1606 = vpop.f32.mrb[0].mxu0
    %v1607 = vadd.f32 %v1531, %v1606
    %v1608 = vpop.f32.mrb[0].mxu0
    %1609 = vmatprep.mubr.f32.mxu0 0.0
    %1610 = vmatmul.mubr.f32.gmra.mrb[0].mxu0 %v1538
    %v1611 = vpop.f32.mrb[0].mxu0
    %v1612 = vadd.f32 %v1531, %v1611
    %v1613 = vpop.f32.mrb[0].mxu0
    %1614 = vdwg.mxu0
    %1615 = vst [vmem:[#allocation8] sm:$0xff] %v1607
    %1616 = vst [vmem:[#allocation8 + $0x8] sm:$0xff] %v1612
    // Predicated region
    $region30: #{tpu_custom_call.1} parent=1 // pred_check
      _
    $region31: #{tpu_custom_call.1} parent=1 // pred_check_branch
      %1618 = sbr.rel (0) target = $region33
    $region32: #{tpu_custom_call.1} parent=1 // pred_region
      %s1620 = ssub.s32 256, 256
      %1621 = vsyncadd [#allocation4], %s1620
      %s1622 = sshll.u32 [#allocation8], 4
      %s1623 = int_to_ptr.vmem [resolvable:$true] %s1622
      %1628 = dma.vmem_to_hbm [thread:$0]  %s1623, 256, %s4, [#allocation4], 128, 128, 8
    $region33: #{tpu_custom_call.1} parent=1 // pred_fallthru
      _
    // Predicated region
    $region34: #{tpu_custom_call.1} parent=1 // pred_check
      _
    $region35: #{tpu_custom_call.1} parent=1 // pred_check_branch
      %1630 = sbr.rel (0) target = $region37
    $region36: #{tpu_custom_call.1} parent=1 // pred_region
      %1631 = dma.done [#allocation4], 256
    $region37: #{tpu_custom_call.1} parent=1 // pred_fallthru
      _
    %1632 = vsyncpa [#allocation3], 1
    %1633 = vsyncpa [#allocation6], 1
    %1634 = vsyncpa [#allocation4], 1

// kernel: tpu_custom_call.1
$region0: #{tpu_custom_call.1}
  #allocation0 [shape = 'u32[]', space=smem, size = 0x4, offset = 0x4, fixed_abs, tag = 'smem constant byte address 0x4 - core index']
  #allocation1 [shape = 'u32[144,128]{1,0:T(1,128)}', space=vmem, size = 0x12000, scoped, tag = 'internal scratch']
  %s0 = inlined_call_operand.hbm [shape: f32[16,128], index: 0, kind: input, shape index: {}]
  %s1 = inlined_call_operand.hbm [shape: f32[128,256], index: 1, kind: input, shape index: {}]
  %s2 = inlined_call_operand.hbm [shape: f32[64,128], index: 2, kind: input, shape index: {}]
  %s3 = inlined_call_operand.vmem [shape: f32[1,128], index: 3, kind: input, shape index: {}]
  %s4 = inlined_call_operand.hbm [shape: f32[16,128], index: 4, kind: output, shape index: {}]
  %s5 = sld [smem:[#allocation0]]
  $region38: #{tpu_custom_call.1} parent=0
    _
  %s7 = ssub.s32 1, %s5
  %s8 = scalar_select 0, %s7, %s5
  $region1: #{tpu_custom_call.1} parent=0
    #allocation2 [shape = 'u8[8192]{0}', space=vmem, size = 0x2000, scoped, tag = 'input window, operand 0, single buffered']
    #allocation3 [shape = 's32[1]{0}', space=sflag, size = 0x4, scoped, tag = 'scoped memory for tpu_custom_call.1']
    #allocation4 [shape = 's32[1]{0}', space=sflag, size = 0x4, scoped, tag = 'scoped memory for tpu_custom_call.1']
    #allocation5 [shape = 'u8[131072]{0}', space=vmem, size = 0x20000, scoped, tag = 'input window, operand 1, single buffered']
    #allocation6 [shape = 's32[1]{0}', space=sflag, size = 0x4, scoped, tag = 'scoped memory for tpu_custom_call.1']
    #allocation7 [shape = 'u8[32768]{0}', space=vmem, size = 0x8000, scoped, tag = 'input window, operand 2, single buffered']
    #allocation8 [shape = 'u8[8192]{0}', space=vmem, size = 0x2000, scoped, tag = 'output window, operand 0, single buffered']
    %9 = vsyncpa [#allocation3], 0
    %10 = vsyncpa [#allocation6], 0
    %11 = vsyncpa [#allocation4], 0
    // Predicated region
    $region2: #{tpu_custom_call.1} parent=1 // pred_check
      _
    $region3: #{tpu_custom_call.1} parent=1 // pred_check_branch
      %13 = sbr.rel (0) target = $region5
    $region4: #{tpu_custom_call.1} parent=1 // pred_region
      %s15 = ssub.s32 256, 256
      %16 = vsyncadd [#allocation3], %s15
      %s17 = sshll.u32 [#allocation2], 4
      %s18 = int_to_ptr.vmem [resolvable:$true] %s17
      %23 = dma.hbm_to_vmem [thread:$0]  %s0, 256, %s18, [#allocation3], 128, 128, 8
    $region5: #{tpu_custom_call.1} parent=1 // pred_fallthru
      _
    // Predicated region
    $region6: #{tpu_custom_call.1} parent=1 // pred_check
      _
    $region7: #{tpu_custom_call.1} parent=1 // pred_check_branch
      %25 = sbr.rel (0) target = $region9
    $region8: #{tpu_custom_call.1} parent=1 // pred_region
      %s27 = ssub.s32 4096, 4096
      %28 = vsyncadd [#allocation6], %s27
      %s29 = sshll.u32 [#allocation5], 4
      %s30 = int_to_ptr.vmem [resolvable:$true] %s29
      %35 = dma.hbm_to_vmem [thread:$0]  %s1, 4096, %s30, [#allocation6], 256, 256, 16
    $region9: #{tpu_custom_call.1} parent=1 // pred_fallthru
      _
    // Predicated region
    $region10: #{tpu_custom_call.1} parent=1 // pred_check
      _
    $region11: #{tpu_custom_call.1} parent=1 // pred_check_branch
      %37 = sbr.rel (0) target = $region13
    $region12: #{tpu_custom_call.1} parent=1 // pred_region
      %s39 = ssub.s32 1024, 1024
      %40 = vsyncadd [#allocation6], %s39
      %s41 = sshll.u32 [#allocation7], 4
      %s42 = int_to_ptr.vmem [resolvable:$true] %s41
      %47 = dma.hbm_to_vmem [thread:$0]  %s2, 1024, %s42, [#allocation6], 128, 128, 8
    $region13: #{tpu_custom_call.1} parent=1 // pred_fallthru
      _
    // Predicated region
    $region14: #{tpu_custom_call.1} parent=1 // pred_check
      _
    $region15: #{tpu_custom_call.1} parent=1 // pred_check_branch
      %49 = sbr.rel (0) target = $region17
    $region16: #{tpu_custom_call.1} parent=1 // pred_region
      _
    $region17: #{tpu_custom_call.1} parent=1 // pred_fallthru
      _
    // Predicated region
    $region18: #{tpu_custom_call.1} parent=1 // pred_check
      _
    $region19: #{tpu_custom_call.1} parent=1 // pred_check_branch
      %51 = sbr.rel (0) target = $region21
    $region20: #{tpu_custom_call.1} parent=1 // pred_region
      %52 = dma.done [#allocation3], 256
    $region21: #{tpu_custom_call.1} parent=1 // pred_fallthru
      _
    // Predicated region
    $region22: #{tpu_custom_call.1} parent=1 // pred_check
      _
    $region23: #{tpu_custom_call.1} parent=1 // pred_check_branch
      %54 = sbr.rel (0) target = $region25
    $region24: #{tpu_custom_call.1} parent=1 // pred_region
      %55 = dma.done [#allocation6], 4096
    $region25: #{tpu_custom_call.1} parent=1 // pred_fallthru
      _
    // Predicated region
    $region26: #{tpu_custom_call.1} parent=1 // pred_check
      _
    $region27: #{tpu_custom_call.1} parent=1 // pred_check_branch
      %57 = sbr.rel (0) target = $region29
    $region28: #{tpu_custom_call.1} parent=1 // pred_region
      %58 = dma.done [#allocation6], 1024
    $region29: #{tpu_custom_call.1} parent=1 // pred_fallthru
      _
    %v59 = vld [vmem:[#allocation2] sm:$0xff]
    %v60 = vld [vmem:[#allocation2 + $0x8] sm:$0xff]
    %v61 = vld [vmem:[#allocation5] sm:$0xff]
    %v62 = vld [vmem:[#allocation5 + $0x8] sm:$0xff]
    %v63 = vld [vmem:[#allocation5 + $0x10] sm:$0xff]
    %v64 = vld [vmem:[#allocation5 + $0x18] sm:$0xff]
    %v65 = vld [vmem:[#allocation5 + $0x20] sm:$0xff]
    %v66 = vld [vmem:[#allocation5 + $0x28] sm:$0xff]
    %v67 = vld [vmem:[#allocation5 + $0x30] sm:$0xff]
    %v68 = vld [vmem:[#allocation5 + $0x38] sm:$0xff]
    %v69 = vld [vmem:[#allocation5 + $0x40] sm:$0xff]
    %v70 = vld [vmem:[#allocation5 + $0x48] sm:$0xff]
    %v71 = vld [vmem:[#allocation5 + $0x50] sm:$0xff]
    %v72 = vld [vmem:[#allocation5 + $0x58] sm:$0xff]
    %v73 = vld [vmem:[#allocation5 + $0x60] sm:$0xff]
    %v74 = vld [vmem:[#allocation5 + $0x68] sm:$0xff]
    %v75 = vld [vmem:[#allocation5 + $0x70] sm:$0xff]
    %v76 = vld [vmem:[#allocation5 + $0x78] sm:$0xff]
    %v77 = vld [vmem:[#allocation5 + $0x80] sm:$0xff]
    %v78 = vld [vmem:[#allocation5 + $0x88] sm:$0xff]
    %v79 = vld [vmem:[#allocation5 + $0x90] sm:$0xff]
    %v80 = vld [vmem:[#allocation5 + $0x98] sm:$0xff]
    %v81 = vld [vmem:[#allocation5 + $0xa0] sm:$0xff]
    %v82 = vld [vmem:[#allocation5 + $0xa8] sm:$0xff]
    %v83 = vld [vmem:[#allocation5 + $0xb0] sm:$0xff]
    %v84 = vld [vmem:[#allocation5 + $0xb8] sm:$0xff]
    %v85 = vld [vmem:[#allocation5 + $0xc0] sm:$0xff]
    %v86 = vld [vmem:[#allocation5 + $0xc8] sm:$0xff]
    %v87 = vld [vmem:[#allocation5 + $0xd0] sm:$0xff]
    %v88 = vld [vmem:[#allocation5 + $0xd8] sm:$0xff]
    %v89 = vld [vmem:[#allocation5 + $0xe0] sm:$0xff]
    %v90 = vld [vmem:[#allocation5 + $0xe8] sm:$0xff]
    %v91 = vld [vmem:[#allocation5 + $0xf0] sm:$0xff]
    %v92 = vld [vmem:[#allocation5 + $0xf8] sm:$0xff]
    %93 = vmatprep.subr.mxu0 %v62
    %94 = vmatpush1.msra.mxu0 %v61
    %95 = vmatprep.subr.mxu0 %v64
    %96 = vmatpush1.msra.mxu0 %v63
    %97 = vmatprep.subr.mxu0 %v66
    %98 = vmatpush1.msra.mxu0 %v65
    %99 = vmatprep.subr.mxu0 %v68
    %100 = vmatpush1.msra.mxu0 %v67
    %101 = vmatprep.subr.mxu0 %v70
    %102 = vmatpush1.msra.mxu0 %v69
    %103 = vmatprep.subr.mxu0 %v72
    %104 = vmatpush1.msra.mxu0 %v71
    %105 = vmatprep.subr.mxu0 %v74
    %106 = vmatpush1.msra.mxu0 %v73
    %107 = vmatprep.subr.mxu0 %v76
    %108 = vmatpush1.msra.mxu0 %v75
    %109 = vmatprep.subr.mxu0 %v78
    %110 = vmatpush1.msra.mxu0 %v77
    %111 = vmatprep.subr.mxu0 %v80
    %112 = vmatpush1.msra.mxu0 %v79
    %113 = vmatprep.subr.mxu0 %v82
    %114 = vmatpush1.msra.mxu0 %v81
    %115 = vmatprep.subr.mxu0 %v84
    %116 = vmatpush1.msra.mxu0 %v83
    %117 = vmatprep.subr.mxu0 %v86
    %118 = vmatpush1.msra.mxu0 %v85
    %119 = vmatprep.subr.mxu0 %v88
    %120 = vmatpush1.msra.mxu0 %v87
    %121 = vmatprep.subr.mxu0 %v90
    %122 = vmatpush1.msra.mxu0 %v89
    %123 = vmatprep.subr.mxu0 %v92
    %124 = vmatpush1.msra.mxu0 %v91
    %125 = vmatprep.subr.mxu0 0.0
    %126 = vmatpush1.msra.mxu0 0.0
    %127 = vmatprep.subr.mxu0 0.0
    %128 = vmatpush1.msra.mxu0 0.0
    %129 = vmatprep.subr.mxu0 0.0
    %130 = vmatpush1.msra.mxu0 0.0
    %131 = vmatprep.subr.mxu0 0.0
    %132 = vmatpush1.msra.mxu0 0.0
    %133 = vmatprep.subr.mxu0 0.0
    %134 = vmatpush1.msra.mxu0 0.0
    %135 = vmatprep.subr.mxu0 0.0
    %136 = vmatpush1.msra.mxu0 0.0
    %137 = vmatprep.subr.mxu0 0.0
    %138 = vmatpush1.msra.mxu0 0.0
    %139 = vmatprep.subr.mxu0 0.0
    %140 = vmatpush1.msra.mxu0 0.0
    %141 = vmatprep.subr.mxu0 0.0
    %142 = vmatpush1.msra.mxu0 0.0
    %143 = vmatprep.subr.mxu0 0.0
    %144 = vmatpush1.msra.mxu0 0.0
    %145 = vmatprep.subr.mxu0 0.0
    %146 = vmatpush1.msra.mxu0 0.0
    %147 = vmatprep.subr.mxu0 0.0
    %148 = vmatpush1.msra.mxu0 0.0
    %149 = vmatprep.subr.mxu0 0.0
    %150 = vmatpush1.msra.mxu0 0.0
    %151 = vmatprep.subr.mxu0 0.0
    %152 = vmatpush1.msra.mxu0 0.0
    %153 = vmatprep.subr.mxu0 0.0
    %154 = vmatpush1.msra.mxu0 0.0
    %155 = vmatprep.subr.mxu0 0.0
    %156 = vmatpush1.msra.mxu0 0.0
    %157 = vmatprep.mubr.f32.mxu0 0.0
    %158 = vmatmul.mubr.f32.gmra.mrb[0].mxu0 %v59
    %v159 = vpop.f32.mrb[0].mxu0
    %v160 = vadd.f32 0.0, %v159
    %v161 = vpop.f32.mrb[0].mxu0
    %v162 = vadd.f32 0.0, %v161
    %163 = vmatprep.mubr.f32.mxu0 0.0
    %164 = vmatmul.mubr.f32.gmra.mrb[0].mxu0 %v60
    %v165 = vpop.f32.mrb[0].mxu0
    %v166 = vadd.f32 0.0, %v165
    %v167 = vpop.f32.mrb[0].mxu0
    %v168 = vadd.f32 0.0, %v167
    %169 = vdwg.mxu0
    %171 = vrot.lane.b32.xlu0 %v160, 64
    %v172 = vpop.permute.xlu0 %171
    %vm173 = vcmask 130048
    %v174 = vsel %vm173, %v160, 0
    %v176 = vsel %vm173, %v172, 0
    %178 = vmatprep.subr.mxu0 0.0
    %179 = vmatpush1.xpose.msra.mxu0 %v176
    %180 = vmatprep.subr.mxu0 0.0
    %181 = vmatpush1.xpose.msra.mxu0 0.0
    %182 = vmatprep.subr.mxu0 0.0
    %183 = vmatpush1.xpose.msra.mxu0 0.0
    %184 = vmatprep.subr.mxu0 0.0
    %185 = vmatpush1.xpose.msra.mxu0 0.0
    %186 = vmatprep.subr.mxu0 0.0
    %187 = vmatpush1.xpose.msra.mxu0 0.0
    %188 = vmatprep.subr.mxu0 0.0
    %189 = vmatpush1.xpose.msra.mxu0 0.0
    %190 = vmatprep.subr.mxu0 0.0
    %191 = vmatpush1.xpose.msra.mxu0 0.0
    %192 = vmatprep.subr.mxu0 0.0
    %193 = vmatpush1.xpose.msra.mxu0 0.0
    %194 = vmatprep.subr.mxu0 0.0
    %195 = vmatpush1.xpose.msra.mxu0 0.0
    %196 = vmatprep.subr.mxu0 0.0
    %197 = vmatpush1.xpose.msra.mxu0 0.0
    %198 = vmatprep.subr.mxu0 0.0
    %199 = vmatpush1.xpose.msra.mxu0 0.0
    %200 = vmatprep.subr.mxu0 0.0
    %201 = vmatpush1.xpose.msra.mxu0 0.0
    %202 = vmatprep.subr.mxu0 0.0
    %203 = vmatpush1.xpose.msra.mxu0 0.0
    %204 = vmatprep.subr.mxu0 0.0
    %205 = vmatpush1.xpose.msra.mxu0 0.0
    %206 = vmatprep.subr.mxu0 0.0
    %207 = vmatpush1.xpose.msra.mxu0 0.0
    %208 = vmatprep.subr.mxu0 0.0
    %209 = vmatpush1.xpose.msra.mxu0 0.0
    %210 = vmatprep.subr.mxu0 0.0
    %211 = vmatpush1.xpose.msra.mxu0 0.0
    %212 = vmatprep.subr.mxu0 0.0
    %213 = vmatpush1.xpose.msra.mxu0 0.0
    %214 = vmatprep.subr.mxu0 0.0
    %215 = vmatpush1.xpose.msra.mxu0 0.0
    %216 = vmatprep.subr.mxu0 0.0
    %217 = vmatpush1.xpose.msra.mxu0 0.0
    %218 = vmatprep.subr.mxu0 0.0
    %219 = vmatpush1.xpose.msra.mxu0 0.0
    %220 = vmatprep.subr.mxu0 0.0
    %221 = vmatpush1.xpose.msra.mxu0 0.0
    %222 = vmatprep.subr.mxu0 0.0
    %223 = vmatpush1.xpose.msra.mxu0 0.0
    %224 = vmatprep.subr.mxu0 0.0
    %225 = vmatpush1.xpose.msra.mxu0 0.0
    %226 = vmatprep.subr.mxu0 0.0
    %227 = vmatpush1.xpose.msra.mxu0 0.0
    %228 = vmatprep.subr.mxu0 0.0
    %229 = vmatpush1.xpose.msra.mxu0 0.0
    %230 = vmatprep.subr.mxu0 0.0
    %231 = vmatpush1.xpose.msra.mxu0 0.0
    %232 = vmatprep.subr.mxu0 0.0
    %233 = vmatpush1.xpose.msra.mxu0 0.0
    %234 = vmatprep.subr.mxu0 0.0
    %235 = vmatpush1.xpose.msra.mxu0 0.0
    %236 = vmatprep.subr.mxu0 0.0
    %237 = vmatpush1.xpose.msra.mxu0 0.0
    %238 = vmatprep.subr.mxu0 0.0
    %239 = vmatpush1.xpose.msra.mxu0 0.0
    %240 = vmatprep.subr.mxu0 0.0
    %241 = vmatpush1.xpose.msra.mxu0 0.0
    %242 = vmatprep.mubr.f32.mxu0 0.0
    %243 = vmatmul.mubr.f32.gmra.mrb[0].mxu0 %v174
    %v244 = vpop.f32.mrb[0].mxu0
    %v245 = vadd.f32 0.0, %v244
    %v246 = vpop.f32.mrb[0].mxu0
    %247 = vdwg.mxu0
    %249 = vrot.lane.b32.xlu0 %v166, 64
    %v250 = vpop.permute.xlu0 %249
    %v251 = vsel %vm173, %v166, 0
    %v253 = vsel %vm173, %v250, 0
    %255 = vmatprep.subr.mxu0 0.0
    %256 = vmatpush1.xpose.msra.mxu0 %v253
    %257 = vmatprep.subr.mxu0 0.0
    %258 = vmatpush1.xpose.msra.mxu0 0.0
    %259 = vmatprep.subr.mxu0 0.0
    %260 = vmatpush1.xpose.msra.mxu0 0.0
    %261 = vmatprep.subr.mxu0 0.0
    %262 = vmatpush1.xpose.msra.mxu0 0.0
    %263 = vmatprep.subr.mxu0 0.0
    %264 = vmatpush1.xpose.msra.mxu0 0.0
    %265 = vmatprep.subr.mxu0 0.0
    %266 = vmatpush1.xpose.msra.mxu0 0.0
    %267 = vmatprep.subr.mxu0 0.0
    %268 = vmatpush1.xpose.msra.mxu0 0.0
    %269 = vmatprep.subr.mxu0 0.0
    %270 = vmatpush1.xpose.msra.mxu0 0.0
    %271 = vmatprep.subr.mxu0 0.0
    %272 = vmatpush1.xpose.msra.mxu0 0.0
    %273 = vmatprep.subr.mxu0 0.0
    %274 = vmatpush1.xpose.msra.mxu0 0.0
    %275 = vmatprep.subr.mxu0 0.0
    %276 = vmatpush1.xpose.msra.mxu0 0.0
    %277 = vmatprep.subr.mxu0 0.0
    %278 = vmatpush1.xpose.msra.mxu0 0.0
    %279 = vmatprep.subr.mxu0 0.0
    %280 = vmatpush1.xpose.msra.mxu0 0.0
    %281 = vmatprep.subr.mxu0 0.0
    %282 = vmatpush1.xpose.msra.mxu0 0.0
    %283 = vmatprep.subr.mxu0 0.0
    %284 = vmatpush1.xpose.msra.mxu0 0.0
    %285 = vmatprep.subr.mxu0 0.0
    %286 = vmatpush1.xpose.msra.mxu0 0.0
    %287 = vmatprep.subr.mxu0 0.0
    %288 = vmatpush1.xpose.msra.mxu0 0.0
    %289 = vmatprep.subr.mxu0 0.0
    %290 = vmatpush1.xpose.msra.mxu0 0.0
    %291 = vmatprep.subr.mxu0 0.0
    %292 = vmatpush1.xpose.msra.mxu0 0.0
    %293 = vmatprep.subr.mxu0 0.0
    %294 = vmatpush1.xpose.msra.mxu0 0.0
    %295 = vmatprep.subr.mxu0 0.0
    %296 = vmatpush1.xpose.msra.mxu0 0.0
    %297 = vmatprep.subr.mxu0 0.0
    %298 = vmatpush1.xpose.msra.mxu0 0.0
    %299 = vmatprep.subr.mxu0 0.0
    %300 = vmatpush1.xpose.msra.mxu0 0.0
    %301 = vmatprep.subr.mxu0 0.0
    %302 = vmatpush1.xpose.msra.mxu0 0.0
    %303 = vmatprep.subr.mxu0 0.0
    %304 = vmatpush1.xpose.msra.mxu0 0.0
    %305 = vmatprep.subr.mxu0 0.0
    %306 = vmatpush1.xpose.msra.mxu0 0.0
    %307 = vmatprep.subr.mxu0 0.0
    %308 = vmatpush1.xpose.msra.mxu0 0.0
    %309 = vmatprep.subr.mxu0 0.0
    %310 = vmatpush1.xpose.msra.mxu0 0.0
    %311 = vmatprep.subr.mxu0 0.0
    %312 = vmatpush1.xpose.msra.mxu0 0.0
    %313 = vmatprep.subr.mxu0 0.0
    %314 = vmatpush1.xpose.msra.mxu0 0.0
    %315 = vmatprep.subr.mxu0 0.0
    %316 = vmatpush1.xpose.msra.mxu0 0.0
    %317 = vmatprep.subr.mxu0 0.0
    %318 = vmatpush1.xpose.msra.mxu0 0.0
    %319 = vmatprep.mubr.f32.mxu0 0.0
    %320 = vmatmul.mubr.f32.gmra.mrb[0].mxu0 %v251
    %v321 = vpop.f32.mrb[0].mxu0
    %v322 = vadd.f32 0.0, %v321
    %v323 = vpop.f32.mrb[0].mxu0
    %324 = vdwg.mxu0
    %vm325 = vcmask 64512
    %v326 = vsel %vm325, %v245, -inf
    %327 = vmax.xlane.f32.xlu0 %v326
    %v328 = vpop.xlane.xlu0 %327
    %v329 = vsel %vm325, %v322, -inf
    %330 = vmax.xlane.f32.xlu0 %v329
    %v331 = vpop.xlane.xlu0 %330
    %v332 = vsub.f32 %v245, %v328
    %v333 = vsub.f32 %v322, %v331
    %v334 = vmul.f32 %v332, 1.442695
    %v335 = vpow.pop %v334
    %v336 = vmul.f32 %v333, 1.442695
    %v337 = vpow.pop %v336
    %v338 = vsel %vm325, %v335, 0.0
    %339 = vadd.xlane.f32.xlu0 %v338
    %v340 = vpop.xlane.xlu0 %339
    %v341 = vsel %vm325, %v337, 0.0
    %342 = vadd.xlane.f32.xlu0 %v341
    %v343 = vpop.xlane.xlu0 %342
    %v344 = vrcp.pop %v340
    %v345 = vmul.f32 %v335, %v344
    %v346 = vrcp.pop %v343
    %v347 = vmul.f32 %v337, %v346
    %v349 = vsel %vm325, %v345, 0
    %351 = vmatprep.subr.mxu0 0.0
    %352 = vmatpush1.msra.mxu0 %v162
    %353 = vmatprep.subr.mxu0 0.0
    %354 = vmatpush1.msra.mxu0 0.0
    %355 = vmatprep.subr.mxu0 0.0
    %356 = vmatpush1.msra.mxu0 0.0
    %357 = vmatprep.subr.mxu0 0.0
    %358 = vmatpush1.msra.mxu0 0.0
    %359 = vmatprep.subr.mxu0 0.0
    %360 = vmatpush1.msra.mxu0 0.0
    %361 = vmatprep.subr.mxu0 0.0
    %362 = vmatpush1.msra.mxu0 0.0
    %363 = vmatprep.subr.mxu0 0.0
    %364 = vmatpush1.msra.mxu0 0.0
    %365 = vmatprep.subr.mxu0 0.0
    %366 = vmatpush1.msra.mxu0 0.0
    %367 = vmatprep.subr.mxu0 0.0
    %368 = vmatpush1.msra.mxu0 0.0
    %369 = vmatprep.subr.mxu0 0.0
    %370 = vmatpush1.msra.mxu0 0.0
    %371 = vmatprep.subr.mxu0 0.0
    %372 = vmatpush1.msra.mxu0 0.0
    %373 = vmatprep.subr.mxu0 0.0
    %374 = vmatpush1.msra.mxu0 0.0
    %375 = vmatprep.subr.mxu0 0.0
    %376 = vmatpush1.msra.mxu0 0.0
    %377 = vmatprep.subr.mxu0 0.0
    %378 = vmatpush1.msra.mxu0 0.0
    %379 = vmatprep.subr.mxu0 0.0
    %380 = vmatpush1.msra.mxu0 0.0
    %381 = vmatprep.subr.mxu0 0.0
    %382 = vmatpush1.msra.mxu0 0.0
    %383 = vmatprep.subr.mxu0 0.0
    %384 = vmatpush1.msra.mxu0 0.0
    %385 = vmatprep.subr.mxu0 0.0
    %386 = vmatpush1.msra.mxu0 0.0
    %387 = vmatprep.subr.mxu0 0.0
    %388 = vmatpush1.msra.mxu0 0.0
    %389 = vmatprep.subr.mxu0 0.0
    %390 = vmatpush1.msra.mxu0 0.0
    %391 = vmatprep.subr.mxu0 0.0
    %392 = vmatpush1.msra.mxu0 0.0
    %393 = vmatprep.subr.mxu0 0.0
    %394 = vmatpush1.msra.mxu0 0.0
    %395 = vmatprep.subr.mxu0 0.0
    %396 = vmatpush1.msra.mxu0 0.0
    %397 = vmatprep.subr.mxu0 0.0
    %398 = vmatpush1.msra.mxu0 0.0
    %399 = vmatprep.subr.mxu0 0.0
    %400 = vmatpush1.msra.mxu0 0.0
    %401 = vmatprep.subr.mxu0 0.0
    %402 = vmatpush1.msra.mxu0 0.0
    %403 = vmatprep.subr.mxu0 0.0
    %404 = vmatpush1.msra.mxu0 0.0
    %405 = vmatprep.subr.mxu0 0.0
    %406 = vmatpush1.msra.mxu0 0.0
    %407 = vmatprep.subr.mxu0 0.0
    %408 = vmatpush1.msra.mxu0 0.0
    %409 = vmatprep.subr.mxu0 0.0
    %410 = vmatpush1.msra.mxu0 0.0
    %411 = vmatprep.subr.mxu0 0.0
    %412 = vmatpush1.msra.mxu0 0.0
    %413 = vmatprep.subr.mxu0 0.0
    %414 = vmatpush1.msra.mxu0 0.0
    %415 = vmatprep.mubr.f32.mxu0 0.0
    %416 = vmatmul.mubr.f32.gmra.mrb[0].mxu0 %v349
    %v417 = vpop.f32.mrb[0].mxu0
    %v418 = vadd.f32 0.0, %v417
    %v419 = vpop.f32.mrb[0].mxu0
    %420 = vdwg.mxu0
    %v422 = vsel %vm325, %v347, 0
    %424 = vmatprep.subr.mxu0 0.0
    %425 = vmatpush1.msra.mxu0 %v168
    %426 = vmatprep.subr.mxu0 0.0
    %427 = vmatpush1.msra.mxu0 0.0
    %428 = vmatprep.subr.mxu0 0.0
    %429 = vmatpush1.msra.mxu0 0.0
    %430 = vmatprep.subr.mxu0 0.0
    %431 = vmatpush1.msra.mxu0 0.0
    %432 = vmatprep.subr.mxu0 0.0
    %433 = vmatpush1.msra.mxu0 0.0
    %434 = vmatprep.subr.mxu0 0.0
    %435 = vmatpush1.msra.mxu0 0.0
    %436 = vmatprep.subr.mxu0 0.0
    %437 = vmatpush1.msra.mxu0 0.0
    %438 = vmatprep.subr.mxu0 0.0
    %439 = vmatpush1.msra.mxu0 0.0
    %440 = vmatprep.subr.mxu0 0.0
    %441 = vmatpush1.msra.mxu0 0.0
    %442 = vmatprep.subr.mxu0 0.0
    %443 = vmatpush1.msra.mxu0 0.0
    %444 = vmatprep.subr.mxu0 0.0
    %445 = vmatpush1.msra.mxu0 0.0
    %446 = vmatprep.subr.mxu0 0.0
    %447 = vmatpush1.msra.mxu0 0.0
    %448 = vmatprep.subr.mxu0 0.0
    %449 = vmatpush1.msra.mxu0 0.0
    %450 = vmatprep.subr.mxu0 0.0
    %451 = vmatpush1.msra.mxu0 0.0
    %452 = vmatprep.subr.mxu0 0.0
    %453 = vmatpush1.msra.mxu0 0.0
    %454 = vmatprep.subr.mxu0 0.0
    %455 = vmatpush1.msra.mxu0 0.0
    %456 = vmatprep.subr.mxu0 0.0
    %457 = vmatpush1.msra.mxu0 0.0
    %458 = vmatprep.subr.mxu0 0.0
    %459 = vmatpush1.msra.mxu0 0.0
    %460 = vmatprep.subr.mxu0 0.0
    %461 = vmatpush1.msra.mxu0 0.0
    %462 = vmatprep.subr.mxu0 0.0
    %463 = vmatpush1.msra.mxu0 0.0
    %464 = vmatprep.subr.mxu0 0.0
    %465 = vmatpush1.msra.mxu0 0.0
    %466 = vmatprep.subr.mxu0 0.0
    %467 = vmatpush1.msra.mxu0 0.0
    %468 = vmatprep.subr.mxu0 0.0
    %469 = vmatpush1.msra.mxu0 0.0
    %470 = vmatprep.subr.mxu0 0.0
    %471 = vmatpush1.msra.mxu0 0.0
    %472 = vmatprep.subr.mxu0 0.0
    %473 = vmatpush1.msra.mxu0 0.0
    %474 = vmatprep.subr.mxu0 0.0
    %475 = vmatpush1.msra.mxu0 0.0
    %476 = vmatprep.subr.mxu0 0.0
    %477 = vmatpush1.msra.mxu0 0.0
    %478 = vmatprep.subr.mxu0 0.0
    %479 = vmatpush1.msra.mxu0 0.0
    %480 = vmatprep.subr.mxu0 0.0
    %481 = vmatpush1.msra.mxu0 0.0
    %482 = vmatprep.subr.mxu0 0.0
    %483 = vmatpush1.msra.mxu0 0.0
    %484 = vmatprep.subr.mxu0 0.0
    %485 = vmatpush1.msra.mxu0 0.0
    %486 = vmatprep.subr.mxu0 0.0
    %487 = vmatpush1.msra.mxu0 0.0
    %488 = vmatprep.mubr.f32.mxu0 0.0
    %489 = vmatmul.mubr.f32.gmra.mrb[0].mxu0 %v422
    %v490 = vpop.f32.mrb[0].mxu0
    %v491 = vadd.f32 0.0, %v490
    %v492 = vpop.f32.mrb[0].mxu0
    %493 = vdwg.mxu0
    %494 = vrot.lane.b32.xlu0 %v160, 112
    %v495 = vpop.permute.xlu0 %494
    %496 = vrot.lane.b32.xlu0 %v160, 48
    %v497 = vpop.permute.xlu0 %496
    %v498 = vsel %vm173, %v495, 0
    %v500 = vsel %vm173, %v497, 0
    %502 = vmatprep.subr.mxu0 0.0
    %503 = vmatpush1.xpose.msra.mxu0 %v500
    %504 = vmatprep.subr.mxu0 0.0
    %505 = vmatpush1.xpose.msra.mxu0 0.0
    %506 = vmatprep.subr.mxu0 0.0
    %507 = vmatpush1.xpose.msra.mxu0 0.0
    %508 = vmatprep.subr.mxu0 0.0
    %509 = vmatpush1.xpose.msra.mxu0 0.0
    %510 = vmatprep.subr.mxu0 0.0
    %511 = vmatpush1.xpose.msra.mxu0 0.0
    %512 = vmatprep.subr.mxu0 0.0
    %513 = vmatpush1.xpose.msra.mxu0 0.0
    %514 = vmatprep.subr.mxu0 0.0
    %515 = vmatpush1.xpose.msra.mxu0 0.0
    %516 = vmatprep.subr.mxu0 0.0
    %517 = vmatpush1.xpose.msra.mxu0 0.0
    %518 = vmatprep.subr.mxu0 0.0
    %519 = vmatpush1.xpose.msra.mxu0 0.0
    %520 = vmatprep.subr.mxu0 0.0
    %521 = vmatpush1.xpose.msra.mxu0 0.0
    %522 = vmatprep.subr.mxu0 0.0
    %523 = vmatpush1.xpose.msra.mxu0 0.0
    %524 = vmatprep.subr.mxu0 0.0
    %525 = vmatpush1.xpose.msra.mxu0 0.0
    %526 = vmatprep.subr.mxu0 0.0
    %527 = vmatpush1.xpose.msra.mxu0 0.0
    %528 = vmatprep.subr.mxu0 0.0
    %529 = vmatpush1.xpose.msra.mxu0 0.0
    %530 = vmatprep.subr.mxu0 0.0
    %531 = vmatpush1.xpose.msra.mxu0 0.0
    %532 = vmatprep.subr.mxu0 0.0
    %533 = vmatpush1.xpose.msra.mxu0 0.0
    %534 = vmatprep.subr.mxu0 0.0
    %535 = vmatpush1.xpose.msra.mxu0 0.0
    %536 = vmatprep.subr.mxu0 0.0
    %537 = vmatpush1.xpose.msra.mxu0 0.0
    %538 = vmatprep.subr.mxu0 0.0
    %539 = vmatpush1.xpose.msra.mxu0 0.0
    %540 = vmatprep.subr.mxu0 0.0
    %541 = vmatpush1.xpose.msra.mxu0 0.0
    %542 = vmatprep.subr.mxu0 0.0
    %543 = vmatpush1.xpose.msra.mxu0 0.0
    %544 = vmatprep.subr.mxu0 0.0
    %545 = vmatpush1.xpose.msra.mxu0 0.0
    %546 = vmatprep.subr.mxu0 0.0
    %547 = vmatpush1.xpose.msra.mxu0 0.0
    %548 = vmatprep.subr.mxu0 0.0
    %549 = vmatpush1.xpose.msra.mxu0 0.0
    %550 = vmatprep.subr.mxu0 0.0
    %551 = vmatpush1.xpose.msra.mxu0 0.0
    %552 = vmatprep.subr.mxu0 0.0
    %553 = vmatpush1.xpose.msra.mxu0 0.0
    %554 = vmatprep.subr.mxu0 0.0
    %555 = vmatpush1.xpose.msra.mxu0 0.0
    %556 = vmatprep.subr.mxu0 0.0
    %557 = vmatpush1.xpose.msra.mxu0 0.0
    %558 = vmatprep.subr.mxu0 0.0
    %559 = vmatpush1.xpose.msra.mxu0 0.0
    %560 = vmatprep.subr.mxu0 0.0
    %561 = vmatpush1.xpose.msra.mxu0 0.0
    %562 = vmatprep.subr.mxu0 0.0
    %563 = vmatpush1.xpose.msra.mxu0 0.0
    %564 = vmatprep.subr.mxu0 0.0
    %565 = vmatpush1.xpose.msra.mxu0 0.0
    %566 = vmatprep.mubr.f32.mxu0 0.0
    %567 = vmatmul.mubr.f32.gmra.mrb[0].mxu0 %v498
    %v568 = vpop.f32.mrb[0].mxu0
    %v569 = vadd.f32 0.0, %v568
    %v570 = vpop.f32.mrb[0].mxu0
    %571 = vdwg.mxu0
    %572 = vrot.lane.b32.xlu0 %v166, 112
    %v573 = vpop.permute.xlu0 %572
    %574 = vrot.lane.b32.xlu0 %v166, 48
    %v575 = vpop.permute.xlu0 %574
    %v576 = vsel %vm173, %v573, 0
    %v578 = vsel %vm173, %v575, 0
    %580 = vmatprep.subr.mxu0 0.0
    %581 = vmatpush1.xpose.msra.mxu0 %v578
    %582 = vmatprep.subr.mxu0 0.0
    %583 = vmatpush1.xpose.msra.mxu0 0.0
    %584 = vmatprep.subr.mxu0 0.0
    %585 = vmatpush1.xpose.msra.mxu0 0.0
    %586 = vmatprep.subr.mxu0 0.0
    %587 = vmatpush1.xpose.msra.mxu0 0.0
    %588 = vmatprep.subr.mxu0 0.0
    %589 = vmatpush1.xpose.msra.mxu0 0.0
    %590 = vmatprep.subr.mxu0 0.0
    %591 = vmatpush1.xpose.msra.mxu0 0.0
    %592 = vmatprep.subr.mxu0 0.0
    %593 = vmatpush1.xpose.msra.mxu0 0.0
    %594 = vmatprep.subr.mxu0 0.0
    %595 = vmatpush1.xpose.msra.mxu0 0.0
    %596 = vmatprep.subr.mxu0 0.0
    %597 = vmatpush1.xpose.msra.mxu0 0.0
    %598 = vmatprep.subr.mxu0 0.0
    %599 = vmatpush1.xpose.msra.mxu0 0.0
    %600 = vmatprep.subr.mxu0 0.0
    %601 = vmatpush1.xpose.msra.mxu0 0.0
    %602 = vmatprep.subr.mxu0 0.0
    %603 = vmatpush1.xpose.msra.mxu0 0.0
    %604 = vmatprep.subr.mxu0 0.0
    %605 = vmatpush1.xpose.msra.mxu0 0.0
    %606 = vmatprep.subr.mxu0 0.0
    %607 = vmatpush1.xpose.msra.mxu0 0.0
    %608 = vmatprep.subr.mxu0 0.0
    %609 = vmatpush1.xpose.msra.mxu0 0.0
    %610 = vmatprep.subr.mxu0 0.0
    %611 = vmatpush1.xpose.msra.mxu0 0.0
    %612 = vmatprep.subr.mxu0 0.0
    %613 = vmatpush1.xpose.msra.mxu0 0.0
    %614 = vmatprep.subr.mxu0 0.0
    %615 = vmatpush1.xpose.msra.mxu0 0.0
    %616 = vmatprep.subr.mxu0 0.0
    %617 = vmatpush1.xpose.msra.mxu0 0.0
    %618 = vmatprep.subr.mxu0 0.0
    %619 = vmatpush1.xpose.msra.mxu0 0.0
    %620 = vmatprep.subr.mxu0 0.0
    %621 = vmatpush1.xpose.msra.mxu0 0.0
    %622 = vmatprep.subr.mxu0 0.0
    %623 = vmatpush1.xpose.msra.mxu0 0.0
    %624 = vmatprep.subr.mxu0 0.0
    %625 = vmatpush1.xpose.msra.mxu0 0.0
    %626 = vmatprep.subr.mxu0 0.0
    %627 = vmatpush1.xpose.msra.mxu0 0.0
    %628 = vmatprep.subr.mxu0 0.0
    %629 = vmatpush1.xpose.msra.mxu0 0.0
    %630 = vmatprep.subr.mxu0 0.0
    %631 = vmatpush1.xpose.msra.mxu0 0.0
    %632 = vmatprep.subr.mxu0 0.0
    %633 = vmatpush1.xpose.msra.mxu0 0.0
    %634 = vmatprep.subr.mxu0 0.0
    %635 = vmatpush1.xpose.msra.mxu0 0.0
    %636 = vmatprep.subr.mxu0 0.0
    %637 = vmatpush1.xpose.msra.mxu0 0.0
    %638 = vmatprep.subr.mxu0 0.0
    %639 = vmatpush1.xpose.msra.mxu0 0.0
    %640 = vmatprep.subr.mxu0 0.0
    %641 = vmatpush1.xpose.msra.mxu0 0.0
    %642 = vmatprep.subr.mxu0 0.0
    %643 = vmatpush1.xpose.msra.mxu0 0.0
    %644 = vmatprep.mubr.f32.mxu0 0.0
    %645 = vmatmul.mubr.f32.gmra.mrb[0].mxu0 %v576
    %v646 = vpop.f32.mrb[0].mxu0
    %v647 = vadd.f32 0.0, %v646
    %v648 = vpop.f32.mrb[0].mxu0
    %649 = vdwg.mxu0
    %v650 = vsel %vm325, %v569, -inf
    %651 = vmax.xlane.f32.xlu0 %v650
    %v652 = vpop.xlane.xlu0 %651
    %v653 = vsel %vm325, %v647, -inf
    %654 = vmax.xlane.f32.xlu0 %v653
    %v655 = vpop.xlane.xlu0 %654
    %v656 = vsub.f32 %v569, %v652
    %v657 = vsub.f32 %v647, %v655
    %v658 = vmul.f32 %v656, 1.442695
    %v659 = vpow.pop %v658
    %v660 = vmul.f32 %v657, 1.442695
    %v661 = vpow.pop %v660
    %v662 = vsel %vm325, %v659, 0.0
    %663 = vadd.xlane.f32.xlu0 %v662
    %v664 = vpop.xlane.xlu0 %663
    %v665 = vsel %vm325, %v661, 0.0
    %666 = vadd.xlane.f32.xlu0 %v665
    %v667 = vpop.xlane.xlu0 %666
    %v668 = vrcp.pop %v664
    %v669 = vmul.f32 %v659, %v668
    %v670 = vrcp.pop %v667
    %v671 = vmul.f32 %v661, %v670
    %673 = vrot.lane.b32.xlu0 %v162, 112
    %v674 = vpop.permute.xlu0 %673
    %v677 = vsel %vm325, %v669, 0
    %679 = vmatprep.subr.mxu0 0.0
    %680 = vmatpush1.msra.mxu0 %v674
    %681 = vmatprep.subr.mxu0 0.0
    %682 = vmatpush1.msra.mxu0 0.0
    %683 = vmatprep.subr.mxu0 0.0
    %684 = vmatpush1.msra.mxu0 0.0
    %685 = vmatprep.subr.mxu0 0.0
    %686 = vmatpush1.msra.mxu0 0.0
    %687 = vmatprep.subr.mxu0 0.0
    %688 = vmatpush1.msra.mxu0 0.0
    %689 = vmatprep.subr.mxu0 0.0
    %690 = vmatpush1.msra.mxu0 0.0
    %691 = vmatprep.subr.mxu0 0.0
    %692 = vmatpush1.msra.mxu0 0.0
    %693 = vmatprep.subr.mxu0 0.0
    %694 = vmatpush1.msra.mxu0 0.0
    %695 = vmatprep.subr.mxu0 0.0
    %696 = vmatpush1.msra.mxu0 0.0
    %697 = vmatprep.subr.mxu0 0.0
    %698 = vmatpush1.msra.mxu0 0.0
    %699 = vmatprep.subr.mxu0 0.0
    %700 = vmatpush1.msra.mxu0 0.0
    %701 = vmatprep.subr.mxu0 0.0
    %702 = vmatpush1.msra.mxu0 0.0
    %703 = vmatprep.subr.mxu0 0.0
    %704 = vmatpush1.msra.mxu0 0.0
    %705 = vmatprep.subr.mxu0 0.0
    %706 = vmatpush1.msra.mxu0 0.0
    %707 = vmatprep.subr.mxu0 0.0
    %708 = vmatpush1.msra.mxu0 0.0
    %709 = vmatprep.subr.mxu0 0.0
    %710 = vmatpush1.msra.mxu0 0.0
    %711 = vmatprep.subr.mxu0 0.0
    %712 = vmatpush1.msra.mxu0 0.0
    %713 = vmatprep.subr.mxu0 0.0
    %714 = vmatpush1.msra.mxu0 0.0
    %715 = vmatprep.subr.mxu0 0.0
    %716 = vmatpush1.msra.mxu0 0.0
    %717 = vmatprep.subr.mxu0 0.0
    %718 = vmatpush1.msra.mxu0 0.0
    %719 = vmatprep.subr.mxu0 0.0
    %720 = vmatpush1.msra.mxu0 0.0
    %721 = vmatprep.subr.mxu0 0.0
    %722 = vmatpush1.msra.mxu0 0.0
    %723 = vmatprep.subr.mxu0 0.0
    %724 = vmatpush1.msra.mxu0 0.0
    %725 = vmatprep.subr.mxu0 0.0
    %726 = vmatpush1.msra.mxu0 0.0
    %727 = vmatprep.subr.mxu0 0.0
    %728 = vmatpush1.msra.mxu0 0.0
    %729 = vmatprep.subr.mxu0 0.0
    %730 = vmatpush1.msra.mxu0 0.0
    %731 = vmatprep.subr.mxu0 0.0
    %732 = vmatpush1.msra.mxu0 0.0
    %733 = vmatprep.subr.mxu0 0.0
    %734 = vmatpush1.msra.mxu0 0.0
    %735 = vmatprep.subr.mxu0 0.0
    %736 = vmatpush1.msra.mxu0 0.0
    %737 = vmatprep.subr.mxu0 0.0
    %738 = vmatpush1.msra.mxu0 0.0
    %739 = vmatprep.subr.mxu0 0.0
    %740 = vmatpush1.msra.mxu0 0.0
    %741 = vmatprep.subr.mxu0 0.0
    %742 = vmatpush1.msra.mxu0 0.0
    %743 = vmatprep.mubr.f32.mxu0 0.0
    %744 = vmatmul.mubr.f32.gmra.mrb[0].mxu0 %v677
    %v745 = vpop.f32.mrb[0].mxu0
    %v746 = vadd.f32 0.0, %v745
    %v747 = vpop.f32.mrb[0].mxu0
    %748 = vdwg.mxu0
    %750 = vrot.lane.b32.xlu0 %v168, 112
    %v751 = vpop.permute.xlu0 %750
    %v754 = vsel %vm325, %v671, 0
    %756 = vmatprep.subr.mxu0 0.0
    %757 = vmatpush1.msra.mxu0 %v751
    %758 = vmatprep.subr.mxu0 0.0
    %759 = vmatpush1.msra.mxu0 0.0
    %760 = vmatprep.subr.mxu0 0.0
    %761 = vmatpush1.msra.mxu0 0.0
    %762 = vmatprep.subr.mxu0 0.0
    %763 = vmatpush1.msra.mxu0 0.0
    %764 = vmatprep.subr.mxu0 0.0
    %765 = vmatpush1.msra.mxu0 0.0
    %766 = vmatprep.subr.mxu0 0.0
    %767 = vmatpush1.msra.mxu0 0.0
    %768 = vmatprep.subr.mxu0 0.0
    %769 = vmatpush1.msra.mxu0 0.0
    %770 = vmatprep.subr.mxu0 0.0
    %771 = vmatpush1.msra.mxu0 0.0
    %772 = vmatprep.subr.mxu0 0.0
    %773 = vmatpush1.msra.mxu0 0.0
    %774 = vmatprep.subr.mxu0 0.0
    %775 = vmatpush1.msra.mxu0 0.0
    %776 = vmatprep.subr.mxu0 0.0
    %777 = vmatpush1.msra.mxu0 0.0
    %778 = vmatprep.subr.mxu0 0.0
    %779 = vmatpush1.msra.mxu0 0.0
    %780 = vmatprep.subr.mxu0 0.0
    %781 = vmatpush1.msra.mxu0 0.0
    %782 = vmatprep.subr.mxu0 0.0
    %783 = vmatpush1.msra.mxu0 0.0
    %784 = vmatprep.subr.mxu0 0.0
    %785 = vmatpush1.msra.mxu0 0.0
    %786 = vmatprep.subr.mxu0 0.0
    %787 = vmatpush1.msra.mxu0 0.0
    %788 = vmatprep.subr.mxu0 0.0
    %789 = vmatpush1.msra.mxu0 0.0
    %790 = vmatprep.subr.mxu0 0.0
    %791 = vmatpush1.msra.mxu0 0.0
    %792 = vmatprep.subr.mxu0 0.0
    %793 = vmatpush1.msra.mxu0 0.0
    %794 = vmatprep.subr.mxu0 0.0
    %795 = vmatpush1.msra.mxu0 0.0
    %796 = vmatprep.subr.mxu0 0.0
    %797 = vmatpush1.msra.mxu0 0.0
    %798 = vmatprep.subr.mxu0 0.0
    %799 = vmatpush1.msra.mxu0 0.0
    %800 = vmatprep.subr.mxu0 0.0
    %801 = vmatpush1.msra.mxu0 0.0
    %802 = vmatprep.subr.mxu0 0.0
    %803 = vmatpush1.msra.mxu0 0.0
    %804 = vmatprep.subr.mxu0 0.0
    %805 = vmatpush1.msra.mxu0 0.0
    %806 = vmatprep.subr.mxu0 0.0
    %807 = vmatpush1.msra.mxu0 0.0
    %808 = vmatprep.subr.mxu0 0.0
    %809 = vmatpush1.msra.mxu0 0.0
    %810 = vmatprep.subr.mxu0 0.0
    %811 = vmatpush1.msra.mxu0 0.0
    %812 = vmatprep.subr.mxu0 0.0
    %813 = vmatpush1.msra.mxu0 0.0
    %814 = vmatprep.subr.mxu0 0.0
    %815 = vmatpush1.msra.mxu0 0.0
    %816 = vmatprep.subr.mxu0 0.0
    %817 = vmatpush1.msra.mxu0 0.0
    %818 = vmatprep.subr.mxu0 0.0
    %819 = vmatpush1.msra.mxu0 0.0
    %820 = vmatprep.mubr.f32.mxu0 0.0
    %821 = vmatmul.mubr.f32.gmra.mrb[0].mxu0 %v754
    %v822 = vpop.f32.mrb[0].mxu0
    %v823 = vadd.f32 0.0, %v822
    %v824 = vpop.f32.mrb[0].mxu0
    %825 = vdwg.mxu0
    %826 = vrot.lane.b32.xlu0 %v160, 96
    %v827 = vpop.permute.xlu0 %826
    %828 = vrot.lane.b32.xlu0 %v160, 32
    %v829 = vpop.permute.xlu0 %828
    %v830 = vsel %vm173, %v827, 0
    %v832 = vsel %vm173, %v829, 0
    %834 = vmatprep.subr.mxu0 0.0
    %835 = vmatpush1.xpose.msra.mxu0 %v832
    %836 = vmatprep.subr.mxu0 0.0
    %837 = vmatpush1.xpose.msra.mxu0 0.0
    %838 = vmatprep.subr.mxu0 0.0
    %839 = vmatpush1.xpose.msra.mxu0 0.0
    %840 = vmatprep.subr.mxu0 0.0
    %841 = vmatpush1.xpose.msra.mxu0 0.0
    %842 = vmatprep.subr.mxu0 0.0
    %843 = vmatpush1.xpose.msra.mxu0 0.0
    %844 = vmatprep.subr.mxu0 0.0
    %845 = vmatpush1.xpose.msra.mxu0 0.0
    %846 = vmatprep.subr.mxu0 0.0
    %847 = vmatpush1.xpose.msra.mxu0 0.0
    %848 = vmatprep.subr.mxu0 0.0
    %849 = vmatpush1.xpose.msra.mxu0 0.0
    %850 = vmatprep.subr.mxu0 0.0
    %851 = vmatpush1.xpose.msra.mxu0 0.0
    %852 = vmatprep.subr.mxu0 0.0
    %853 = vmatpush1.xpose.msra.mxu0 0.0
    %854 = vmatprep.subr.mxu0 0.0
    %855 = vmatpush1.xpose.msra.mxu0 0.0
    %856 = vmatprep.subr.mxu0 0.0
    %857 = vmatpush1.xpose.msra.mxu0 0.0
    %858 = vmatprep.subr.mxu0 0.0
    %859 = vmatpush1.xpose.msra.mxu0 0.0
    %860 = vmatprep.subr.mxu0 0.0
    %861 = vmatpush1.xpose.msra.mxu0 0.0
    %862 = vmatprep.subr.mxu0 0.0
    %863 = vmatpush1.xpose.msra.mxu0 0.0
    %864 = vmatprep.subr.mxu0 0.0
    %865 = vmatpush1.xpose.msra.mxu0 0.0
    %866 = vmatprep.subr.mxu0 0.0
    %867 = vmatpush1.xpose.msra.mxu0 0.0
    %868 = vmatprep.subr.mxu0 0.0
    %869 = vmatpush1.xpose.msra.mxu0 0.0
    %870 = vmatprep.subr.mxu0 0.0
    %871 = vmatpush1.xpose.msra.mxu0 0.0
    %872 = vmatprep.subr.mxu0 0.0
    %873 = vmatpush1.xpose.msra.mxu0 0.0
    %874 = vmatprep.subr.mxu0 0.0
    %875 = vmatpush1.xpose.msra.mxu0 0.0
    %876 = vmatprep.subr.mxu0 0.0
    %877 = vmatpush1.xpose.msra.mxu0 0.0
    %878 = vmatprep.subr.mxu0 0.0
    %879 = vmatpush1.xpose.msra.mxu0 0.0
    %880 = vmatprep.subr.mxu0 0.0
    %881 = vmatpush1.xpose.msra.mxu0 0.0
    %882 = vmatprep.subr.mxu0 0.0
    %883 = vmatpush1.xpose.msra.mxu0 0.0
    %884 = vmatprep.subr.mxu0 0.0
    %885 = vmatpush1.xpose.msra.mxu0 0.0
    %886 = vmatprep.subr.mxu0 0.0
    %887 = vmatpush1.xpose.msra.mxu0 0.0
    %888 = vmatprep.subr.mxu0 0.0
    %889 = vmatpush1.xpose.msra.mxu0 0.0
    %890 = vmatprep.subr.mxu0 0.0
    %891 = vmatpush1.xpose.msra.mxu0 0.0
    %892 = vmatprep.subr.mxu0 0.0
    %893 = vmatpush1.xpose.msra.mxu0 0.0
    %894 = vmatprep.subr.mxu0 0.0
    %895 = vmatpush1.xpose.msra.mxu0 0.0
    %896 = vmatprep.subr.mxu0 0.0
    %897 = vmatpush1.xpose.msra.mxu0 0.0
    %898 = vmatprep.mubr.f32.mxu0 0.0
    %899 = vmatmul.mubr.f32.gmra.mrb[0].mxu0 %v830
    %v900 = vpop.f32.mrb[0].mxu0
    %v901 = vadd.f32 0.0, %v900
    %v902 = vpop.f32.mrb[0].mxu0
    %903 = vdwg.mxu0
    %904 = vrot.lane.b32.xlu0 %v166, 96
    %v905 = vpop.permute.xlu0 %904
    %906 = vrot.lane.b32.xlu0 %v166, 32
    %v907 = vpop.permute.xlu0 %906
    %v908 = vsel %vm173, %v905, 0
    %v910 = vsel %vm173, %v907, 0
    %912 = vmatprep.subr.mxu0 0.0
    %913 = vmatpush1.xpose.msra.mxu0 %v910
    %914 = vmatprep.subr.mxu0 0.0
    %915 = vmatpush1.xpose.msra.mxu0 0.0
    %916 = vmatprep.subr.mxu0 0.0
    %917 = vmatpush1.xpose.msra.mxu0 0.0
    %918 = vmatprep.subr.mxu0 0.0
    %919 = vmatpush1.xpose.msra.mxu0 0.0
    %920 = vmatprep.subr.mxu0 0.0
    %921 = vmatpush1.xpose.msra.mxu0 0.0
    %922 = vmatprep.subr.mxu0 0.0
    %923 = vmatpush1.xpose.msra.mxu0 0.0
    %924 = vmatprep.subr.mxu0 0.0
    %925 = vmatpush1.xpose.msra.mxu0 0.0
    %926 = vmatprep.subr.mxu0 0.0
    %927 = vmatpush1.xpose.msra.mxu0 0.0
    %928 = vmatprep.subr.mxu0 0.0
    %929 = vmatpush1.xpose.msra.mxu0 0.0
    %930 = vmatprep.subr.mxu0 0.0
    %931 = vmatpush1.xpose.msra.mxu0 0.0
    %932 = vmatprep.subr.mxu0 0.0
    %933 = vmatpush1.xpose.msra.mxu0 0.0
    %934 = vmatprep.subr.mxu0 0.0
    %935 = vmatpush1.xpose.msra.mxu0 0.0
    %936 = vmatprep.subr.mxu0 0.0
    %937 = vmatpush1.xpose.msra.mxu0 0.0
    %938 = vmatprep.subr.mxu0 0.0
    %939 = vmatpush1.xpose.msra.mxu0 0.0
    %940 = vmatprep.subr.mxu0 0.0
    %941 = vmatpush1.xpose.msra.mxu0 0.0
    %942 = vmatprep.subr.mxu0 0.0
    %943 = vmatpush1.xpose.msra.mxu0 0.0
    %944 = vmatprep.subr.mxu0 0.0
    %945 = vmatpush1.xpose.msra.mxu0 0.0
    %946 = vmatprep.subr.mxu0 0.0
    %947 = vmatpush1.xpose.msra.mxu0 0.0
    %948 = vmatprep.subr.mxu0 0.0
    %949 = vmatpush1.xpose.msra.mxu0 0.0
    %950 = vmatprep.subr.mxu0 0.0
    %951 = vmatpush1.xpose.msra.mxu0 0.0
    %952 = vmatprep.subr.mxu0 0.0
    %953 = vmatpush1.xpose.msra.mxu0 0.0
    %954 = vmatprep.subr.mxu0 0.0
    %955 = vmatpush1.xpose.msra.mxu0 0.0
    %956 = vmatprep.subr.mxu0 0.0
    %957 = vmatpush1.xpose.msra.mxu0 0.0
    %958 = vmatprep.subr.mxu0 0.0
    %959 = vmatpush1.xpose.msra.mxu0 0.0
    %960 = vmatprep.subr.mxu0 0.0
    %961 = vmatpush1.xpose.msra.mxu0 0.0
    %962 = vmatprep.subr.mxu0 0.0
    %963 = vmatpush1.xpose.msra.mxu0 0.0
    %964 = vmatprep.subr.mxu0 0.0
    %965 = vmatpush1.xpose.msra.mxu0 0.0
    %966 = vmatprep.subr.mxu0 0.0
    %967 = vmatpush1.xpose.msra.mxu0 0.0
    %968 = vmatprep.subr.mxu0 0.0
    %969 = vmatpush1.xpose.msra.mxu0 0.0
    %970 = vmatprep.subr.mxu0 0.0
    %971 = vmatpush1.xpose.msra.mxu0 0.0
    %972 = vmatprep.subr.mxu0 0.0
    %973 = vmatpush1.xpose.msra.mxu0 0.0
    %974 = vmatprep.subr.mxu0 0.0
    %975 = vmatpush1.xpose.msra.mxu0 0.0
    %976 = vmatprep.mubr.f32.mxu0 0.0
    %977 = vmatmul.mubr.f32.gmra.mrb[0].mxu0 %v908
    %v978 = vpop.f32.mrb[0].mxu0
    %v979 = vadd.f32 0.0, %v978
    %v980 = vpop.f32.mrb[0].mxu0
    %981 = vdwg.mxu0
    %v982 = vsel %vm325, %v901, -inf
    %983 = vmax.xlane.f32.xlu0 %v982
    %v984 = vpop.xlane.xlu0 %983
    %v985 = vsel %vm325, %v979, -inf
    %986 = vmax.xlane.f32.xlu0 %v985
    %v987 = vpop.xlane.xlu0 %986
    %v988 = vsub.f32 %v901, %v984
    %v989 = vsub.f32 %v979, %v987
    %v990 = vmul.f32 %v988, 1.442695
    %v991 = vpow.pop %v990
    %v992 = vmul.f32 %v989, 1.442695
    %v993 = vpow.pop %v992
    %v994 = vsel %vm325, %v991, 0.0
    %995 = vadd.xlane.f32.xlu0 %v994
    %v996 = vpop.xlane.xlu0 %995
    %v997 = vsel %vm325, %v993, 0.0
    %998 = vadd.xlane.f32.xlu0 %v997
    %v999 = vpop.xlane.xlu0 %998
    %v1000 = vrcp.pop %v996
    %v1001 = vmul.f32 %v991, %v1000
    %v1002 = vrcp.pop %v999
    %v1003 = vmul.f32 %v993, %v1002
    %1004 = vrot.lane.b32.xlu0 %v162, 96
    %v1005 = vpop.permute.xlu0 %1004
    %v1008 = vsel %vm325, %v1001, 0
    %1010 = vmatprep.subr.mxu0 0.0
    %1011 = vmatpush1.msra.mxu0 %v1005
    %1012 = vmatprep.subr.mxu0 0.0
    %1013 = vmatpush1.msra.mxu0 0.0
    %1014 = vmatprep.subr.mxu0 0.0
    %1015 = vmatpush1.msra.mxu0 0.0
    %1016 = vmatprep.subr.mxu0 0.0
    %1017 = vmatpush1.msra.mxu0 0.0
    %1018 = vmatprep.subr.mxu0 0.0
    %1019 = vmatpush1.msra.mxu0 0.0
    %1020 = vmatprep.subr.mxu0 0.0
    %1021 = vmatpush1.msra.mxu0 0.0
    %1022 = vmatprep.subr.mxu0 0.0
    %1023 = vmatpush1.msra.mxu0 0.0
    %1024 = vmatprep.subr.mxu0 0.0
    %1025 = vmatpush1.msra.mxu0 0.0
    %1026 = vmatprep.subr.mxu0 0.0
    %1027 = vmatpush1.msra.mxu0 0.0
    %1028 = vmatprep.subr.mxu0 0.0
    %1029 = vmatpush1.msra.mxu0 0.0
    %1030 = vmatprep.subr.mxu0 0.0
    %1031 = vmatpush1.msra.mxu0 0.0
    %1032 = vmatprep.subr.mxu0 0.0
    %1033 = vmatpush1.msra.mxu0 0.0
    %1034 = vmatprep.subr.mxu0 0.0
    %1035 = vmatpush1.msra.mxu0 0.0
    %1036 = vmatprep.subr.mxu0 0.0
    %1037 = vmatpush1.msra.mxu0 0.0
    %1038 = vmatprep.subr.mxu0 0.0
    %1039 = vmatpush1.msra.mxu0 0.0
    %1040 = vmatprep.subr.mxu0 0.0
    %1041 = vmatpush1.msra.mxu0 0.0
    %1042 = vmatprep.subr.mxu0 0.0
    %1043 = vmatpush1.msra.mxu0 0.0
    %1044 = vmatprep.subr.mxu0 0.0
    %1045 = vmatpush1.msra.mxu0 0.0
    %1046 = vmatprep.subr.mxu0 0.0
    %1047 = vmatpush1.msra.mxu0 0.0
    %1048 = vmatprep.subr.mxu0 0.0
    %1049 = vmatpush1.msra.mxu0 0.0
    %1050 = vmatprep.subr.mxu0 0.0
    %1051 = vmatpush1.msra.mxu0 0.0
    %1052 = vmatprep.subr.mxu0 0.0
    %1053 = vmatpush1.msra.mxu0 0.0
    %1054 = vmatprep.subr.mxu0 0.0
    %1055 = vmatpush1.msra.mxu0 0.0
    %1056 = vmatprep.subr.mxu0 0.0
    %1057 = vmatpush1.msra.mxu0 0.0
    %1058 = vmatprep.subr.mxu0 0.0
    %1059 = vmatpush1.msra.mxu0 0.0
    %1060 = vmatprep.subr.mxu0 0.0
    %1061 = vmatpush1.msra.mxu0 0.0
    %1062 = vmatprep.subr.mxu0 0.0
    %1063 = vmatpush1.msra.mxu0 0.0
    %1064 = vmatprep.subr.mxu0 0.0
    %1065 = vmatpush1.msra.mxu0 0.0
    %1066 = vmatprep.subr.mxu0 0.0
    %1067 = vmatpush1.msra.mxu0 0.0
    %1068 = vmatprep.subr.mxu0 0.0
    %1069 = vmatpush1.msra.mxu0 0.0
    %1070 = vmatprep.subr.mxu0 0.0
    %1071 = vmatpush1.msra.mxu0 0.0
    %1072 = vmatprep.subr.mxu0 0.0
    %1073 = vmatpush1.msra.mxu0 0.0
    %1074 = vmatprep.mubr.f32.mxu0 0.0
    %1075 = vmatmul.mubr.f32.gmra.mrb[0].mxu0 %v1008
    %v1076 = vpop.f32.mrb[0].mxu0
    %v1077 = vadd.f32 0.0, %v1076
    %v1078 = vpop.f32.mrb[0].mxu0
    %1079 = vdwg.mxu0
    %1080 = vrot.lane.b32.xlu0 %v168, 96
    %v1081 = vpop.permute.xlu0 %1080
    %v1084 = vsel %vm325, %v1003, 0
    %1086 = vmatprep.subr.mxu0 0.0
    %1087 = vmatpush1.msra.mxu0 %v1081
    %1088 = vmatprep.subr.mxu0 0.0
    %1089 = vmatpush1.msra.mxu0 0.0
    %1090 = vmatprep.subr.mxu0 0.0
    %1091 = vmatpush1.msra.mxu0 0.0
    %1092 = vmatprep.subr.mxu0 0.0
    %1093 = vmatpush1.msra.mxu0 0.0
    %1094 = vmatprep.subr.mxu0 0.0
    %1095 = vmatpush1.msra.mxu0 0.0
    %1096 = vmatprep.subr.mxu0 0.0
    %1097 = vmatpush1.msra.mxu0 0.0
    %1098 = vmatprep.subr.mxu0 0.0
    %1099 = vmatpush1.msra.mxu0 0.0
    %1100 = vmatprep.subr.mxu0 0.0
    %1101 = vmatpush1.msra.mxu0 0.0
    %1102 = vmatprep.subr.mxu0 0.0
    %1103 = vmatpush1.msra.mxu0 0.0
    %1104 = vmatprep.subr.mxu0 0.0
    %1105 = vmatpush1.msra.mxu0 0.0
    %1106 = vmatprep.subr.mxu0 0.0
    %1107 = vmatpush1.msra.mxu0 0.0
    %1108 = vmatprep.subr.mxu0 0.0
    %1109 = vmatpush1.msra.mxu0 0.0
    %1110 = vmatprep.subr.mxu0 0.0
    %1111 = vmatpush1.msra.mxu0 0.0
    %1112 = vmatprep.subr.mxu0 0.0
    %1113 = vmatpush1.msra.mxu0 0.0
    %1114 = vmatprep.subr.mxu0 0.0
    %1115 = vmatpush1.msra.mxu0 0.0
    %1116 = vmatprep.subr.mxu0 0.0
    %1117 = vmatpush1.msra.mxu0 0.0
    %1118 = vmatprep.subr.mxu0 0.0
    %1119 = vmatpush1.msra.mxu0 0.0
    %1120 = vmatprep.subr.mxu0 0.0
    %1121 = vmatpush1.msra.mxu0 0.0
    %1122 = vmatprep.subr.mxu0 0.0
    %1123 = vmatpush1.msra.mxu0 0.0
    %1124 = vmatprep.subr.mxu0 0.0
    %1125 = vmatpush1.msra.mxu0 0.0
    %1126 = vmatprep.subr.mxu0 0.0
    %1127 = vmatpush1.msra.mxu0 0.0
    %1128 = vmatprep.subr.mxu0 0.0
    %1129 = vmatpush1.msra.mxu0 0.0
    %1130 = vmatprep.subr.mxu0 0.0
    %1131 = vmatpush1.msra.mxu0 0.0
    %1132 = vmatprep.subr.mxu0 0.0
    %1133 = vmatpush1.msra.mxu0 0.0
    %1134 = vmatprep.subr.mxu0 0.0
    %1135 = vmatpush1.msra.mxu0 0.0
    %1136 = vmatprep.subr.mxu0 0.0
    %1137 = vmatpush1.msra.mxu0 0.0
    %1138 = vmatprep.subr.mxu0 0.0
    %1139 = vmatpush1.msra.mxu0 0.0
    %1140 = vmatprep.subr.mxu0 0.0
    %1141 = vmatpush1.msra.mxu0 0.0
    %1142 = vmatprep.subr.mxu0 0.0
    %1143 = vmatpush1.msra.mxu0 0.0
    %1144 = vmatprep.subr.mxu0 0.0
    %1145 = vmatpush1.msra.mxu0 0.0
    %1146 = vmatprep.subr.mxu0 0.0
    %1147 = vmatpush1.msra.mxu0 0.0
    %1148 = vmatprep.subr.mxu0 0.0
    %1149 = vmatpush1.msra.mxu0 0.0
    %1150 = vmatprep.mubr.f32.mxu0 0.0
    %1151 = vmatmul.mubr.f32.gmra.mrb[0].mxu0 %v1084
    %v1152 = vpop.f32.mrb[0].mxu0
    %v1153 = vadd.f32 0.0, %v1152
    %v1154 = vpop.f32.mrb[0].mxu0
    %1155 = vdwg.mxu0
    %1156 = vrot.lane.b32.xlu0 %v160, 80
    %v1157 = vpop.permute.xlu0 %1156
    %1158 = vrot.lane.b32.xlu0 %v160, 16
    %v1159 = vpop.permute.xlu0 %1158
    %v1160 = vsel %vm173, %v1157, 0
    %v1162 = vsel %vm173, %v1159, 0
    %1164 = vmatprep.subr.mxu0 0.0
    %1165 = vmatpush1.xpose.msra.mxu0 %v1162
    %1166 = vmatprep.subr.mxu0 0.0
    %1167 = vmatpush1.xpose.msra.mxu0 0.0
    %1168 = vmatprep.subr.mxu0 0.0
    %1169 = vmatpush1.xpose.msra.mxu0 0.0
    %1170 = vmatprep.subr.mxu0 0.0
    %1171 = vmatpush1.xpose.msra.mxu0 0.0
    %1172 = vmatprep.subr.mxu0 0.0
    %1173 = vmatpush1.xpose.msra.mxu0 0.0
    %1174 = vmatprep.subr.mxu0 0.0
    %1175 = vmatpush1.xpose.msra.mxu0 0.0
    %1176 = vmatprep.subr.mxu0 0.0
    %1177 = vmatpush1.xpose.msra.mxu0 0.0
    %1178 = vmatprep.subr.mxu0 0.0
    %1179 = vmatpush1.xpose.msra.mxu0 0.0
    %1180 = vmatprep.subr.mxu0 0.0
    %1181 = vmatpush1.xpose.msra.mxu0 0.0
    %1182 = vmatprep.subr.mxu0 0.0
    %1183 = vmatpush1.xpose.msra.mxu0 0.0
    %1184 = vmatprep.subr.mxu0 0.0
    %1185 = vmatpush1.xpose.msra.mxu0 0.0
    %1186 = vmatprep.subr.mxu0 0.0
    %1187 = vmatpush1.xpose.msra.mxu0 0.0
    %1188 = vmatprep.subr.mxu0 0.0
    %1189 = vmatpush1.xpose.msra.mxu0 0.0
    %1190 = vmatprep.subr.mxu0 0.0
    %1191 = vmatpush1.xpose.msra.mxu0 0.0
    %1192 = vmatprep.subr.mxu0 0.0
    %1193 = vmatpush1.xpose.msra.mxu0 0.0
    %1194 = vmatprep.subr.mxu0 0.0
    %1195 = vmatpush1.xpose.msra.mxu0 0.0
    %1196 = vmatprep.subr.mxu0 0.0
    %1197 = vmatpush1.xpose.msra.mxu0 0.0
    %1198 = vmatprep.subr.mxu0 0.0
    %1199 = vmatpush1.xpose.msra.mxu0 0.0
    %1200 = vmatprep.subr.mxu0 0.0
    %1201 = vmatpush1.xpose.msra.mxu0 0.0
    %1202 = vmatprep.subr.mxu0 0.0
    %1203 = vmatpush1.xpose.msra.mxu0 0.0
    %1204 = vmatprep.subr.mxu0 0.0
    %1205 = vmatpush1.xpose.msra.mxu0 0.0
    %1206 = vmatprep.subr.mxu0 0.0
    %1207 = vmatpush1.xpose.msra.mxu0 0.0
    %1208 = vmatprep.subr.mxu0 0.0
    %1209 = vmatpush1.xpose.msra.mxu0 0.0
    %1210 = vmatprep.subr.mxu0 0.0
    %1211 = vmatpush1.xpose.msra.mxu0 0.0
    %1212 = vmatprep.subr.mxu0 0.0
    %1213 = vmatpush1.xpose.msra.mxu0 0.0
    %1214 = vmatprep.subr.mxu0 0.0
    %1215 = vmatpush1.xpose.msra.mxu0 0.0
    %1216 = vmatprep.subr.mxu0 0.0
    %1217 = vmatpush1.xpose.msra.mxu0 0.0
    %1218 = vmatprep.subr.mxu0 0.0
    %1219 = vmatpush1.xpose.msra.mxu0 0.0
    %1220 = vmatprep.subr.mxu0 0.0
    %1221 = vmatpush1.xpose.msra.mxu0 0.0
    %1222 = vmatprep.subr.mxu0 0.0
    %1223 = vmatpush1.xpose.msra.mxu0 0.0
    %1224 = vmatprep.subr.mxu0 0.0
    %1225 = vmatpush1.xpose.msra.mxu0 0.0
    %1226 = vmatprep.subr.mxu0 0.0
    %1227 = vmatpush1.xpose.msra.mxu0 0.0
    %1228 = vmatprep.mubr.f32.mxu0 0.0
    %1229 = vmatmul.mubr.f32.gmra.mrb[0].mxu0 %v1160
    %v1230 = vpop.f32.mrb[0].mxu0
    %v1231 = vadd.f32 0.0, %v1230
    %v1232 = vpop.f32.mrb[0].mxu0
    %1233 = vdwg.mxu0
    %1234 = vrot.lane.b32.xlu0 %v166, 80
    %v1235 = vpop.permute.xlu0 %1234
    %1236 = vrot.lane.b32.xlu0 %v166, 16
    %v1237 = vpop.permute.xlu0 %1236
    %v1238 = vsel %vm173, %v1235, 0
    %v1240 = vsel %vm173, %v1237, 0
    %1242 = vmatprep.subr.mxu0 0.0
    %1243 = vmatpush1.xpose.msra.mxu0 %v1240
    %1244 = vmatprep.subr.mxu0 0.0
    %1245 = vmatpush1.xpose.msra.mxu0 0.0
    %1246 = vmatprep.subr.mxu0 0.0
    %1247 = vmatpush1.xpose.msra.mxu0 0.0
    %1248 = vmatprep.subr.mxu0 0.0
    %1249 = vmatpush1.xpose.msra.mxu0 0.0
    %1250 = vmatprep.subr.mxu0 0.0
    %1251 = vmatpush1.xpose.msra.mxu0 0.0
    %1252 = vmatprep.subr.mxu0 0.0
    %1253 = vmatpush1.xpose.msra.mxu0 0.0
    %1254 = vmatprep.subr.mxu0 0.0
    %1255 = vmatpush1.xpose.msra.mxu0 0.0
    %1256 = vmatprep.subr.mxu0 0.0
    %1257 = vmatpush1.xpose.msra.mxu0 0.0
    %1258 = vmatprep.subr.mxu0 0.0
    %1259 = vmatpush1.xpose.msra.mxu0 0.0
    %1260 = vmatprep.subr.mxu0 0.0
    %1261 = vmatpush1.xpose.msra.mxu0 0.0
    %1262 = vmatprep.subr.mxu0 0.0
    %1263 = vmatpush1.xpose.msra.mxu0 0.0
    %1264 = vmatprep.subr.mxu0 0.0
    %1265 = vmatpush1.xpose.msra.mxu0 0.0
    %1266 = vmatprep.subr.mxu0 0.0
    %1267 = vmatpush1.xpose.msra.mxu0 0.0
    %1268 = vmatprep.subr.mxu0 0.0
    %1269 = vmatpush1.xpose.msra.mxu0 0.0
    %1270 = vmatprep.subr.mxu0 0.0
    %1271 = vmatpush1.xpose.msra.mxu0 0.0
    %1272 = vmatprep.subr.mxu0 0.0
    %1273 = vmatpush1.xpose.msra.mxu0 0.0
    %1274 = vmatprep.subr.mxu0 0.0
    %1275 = vmatpush1.xpose.msra.mxu0 0.0
    %1276 = vmatprep.subr.mxu0 0.0
    %1277 = vmatpush1.xpose.msra.mxu0 0.0
    %1278 = vmatprep.subr.mxu0 0.0
    %1279 = vmatpush1.xpose.msra.mxu0 0.0
    %1280 = vmatprep.subr.mxu0 0.0
    %1281 = vmatpush1.xpose.msra.mxu0 0.0
    %1282 = vmatprep.subr.mxu0 0.0
    %1283 = vmatpush1.xpose.msra.mxu0 0.0
    %1284 = vmatprep.subr.mxu0 0.0
    %1285 = vmatpush1.xpose.msra.mxu0 0.0
    %1286 = vmatprep.subr.mxu0 0.0
    %1287 = vmatpush1.xpose.msra.mxu0 0.0
    %1288 = vmatprep.subr.mxu0 0.0
    %1289 = vmatpush1.xpose.msra.mxu0 0.0
    %1290 = vmatprep.subr.mxu0 0.0
    %1291 = vmatpush1.xpose.msra.mxu0 0.0
    %1292 = vmatprep.subr.mxu0 0.0
    %1293 = vmatpush1.xpose.msra.mxu0 0.0
    %1294 = vmatprep.subr.mxu0 0.0
    %1295 = vmatpush1.xpose.msra.mxu0 0.0
    %1296 = vmatprep.subr.mxu0 0.0
    %1297 = vmatpush1.xpose.msra.mxu0 0.0
    %1298 = vmatprep.subr.mxu0 0.0
    %1299 = vmatpush1.xpose.msra.mxu0 0.0
    %1300 = vmatprep.subr.mxu0 0.0
    %1301 = vmatpush1.xpose.msra.mxu0 0.0
    %1302 = vmatprep.subr.mxu0 0.0
    %1303 = vmatpush1.xpose.msra.mxu0 0.0
    %1304 = vmatprep.subr.mxu0 0.0
    %1305 = vmatpush1.xpose.msra.mxu0 0.0
    %1306 = vmatprep.mubr.f32.mxu0 0.0
    %1307 = vmatmul.mubr.f32.gmra.mrb[0].mxu0 %v1238
    %v1308 = vpop.f32.mrb[0].mxu0
    %v1309 = vadd.f32 0.0, %v1308
    %v1310 = vpop.f32.mrb[0].mxu0
    %1311 = vdwg.mxu0
    %v1312 = vsel %vm325, %v1231, -inf
    %1313 = vmax.xlane.f32.xlu0 %v1312
    %v1314 = vpop.xlane.xlu0 %1313
    %v1315 = vsel %vm325, %v1309, -inf
    %1316 = vmax.xlane.f32.xlu0 %v1315
    %v1317 = vpop.xlane.xlu0 %1316
    %v1318 = vsub.f32 %v1231, %v1314
    %v1319 = vsub.f32 %v1309, %v1317
    %v1320 = vmul.f32 %v1318, 1.442695
    %v1321 = vpow.pop %v1320
    %v1322 = vmul.f32 %v1319, 1.442695
    %v1323 = vpow.pop %v1322
    %v1324 = vsel %vm325, %v1321, 0.0
    %1325 = vadd.xlane.f32.xlu0 %v1324
    %v1326 = vpop.xlane.xlu0 %1325
    %v1327 = vsel %vm325, %v1323, 0.0
    %1328 = vadd.xlane.f32.xlu0 %v1327
    %v1329 = vpop.xlane.xlu0 %1328
    %v1330 = vrcp.pop %v1326
    %v1331 = vmul.f32 %v1321, %v1330
    %v1332 = vrcp.pop %v1329
    %v1333 = vmul.f32 %v1323, %v1332
    %1334 = vrot.lane.b32.xlu0 %v162, 80
    %v1335 = vpop.permute.xlu0 %1334
    %v1338 = vsel %vm325, %v1331, 0
    %1340 = vmatprep.subr.mxu0 0.0
    %1341 = vmatpush1.msra.mxu0 %v1335
    %1342 = vmatprep.subr.mxu0 0.0
    %1343 = vmatpush1.msra.mxu0 0.0
    %1344 = vmatprep.subr.mxu0 0.0
    %1345 = vmatpush1.msra.mxu0 0.0
    %1346 = vmatprep.subr.mxu0 0.0
    %1347 = vmatpush1.msra.mxu0 0.0
    %1348 = vmatprep.subr.mxu0 0.0
    %1349 = vmatpush1.msra.mxu0 0.0
    %1350 = vmatprep.subr.mxu0 0.0
    %1351 = vmatpush1.msra.mxu0 0.0
    %1352 = vmatprep.subr.mxu0 0.0
    %1353 = vmatpush1.msra.mxu0 0.0
    %1354 = vmatprep.subr.mxu0 0.0
    %1355 = vmatpush1.msra.mxu0 0.0
    %1356 = vmatprep.subr.mxu0 0.0
    %1357 = vmatpush1.msra.mxu0 0.0
    %1358 = vmatprep.subr.mxu0 0.0
    %1359 = vmatpush1.msra.mxu0 0.0
    %1360 = vmatprep.subr.mxu0 0.0
    %1361 = vmatpush1.msra.mxu0 0.0
    %1362 = vmatprep.subr.mxu0 0.0
    %1363 = vmatpush1.msra.mxu0 0.0
    %1364 = vmatprep.subr.mxu0 0.0
    %1365 = vmatpush1.msra.mxu0 0.0
    %1366 = vmatprep.subr.mxu0 0.0
    %1367 = vmatpush1.msra.mxu0 0.0
    %1368 = vmatprep.subr.mxu0 0.0
    %1369 = vmatpush1.msra.mxu0 0.0
    %1370 = vmatprep.subr.mxu0 0.0
    %1371 = vmatpush1.msra.mxu0 0.0
    %1372 = vmatprep.subr.mxu0 0.0
    %1373 = vmatpush1.msra.mxu0 0.0
    %1374 = vmatprep.subr.mxu0 0.0
    %1375 = vmatpush1.msra.mxu0 0.0
    %1376 = vmatprep.subr.mxu0 0.0
    %1377 = vmatpush1.msra.mxu0 0.0
    %1378 = vmatprep.subr.mxu0 0.0
    %1379 = vmatpush1.msra.mxu0 0.0
    %1380 = vmatprep.subr.mxu0 0.0
    %1381 = vmatpush1.msra.mxu0 0.0
    %1382 = vmatprep.subr.mxu0 0.0
    %1383 = vmatpush1.msra.mxu0 0.0
    %1384 = vmatprep.subr.mxu0 0.0
    %1385 = vmatpush1.msra.mxu0 0.0
    %1386 = vmatprep.subr.mxu0 0.0
    %1387 = vmatpush1.msra.mxu0 0.0
    %1388 = vmatprep.subr.mxu0 0.0
    %1389 = vmatpush1.msra.mxu0 0.0
    %1390 = vmatprep.subr.mxu0 0.0
    %1391 = vmatpush1.msra.mxu0 0.0
    %1392 = vmatprep.subr.mxu0 0.0
    %1393 = vmatpush1.msra.mxu0 0.0
    %1394 = vmatprep.subr.mxu0 0.0
    %1395 = vmatpush1.msra.mxu0 0.0
    %1396 = vmatprep.subr.mxu0 0.0
    %1397 = vmatpush1.msra.mxu0 0.0
    %1398 = vmatprep.subr.mxu0 0.0
    %1399 = vmatpush1.msra.mxu0 0.0
    %1400 = vmatprep.subr.mxu0 0.0
    %1401 = vmatpush1.msra.mxu0 0.0
    %1402 = vmatprep.subr.mxu0 0.0
    %1403 = vmatpush1.msra.mxu0 0.0
    %1404 = vmatprep.mubr.f32.mxu0 0.0
    %1405 = vmatmul.mubr.f32.gmra.mrb[0].mxu0 %v1338
    %v1406 = vpop.f32.mrb[0].mxu0
    %v1407 = vadd.f32 0.0, %v1406
    %v1408 = vpop.f32.mrb[0].mxu0
    %1409 = vdwg.mxu0
    %1410 = vrot.lane.b32.xlu0 %v168, 80
    %v1411 = vpop.permute.xlu0 %1410
    %v1414 = vsel %vm325, %v1333, 0
    %1416 = vmatprep.subr.mxu0 0.0
    %1417 = vmatpush1.msra.mxu0 %v1411
    %1418 = vmatprep.subr.mxu0 0.0
    %1419 = vmatpush1.msra.mxu0 0.0
    %1420 = vmatprep.subr.mxu0 0.0
    %1421 = vmatpush1.msra.mxu0 0.0
    %1422 = vmatprep.subr.mxu0 0.0
    %1423 = vmatpush1.msra.mxu0 0.0
    %1424 = vmatprep.subr.mxu0 0.0
    %1425 = vmatpush1.msra.mxu0 0.0
    %1426 = vmatprep.subr.mxu0 0.0
    %1427 = vmatpush1.msra.mxu0 0.0
    %1428 = vmatprep.subr.mxu0 0.0
    %1429 = vmatpush1.msra.mxu0 0.0
    %1430 = vmatprep.subr.mxu0 0.0
    %1431 = vmatpush1.msra.mxu0 0.0
    %1432 = vmatprep.subr.mxu0 0.0
    %1433 = vmatpush1.msra.mxu0 0.0
    %1434 = vmatprep.subr.mxu0 0.0
    %1435 = vmatpush1.msra.mxu0 0.0
    %1436 = vmatprep.subr.mxu0 0.0
    %1437 = vmatpush1.msra.mxu0 0.0
    %1438 = vmatprep.subr.mxu0 0.0
    %1439 = vmatpush1.msra.mxu0 0.0
    %1440 = vmatprep.subr.mxu0 0.0
    %1441 = vmatpush1.msra.mxu0 0.0
    %1442 = vmatprep.subr.mxu0 0.0
    %1443 = vmatpush1.msra.mxu0 0.0
    %1444 = vmatprep.subr.mxu0 0.0
    %1445 = vmatpush1.msra.mxu0 0.0
    %1446 = vmatprep.subr.mxu0 0.0
    %1447 = vmatpush1.msra.mxu0 0.0
    %1448 = vmatprep.subr.mxu0 0.0
    %1449 = vmatpush1.msra.mxu0 0.0
    %1450 = vmatprep.subr.mxu0 0.0
    %1451 = vmatpush1.msra.mxu0 0.0
    %1452 = vmatprep.subr.mxu0 0.0
    %1453 = vmatpush1.msra.mxu0 0.0
    %1454 = vmatprep.subr.mxu0 0.0
    %1455 = vmatpush1.msra.mxu0 0.0
    %1456 = vmatprep.subr.mxu0 0.0
    %1457 = vmatpush1.msra.mxu0 0.0
    %1458 = vmatprep.subr.mxu0 0.0
    %1459 = vmatpush1.msra.mxu0 0.0
    %1460 = vmatprep.subr.mxu0 0.0
    %1461 = vmatpush1.msra.mxu0 0.0
    %1462 = vmatprep.subr.mxu0 0.0
    %1463 = vmatpush1.msra.mxu0 0.0
    %1464 = vmatprep.subr.mxu0 0.0
    %1465 = vmatpush1.msra.mxu0 0.0
    %1466 = vmatprep.subr.mxu0 0.0
    %1467 = vmatpush1.msra.mxu0 0.0
    %1468 = vmatprep.subr.mxu0 0.0
    %1469 = vmatpush1.msra.mxu0 0.0
    %1470 = vmatprep.subr.mxu0 0.0
    %1471 = vmatpush1.msra.mxu0 0.0
    %1472 = vmatprep.subr.mxu0 0.0
    %1473 = vmatpush1.msra.mxu0 0.0
    %1474 = vmatprep.subr.mxu0 0.0
    %1475 = vmatpush1.msra.mxu0 0.0
    %1476 = vmatprep.subr.mxu0 0.0
    %1477 = vmatpush1.msra.mxu0 0.0
    %1478 = vmatprep.subr.mxu0 0.0
    %1479 = vmatpush1.msra.mxu0 0.0
    %1480 = vmatprep.mubr.f32.mxu0 0.0
    %1481 = vmatmul.mubr.f32.gmra.mrb[0].mxu0 %v1414
    %v1482 = vpop.f32.mrb[0].mxu0
    %v1483 = vadd.f32 0.0, %v1482
    %v1484 = vpop.f32.mrb[0].mxu0
    %1485 = vdwg.mxu0
    %1488 = vrot.lane.b32.xlu0 %v746, 16
    %v1489 = vpop.permute.xlu0 %1488
    %1490 = vrot.lane.b32.xlu0 %v823, 16
    %v1491 = vpop.permute.xlu0 %1490
    %1496 = vrot.lane.b32.xlu0 %v1077, 32
    %v1497 = vpop.permute.xlu0 %1496
    %1498 = vrot.lane.b32.xlu0 %v1153, 32
    %v1499 = vpop.permute.xlu0 %1498
    %1504 = vrot.lane.b32.xlu0 %v1407, 48
    %v1505 = vpop.permute.xlu0 %1504
    %1506 = vrot.lane.b32.xlu0 %v1483, 48
    %v1507 = vpop.permute.xlu0 %1506
    %v1510 = vsel %vm173, %v418, %v1489
    %v1511 = vsel %vm173, %v491, %v1491
    %vm1512 = vcmask 261120
    %v1513 = vsel %vm1512, %v1510, %v1497
    %v1514 = vsel %vm1512, %v1511, %v1499
    %vm1515 = vcmask 392192
    %v1516 = vsel %vm1515, %v1513, %v1505
    %v1517 = vsel %vm1515, %v1514, %v1507
    %v1518 = vld [vmem:[#allocation7] sm:$0xff]
    %v1519 = vld [vmem:[#allocation7 + $0x8] sm:$0xff]
    %v1520 = vld [vmem:[#allocation7 + $0x10] sm:$0xff]
    %v1521 = vld [vmem:[#allocation7 + $0x18] sm:$0xff]
    %v1522 = vld [vmem:[#allocation7 + $0x20] sm:$0xff]
    %v1523 = vld [vmem:[#allocation7 + $0x28] sm:$0xff]
    %v1524 = vld [vmem:[#allocation7 + $0x30] sm:$0xff]
    %v1525 = vld [vmem:[#allocation7 + $0x38] sm:$0xff]
    %v1526 = vld [vmem:[%s3] sm:$0x1]
    %v1528 = vlaneseq
    %v1529 = vshrl.u32 %v1528, 7
    %v1530 = vsub.s32 0, %v1529
    %v1531 = vrot.slane %v1526, %v1530
    %vm1533 = vcmask 523264
    %v1535 = vsel %vm1533, %v1516, 0
    %v1538 = vsel %vm1533, %v1517, 0
    %1540 = vmatprep.subr.mxu0 0.0
    %1541 = vmatpush1.msra.mxu0 %v1518
    %1542 = vmatprep.subr.mxu0 0.0
    %1543 = vmatpush1.msra.mxu0 %v1519
    %1544 = vmatprep.subr.mxu0 0.0
    %1545 = vmatpush1.msra.mxu0 %v1520
    %1546 = vmatprep.subr.mxu0 0.0
    %1547 = vmatpush1.msra.mxu0 %v1521
    %1548 = vmatprep.subr.mxu0 0.0
    %1549 = vmatpush1.msra.mxu0 %v1522
    %1550 = vmatprep.subr.mxu0 0.0
    %1551 = vmatpush1.msra.mxu0 %v1523
    %1552 = vmatprep.subr.mxu0 0.0
    %1553 = vmatpush1.msra.mxu0 %v1524
    %1554 = vmatprep.subr.mxu0 0.0
    %1555 = vmatpush1.msra.mxu0 %v1525
    %1556 = vmatprep.subr.mxu0 0.0
    %1557 = vmatpush1.msra.mxu0 0.0
    %1558 = vmatprep.subr.mxu0 0.0
    %1559 = vmatpush1.msra.mxu0 0.0
    %1560 = vmatprep.subr.mxu0 0.0
    %1561 = vmatpush1.msra.mxu0 0.0
    %1562 = vmatprep.subr.mxu0 0.0
    %1563 = vmatpush1.msra.mxu0 0.0
    %1564 = vmatprep.subr.mxu0 0.0
    %1565 = vmatpush1.msra.mxu0 0.0
    %1566 = vmatprep.subr.mxu0 0.0
    %1567 = vmatpush1.msra.mxu0 0.0
    %1568 = vmatprep.subr.mxu0 0.0
    %1569 = vmatpush1.msra.mxu0 0.0
    %1570 = vmatprep.subr.mxu0 0.0
    %1571 = vmatpush1.msra.mxu0 0.0
    %1572 = vmatprep.subr.mxu0 0.0
    %1573 = vmatpush1.msra.mxu0 0.0
    %1574 = vmatprep.subr.mxu0 0.0
    %1575 = vmatpush1.msra.mxu0 0.0
    %1576 = vmatprep.subr.mxu0 0.0
    %1577 = vmatpush1.msra.mxu0 0.0
    %1578 = vmatprep.subr.mxu0 0.0
    %1579 = vmatpush1.msra.mxu0 0.0
    %1580 = vmatprep.subr.mxu0 0.0
    %1581 = vmatpush1.msra.mxu0 0.0
    %1582 = vmatprep.subr.mxu0 0.0
    %1583 = vmatpush1.msra.mxu0 0.0
    %1584 = vmatprep.subr.mxu0 0.0
    %1585 = vmatpush1.msra.mxu0 0.0
    %1586 = vmatprep.subr.mxu0 0.0
    %1587 = vmatpush1.msra.mxu0 0.0
    %1588 = vmatprep.subr.mxu0 0.0
    %1589 = vmatpush1.msra.mxu0 0.0
    %1590 = vmatprep.subr.mxu0 0.0
    %1591 = vmatpush1.msra.mxu0 0.0
    %1592 = vmatprep.subr.mxu0 0.0
    %1593 = vmatpush1.msra.mxu0 0.0
    %1594 = vmatprep.subr.mxu0 0.0
    %1595 = vmatpush1.msra.mxu0 0.0
    %1596 = vmatprep.subr.mxu0 0.0
    %1597 = vmatpush1.msra.mxu0 0.0
    %1598 = vmatprep.subr.mxu0 0.0
    %1599 = vmatpush1.msra.mxu0 0.0
    %1600 = vmatprep.subr.mxu0 0.0
    %1601 = vmatpush1.msra.mxu0 0.0
    %1602 = vmatprep.subr.mxu0 0.0
    %1603 = vmatpush1.msra.mxu0 0.0
    %1604 = vmatprep.mubr.f32.mxu0 0.0
    %1605 = vmatmul.mubr.f32.gmra.mrb[0].mxu0 %v1535
    %v1606 = vpop.f32.mrb[0].mxu0
    %v1607 = vadd.f32 %v1531, %v1606
    %v1608 = vpop.f32.mrb[0].mxu0
    %1609 = vmatprep.mubr.f32.mxu0 0.0
    %1610 = vmatmul.mubr.f32.gmra.mrb[0].mxu0 %v1538
    %v1611 = vpop.f32.mrb[0].mxu0
    %v1612 = vadd.f32 %v1531, %v1611
    %v1613 = vpop.f32.mrb[0].mxu0
    %1614 = vdwg.mxu0
    %1615 = vst [vmem:[#allocation8] sm:$0xff] %v1607
    %1616 = vst [vmem:[#allocation8 + $0x8] sm:$0xff] %v1612
    // Predicated region
    $region30: #{tpu_custom_call.1} parent=1 // pred_check
      _
    $region31: #{tpu_custom_call.1} parent=1 // pred_check_branch
      %1618 = sbr.rel (0) target = $region33
    $region32: #{tpu_custom_call.1} parent=1 // pred_region
      %s1620 = ssub.s32 256, 256
      %1621 = vsyncadd [#allocation4], %s1620
      %s1622 = sshll.u32 [#allocation8], 4
      %s1623 = int_to_ptr.vmem [resolvable:$true] %s1622
      %1628 = dma.vmem_to_hbm [thread:$0]  %s1623, 256, %s4, [#allocation4], 128, 128, 8
    $region33: #{tpu_custom_call.1} parent=1 // pred_fallthru
      _
    // Predicated region
    $region34: #{tpu_custom_call.1} parent=1 // pred_check
      _
    $region35: #{tpu_custom_call.1} parent=1 // pred_check_branch
      %1630 = sbr.rel (0) target = $region37
    $region36: #{tpu_custom_call.1} parent=1 // pred_region
      %1631 = dma.done [#allocation4], 256
    $region37: #{tpu_custom_call.1} parent=1 // pred_fallthru
      _
    %1632 = vsyncpa [#allocation3], 1
    %1633 = vsyncpa [#allocation6], 1
    %1634 = vsyncpa [#allocation4], 1

</llo_original>
